<compile_context>
chip_gen: v7x
topology: tpu7x:2x2x1
jax: 0.10.0
libtpu: 0.0.40
codegen_flags: <defaults>
</compile_context>

<pallas_src>
import math
import functools

import jax
import jax.numpy as jnp
from jax.experimental import pallas as pl
from jax.experimental.pallas import tpu as pltpu

# Module constants (from bigram.py)
BLOCK_SIZE = 256
D_MODEL = 512
H = 6
D_K = D_MODEL // H                      # = 85
LANE = 128
D_K_PAD = ((D_K + LANE - 1) // LANE) * LANE   # 85 -> 128

TQ = 128                 # query-tile rows: live score slab stays at 32 vregs
_MASK_VALUE = -1e30      # large finite negative; avoids any inf-inf NaN risk


def _self_attention_kernel(x_ref, w_ref, o_ref, k_sc, q_sc, v_sc, *,
                           scale, t, dkp):
    # x_ref: (1, T, C) f32   full sequence of one batch element
    # w_ref: (C, 3*dkp) bf16 fused lane-padded [Wk | Wq | Wv]
    # o_ref: (1, T, dkp) bf16 lane-padded output for this batch element
    # k_sc/q_sc/v_sc: (T, dkp) bf16 VMEM scratch
    x = x_ref[0].astype(jnp.bfloat16)          # in-kernel cast (no wrapper op)

    # Chunked projection: three (T, dkp) MXU matmuls; each f32 result is only
    # 32 vregs live (no 96-vreg fused intermediate -> no spill traffic).
    k_sc[...] = jnp.dot(x, w_ref[:, 0 * dkp:1 * dkp],
                        preferred_element_type=jnp.float32).astype(jnp.bfloat16)
    # Fold the 1/sqrt(C) scale into Q (T x dkp) instead of S (T x T).
    q_sc[...] = (jnp.dot(x, w_ref[:, 1 * dkp:2 * dkp],
                         preferred_element_type=jnp.float32)
                 * scale).astype(jnp.bfloat16)
    v_sc[...] = jnp.dot(x, w_ref[:, 2 * dkp:3 * dkp],
                        preferred_element_type=jnp.float32).astype(jnp.bfloat16)

    # The diagonal-block causal mask is identical (in tile-local coordinates)
    # for every query tile -> build it once, reuse across the tile loop.
    rr = jax.lax.broadcasted_iota(jnp.int32, (TQ, TQ), 0)
    cc = jax.lax.broadcasted_iota(jnp.int32, (TQ, TQ), 1)
    diag_mask = cc <= rr

    nq = -(-t // TQ)                # ceil-div; static Python int
    for qi in range(nq):            # static unroll; grid carries only batch
        row0 = qi * TQ
        rows = min(TQ, t - row0)    # ragged last tile handled statically
        q = q_sc[pl.ds(row0, rows), :]                       # (rows, dkp) bf16

        # Diagonal k-tile: the only one that needs the causal mask.
        s_diag = jax.lax.dot_general(
            q, k_sc[pl.ds(row0, rows), :],
            dimension_numbers=(((1,), (1,)), ((), ())),
            preferred_element_type=jnp.float32)              # (rows, rows) f32
        s_diag = jnp.where(diag_mask[:rows, :rows], s_diag, _MASK_VALUE)

        if row0 > 0:
            # Strictly-below-diagonal k-tiles: fully visible -> no mask work,
            # and fully-masked above-diagonal tiles are never computed at all.
            s_prev = jax.lax.dot_general(
                q, k_sc[pl.ds(0, row0), :],
                dimension_numbers=(((1,), (1,)), ((), ())),
                preferred_element_type=jnp.float32)          # (rows, row0) f32
            m = jnp.maximum(jnp.max(s_prev, axis=-1, keepdims=True),
                            jnp.max(s_diag, axis=-1, keepdims=True))
            e_prev = jnp.exp(s_prev - m)
            e_diag = jnp.exp(s_diag - m)
            denom = (jnp.sum(e_prev, axis=-1, keepdims=True)
                     + jnp.sum(e_diag, axis=-1, keepdims=True))
            inv = pl.reciprocal(denom, approx=True)          # EUP path
            out = (jnp.dot((e_prev * inv).astype(jnp.bfloat16),
                           v_sc[pl.ds(0, row0), :],
                           preferred_element_type=jnp.float32)
                   + jnp.dot((e_diag * inv).astype(jnp.bfloat16),
                             v_sc[pl.ds(row0, rows), :],
                             preferred_element_type=jnp.float32))
        else:
            m = jnp.max(s_diag, axis=-1, keepdims=True)
            e_diag = jnp.exp(s_diag - m)
            denom = jnp.sum(e_diag, axis=-1, keepdims=True)
            inv = pl.reciprocal(denom, approx=True)
            out = jnp.dot((e_diag * inv).astype(jnp.bfloat16),
                          v_sc[pl.ds(row0, rows), :],
                          preferred_element_type=jnp.float32)

        # dropout: identity (eval mode)
        o_ref[0, pl.ds(row0, rows), :] = out.astype(o_ref.dtype)


def fuse_qkv_weights(wk, wq, wv):
    """Build the fused, lane-padded (C, 3*dkp) bf16 slab [Wk | Wq | Wv].

    Call ONCE at parameter-conversion/init time, not per forward call."""
    C, d_k = wk.shape
    assert wq.shape == (C, d_k) and wv.shape == (C, d_k)
    dkp = ((d_k + LANE - 1) // LANE) * LANE
    w = jnp.zeros((C, 3 * dkp), dtype=jnp.bfloat16)
    w = w.at[:, 0 * dkp:0 * dkp + d_k].set(wk.astype(jnp.bfloat16))
    w = w.at[:, 1 * dkp:1 * dkp + d_k].set(wq.astype(jnp.bfloat16))
    w = w.at[:, 2 * dkp:2 * dkp + d_k].set(wv.astype(jnp.bfloat16))
    return w


def self_attention_padded(x, w_kqv):
    """x: (B, T, C) f32, w_kqv: (C, 3*dkp) bf16 -> (B, T, dkp) bf16.

    Output keeps the 128-lane padding (extra lanes are exactly zero) and bf16
    dtype; prefer consuming this directly downstream to avoid an extra HBM
    slice pass."""
    B, T, C = x.shape
    assert w_kqv.shape[0] == C and w_kqv.shape[1] % (3 * LANE) == 0
    dkp = w_kqv.shape[1] // 3
    assert T <= BLOCK_SIZE

    scale = 1.0 / math.sqrt(C)   # matches `* 1 / math.sqrt(C)`, C = d_model

    kernel = functools.partial(_self_attention_kernel,
                               scale=scale, t=T, dkp=dkp)

    return pl.pallas_call(
        kernel,
        out_shape=jax.ShapeDtypeStruct((B, T, dkp), jnp.bfloat16),
        grid_spec=pltpu.PrefetchScalarGridSpec(
            num_scalar_prefetch=0,
            grid=(B,),                      # q-tiles looped inside the kernel
            in_specs=[
                pl.BlockSpec((1, T, C), lambda b: (b, 0, 0)),
                pl.BlockSpec((C, 3 * dkp), lambda b: (0, 0)),
            ],
            out_specs=pl.BlockSpec((1, T, dkp), lambda b: (b, 0, 0)),
            scratch_shapes=[
                pltpu.VMEM((T, dkp), jnp.bfloat16),   # K
                pltpu.VMEM((T, dkp), jnp.bfloat16),   # Q (pre-scaled)
                pltpu.VMEM((T, dkp), jnp.bfloat16),   # V
            ],
        ),
        compiler_params=pltpu.CompilerParams(
            dimension_semantics=("parallel",),   # batch across megacore TCs
        ),
    )(x, w_kqv)


def self_attention(x, w_kqv, d_k=D_K):
    """Module-shaped output (B, T, d_k). The trailing slice costs one extra
    HBM pass; prefer self_attention_padded() when the consumer can take the
    padded bf16 layout."""
    return self_attention_padded(x, w_kqv)[..., :d_k]


def self_attention_ref(x, wk, wq, wv):
    """Pure-JAX f32 reference mirroring the PyTorch forward (eval mode)."""
    B, T, C = x.shape
    k = x @ wk
    q = x @ wq
    v = x @ wv
    s = (q @ jnp.swapaxes(k, -1, -2)) * (1.0 / math.sqrt(C))
    mask = jnp.tril(jnp.ones((T, T), dtype=bool))
    s = jnp.where(mask, s, -jnp.inf)
    a = jax.nn.softmax(s, axis=-1)
    return a @ v


if __name__ == "__main__":
    key = jax.random.PRNGKey(0)
    kx, kk, kq, kv = jax.random.split(key, 4)

    B, T = 2, BLOCK_SIZE   # T = 256: the module's block_size, exercises q-tiling
    x = jax.random.normal(kx, (B, T, D_MODEL), dtype=jnp.float32)
    bound = 1.0 / math.sqrt(D_MODEL)
    wk = jax.random.uniform(kk, (D_MODEL, D_K), jnp.float32, -bound, bound)
    wq = jax.random.uniform(kq, (D_MODEL, D_K), jnp.float32, -bound, bound)
    wv = jax.random.uniform(kv, (D_MODEL, D_K), jnp.float32, -bound, bound)

    # Built once at "init" time (hoisted out of the per-call path).
    w_kqv = fuse_qkv_weights(wk, wq, wv)

    out = self_attention(x, w_kqv)
    out = jax.block_until_ready(out)
    out_f32 = out.astype(jnp.float32)

    ref = self_attention_ref(x, wk, wq, wv)
    assert out.shape == (B, T, D_K)
    # bf16 MXU operands + bf16 output + approx reciprocal vs f32 reference
    # -> relaxed tolerance.
    assert jnp.allclose(out_f32, ref, atol=3e-2, rtol=3e-2), (
        "mismatch vs reference: max abs diff "
        f"{jnp.max(jnp.abs(out_f32 - ref))}")

    print("KERNEL_OK")
</pallas_src>

<mosaic_0001>
module attributes {stable_mosaic.version = 11 : i64} {
  func.func @_self_attention_kernel(%arg0: i32, %arg1: memref<1x256x512xf32, #tpu.memory_space<vmem>>, %arg2: memref<512x384xbf16, #tpu.memory_space<vmem>>, %arg3: memref<1x256x128xbf16, #tpu.memory_space<vmem>>, %arg4: memref<256x128xbf16, #tpu.memory_space<vmem>>, %arg5: memref<256x128xbf16, #tpu.memory_space<vmem>>, %arg6: memref<256x128xbf16, #tpu.memory_space<vmem>>) attributes {dimension_semantics = [#tpu.dimension_semantics<parallel>], iteration_bounds = array<i64: 2>, scalar_prefetch = 0 : i64, scratch_operands = 3 : i64, tpu.core_type = #tpu.core_type<tc>, window_params = [{transform_indices = @transform_0, window_bounds = array<i64: 1, 256, 512>}, {pipeline_mode = #tpu.pipeline_mode<synchronous>, transform_indices = @transform_1, window_bounds = array<i64: 512, 384>}, {transform_indices = @transform_2, window_bounds = array<i64: 1, 256, 128>}]} {
    %c0 = arith.constant 0 : index
    %c0_0 = arith.constant 0 : index
    %c0_1 = arith.constant 0 : index
    %0 = vector.load %arg1[%c0, %c0_0, %c0_1] : memref<1x256x512xf32, #tpu.memory_space<vmem>>, vector<1x256x512xf32>
    %1 = vector.shape_cast %0 : vector<1x256x512xf32> to vector<256x512xf32>
    %2 = arith.truncf %1 : vector<256x512xf32> to vector<256x512xbf16>
    %c0_2 = arith.constant 0 : index
    %c0_3 = arith.constant 0 : index
    %3 = vector.load %arg2[%c0_2, %c0_3] : memref<512x384xbf16, #tpu.memory_space<vmem>>, vector<512x128xbf16>
    %cst = arith.constant dense<0.000000e+00> : vector<256x128xf32>
    %4 = tpu.matmul %2, %3, %cst {dimension_numbers = #tpu.dot_dimension_numbers<[1], [0], [0], [1], [0, 0, 1, 1], [], []>} : vector<256x512xbf16>, vector<512x128xbf16>, vector<256x128xf32> -> vector<256x128xf32>
    %5 = arith.truncf %4 : vector<256x128xf32> to vector<256x128xbf16>
    %c0_4 = arith.constant 0 : index
    %c0_5 = arith.constant 0 : index
    %6 = vector.load %arg4[%c0_4, %c0_5] : memref<256x128xbf16, #tpu.memory_space<vmem>>, vector<256x128xbf16>
    tpu.vector_store %arg4[%c0_4, %c0_5], %5 {strides = array<i32>} : memref<256x128xbf16, #tpu.memory_space<vmem>>, vector<256x128xbf16>,
    %c0_6 = arith.constant 0 : index
    %c128 = arith.constant 128 : index
    %7 = vector.load %arg2[%c0_6, %c128] : memref<512x384xbf16, #tpu.memory_space<vmem>>, vector<512x128xbf16>
    %cst_7 = arith.constant dense<0.000000e+00> : vector<256x128xf32>
    %8 = tpu.matmul %2, %7, %cst_7 {dimension_numbers = #tpu.dot_dimension_numbers<[1], [0], [0], [1], [0, 0, 1, 1], [], []>} : vector<256x512xbf16>, vector<512x128xbf16>, vector<256x128xf32> -> vector<256x128xf32>
    %cst_8 = arith.constant 0.0441941731 : f32
    %9 = vector.broadcast %cst_8 : f32 to vector<256x128xf32>
    %10 = arith.mulf %8, %9 : vector<256x128xf32>
    %11 = arith.truncf %10 : vector<256x128xf32> to vector<256x128xbf16>
    %c0_9 = arith.constant 0 : index
    %c0_10 = arith.constant 0 : index
    %12 = vector.load %arg5[%c0_9, %c0_10] : memref<256x128xbf16, #tpu.memory_space<vmem>>, vector<256x128xbf16>
    tpu.vector_store %arg5[%c0_9, %c0_10], %11 {strides = array<i32>} : memref<256x128xbf16, #tpu.memory_space<vmem>>, vector<256x128xbf16>,
    %c0_11 = arith.constant 0 : index
    %c256 = arith.constant 256 : index
    %13 = vector.load %arg2[%c0_11, %c256] : memref<512x384xbf16, #tpu.memory_space<vmem>>, vector<512x128xbf16>
    %cst_12 = arith.constant dense<0.000000e+00> : vector<256x128xf32>
    %14 = tpu.matmul %2, %13, %cst_12 {dimension_numbers = #tpu.dot_dimension_numbers<[1], [0], [0], [1], [0, 0, 1, 1], [], []>} : vector<256x512xbf16>, vector<512x128xbf16>, vector<256x128xf32> -> vector<256x128xf32>
    %15 = arith.truncf %14 : vector<256x128xf32> to vector<256x128xbf16>
    %c0_13 = arith.constant 0 : index
    %c0_14 = arith.constant 0 : index
    %16 = vector.load %arg6[%c0_13, %c0_14] : memref<256x128xbf16, #tpu.memory_space<vmem>>, vector<256x128xbf16>
    tpu.vector_store %arg6[%c0_13, %c0_14], %15 {strides = array<i32>} : memref<256x128xbf16, #tpu.memory_space<vmem>>, vector<256x128xbf16>,
    %17 = tpu.iota {dimensions = array<i32: 0>} : vector<128x128xi32>
    %18 = tpu.iota {dimensions = array<i32: 1>} : vector<128x128xi32>
    %19 = arith.cmpi sle, %18, %17 : vector<128x128xi32>
    %c0_15 = arith.constant 0 : index
    %c0_16 = arith.constant 0 : index
    %20 = vector.load %arg5[%c0_15, %c0_16] : memref<256x128xbf16, #tpu.memory_space<vmem>>, vector<128x128xbf16>
    %c0_17 = arith.constant 0 : index
    %c0_18 = arith.constant 0 : index
    %21 = vector.load %arg4[%c0_17, %c0_18] : memref<256x128xbf16, #tpu.memory_space<vmem>>, vector<128x128xbf16>
    %cst_19 = arith.constant dense<0.000000e+00> : vector<128x128xf32>
    %22 = tpu.matmul %20, %21, %cst_19 {dimension_numbers = #tpu.dot_dimension_numbers<[1], [1], [0], [0], [0, 0, 1, 0], [], []>} : vector<128x128xbf16>, vector<128x128xbf16>, vector<128x128xf32> -> vector<128x128xf32>
    %cst_20 = arith.constant -1.000000e+30 : f32
    %23 = vector.broadcast %cst_20 : f32 to vector<128x128xf32>
    %24 = arith.select %19, %22, %23 : vector<128x128xi1>, vector<128x128xf32>
    %cst_21 = arith.constant dense<0xFF800000> : vector<128xf32>
    %25 = vector.multi_reduction <maximumf>, %24, %cst_21 [1] : vector<128x128xf32> to vector<128xf32>
    %26 = vector.shape_cast %25 : vector<128xf32> to vector<128x1xf32>
    %27 = vector.broadcast %26 : vector<128x1xf32> to vector<128x128xf32>
    %28 = arith.subf %24, %27 : vector<128x128xf32>
    %29 = math.exp %28 : vector<128x128xf32>
    %cst_22 = arith.constant dense<0.000000e+00> : vector<128xf32>
    %30 = vector.multi_reduction <add>, %29, %cst_22 [1] : vector<128x128xf32> to vector<128xf32>
    %31 = vector.shape_cast %30 : vector<128xf32> to vector<128x1xf32>
    %32 = tpu.reciprocal %31 {approx = true} : vector<128x1xf32> -> vector<128x1xf32>
    %33 = vector.broadcast %32 : vector<128x1xf32> to vector<128x128xf32>
    %34 = arith.mulf %29, %33 : vector<128x128xf32>
    %35 = arith.truncf %34 : vector<128x128xf32> to vector<128x128xbf16>
    %c0_23 = arith.constant 0 : index
    %c0_24 = arith.constant 0 : index
    %36 = vector.load %arg6[%c0_23, %c0_24] : memref<256x128xbf16, #tpu.memory_space<vmem>>, vector<128x128xbf16>
    %cst_25 = arith.constant dense<0.000000e+00> : vector<128x128xf32>
    %37 = tpu.matmul %35, %36, %cst_25 {dimension_numbers = #tpu.dot_dimension_numbers<[1], [0], [0], [1], [0, 0, 1, 1], [], []>} : vector<128x128xbf16>, vector<128x128xbf16>, vector<128x128xf32> -> vector<128x128xf32>
    %38 = arith.truncf %37 : vector<128x128xf32> to vector<128x128xbf16>
    %c0_26 = arith.constant 0 : index
    %c0_27 = arith.constant 0 : index
    %c0_28 = arith.constant 0 : index
    %39 = vector.load %arg3[%c0_26, %c0_27, %c0_28] : memref<1x256x128xbf16, #tpu.memory_space<vmem>>, vector<1x128x128xbf16>
    %40 = vector.shape_cast %39 : vector<1x128x128xbf16> to vector<128x128xbf16>
    %41 = vector.shape_cast %38 : vector<128x128xbf16> to vector<1x128x128xbf16>
    tpu.vector_store %arg3[%c0_26, %c0_27, %c0_28], %41 {strides = array<i32>} : memref<1x256x128xbf16, #tpu.memory_space<vmem>>, vector<1x128x128xbf16>,
    %c128_29 = arith.constant 128 : index
    %c0_30 = arith.constant 0 : index
    %42 = vector.load %arg5[%c128_29, %c0_30] : memref<256x128xbf16, #tpu.memory_space<vmem>>, vector<128x128xbf16>
    %c128_31 = arith.constant 128 : index
    %c0_32 = arith.constant 0 : index
    %43 = vector.load %arg4[%c128_31, %c0_32] : memref<256x128xbf16, #tpu.memory_space<vmem>>, vector<128x128xbf16>
    %cst_33 = arith.constant dense<0.000000e+00> : vector<128x128xf32>
    %44 = tpu.matmul %42, %43, %cst_33 {dimension_numbers = #tpu.dot_dimension_numbers<[1], [1], [0], [0], [0, 0, 1, 0], [], []>} : vector<128x128xbf16>, vector<128x128xbf16>, vector<128x128xf32> -> vector<128x128xf32>
    %cst_34 = arith.constant -1.000000e+30 : f32
    %45 = vector.broadcast %cst_34 : f32 to vector<128x128xf32>
    %46 = arith.select %19, %44, %45 : vector<128x128xi1>, vector<128x128xf32>
    %c0_35 = arith.constant 0 : index
    %c0_36 = arith.constant 0 : index
    %47 = vector.load %arg4[%c0_35, %c0_36] : memref<256x128xbf16, #tpu.memory_space<vmem>>, vector<128x128xbf16>
    %cst_37 = arith.constant dense<0.000000e+00> : vector<128x128xf32>
    %48 = tpu.matmul %42, %47, %cst_37 {dimension_numbers = #tpu.dot_dimension_numbers<[1], [1], [0], [0], [0, 0, 1, 0], [], []>} : vector<128x128xbf16>, vector<128x128xbf16>, vector<128x128xf32> -> vector<128x128xf32>
    %cst_38 = arith.constant dense<0xFF800000> : vector<128xf32>
    %49 = vector.multi_reduction <maximumf>, %48, %cst_38 [1] : vector<128x128xf32> to vector<128xf32>
    %50 = vector.shape_cast %49 : vector<128xf32> to vector<128x1xf32>
    %cst_39 = arith.constant dense<0xFF800000> : vector<128xf32>
    %51 = vector.multi_reduction <maximumf>, %46, %cst_39 [1] : vector<128x128xf32> to vector<128xf32>
    %52 = vector.shape_cast %51 : vector<128xf32> to vector<128x1xf32>
    %53 = arith.maximumf %50, %52 : vector<128x1xf32>
    %54 = vector.broadcast %53 : vector<128x1xf32> to vector<128x128xf32>
    %55 = arith.subf %48, %54 : vector<128x128xf32>
    %56 = math.exp %55 : vector<128x128xf32>
    %57 = vector.broadcast %53 : vector<128x1xf32> to vector<128x128xf32>
    %58 = arith.subf %46, %57 : vector<128x128xf32>
    %59 = math.exp %58 : vector<128x128xf32>
    %cst_40 = arith.constant dense<0.000000e+00> : vector<128xf32>
    %60 = vector.multi_reduction <add>, %56, %cst_40 [1] : vector<128x128xf32> to vector<128xf32>
    %61 = vector.shape_cast %60 : vector<128xf32> to vector<128x1xf32>
    %cst_41 = arith.constant dense<0.000000e+00> : vector<128xf32>
    %62 = vector.multi_reduction <add>, %59, %cst_41 [1] : vector<128x128xf32> to vector<128xf32>
    %63 = vector.shape_cast %62 : vector<128xf32> to vector<128x1xf32>
    %64 = arith.addf %61, %63 : vector<128x1xf32>
    %65 = tpu.reciprocal %64 {approx = true} : vector<128x1xf32> -> vector<128x1xf32>
    %66 = vector.broadcast %65 : vector<128x1xf32> to vector<128x128xf32>
    %67 = arith.mulf %56, %66 : vector<128x128xf32>
    %68 = arith.truncf %67 : vector<128x128xf32> to vector<128x128xbf16>
    %c0_42 = arith.constant 0 : index
    %c0_43 = arith.constant 0 : index
    %69 = vector.load %arg6[%c0_42, %c0_43] : memref<256x128xbf16, #tpu.memory_space<vmem>>, vector<128x128xbf16>
    %cst_44 = arith.constant dense<0.000000e+00> : vector<128x128xf32>
    %70 = tpu.matmul %68, %69, %cst_44 {dimension_numbers = #tpu.dot_dimension_numbers<[1], [0], [0], [1], [0, 0, 1, 1], [], []>} : vector<128x128xbf16>, vector<128x128xbf16>, vector<128x128xf32> -> vector<128x128xf32>
    %71 = vector.broadcast %65 : vector<128x1xf32> to vector<128x128xf32>
    %72 = arith.mulf %59, %71 : vector<128x128xf32>
    %73 = arith.truncf %72 : vector<128x128xf32> to vector<128x128xbf16>
    %c128_45 = arith.constant 128 : index
    %c0_46 = arith.constant 0 : index
    %74 = vector.load %arg6[%c128_45, %c0_46] : memref<256x128xbf16, #tpu.memory_space<vmem>>, vector<128x128xbf16>
    %cst_47 = arith.constant dense<0.000000e+00> : vector<128x128xf32>
    %75 = tpu.matmul %73, %74, %cst_47 {dimension_numbers = #tpu.dot_dimension_numbers<[1], [0], [0], [1], [0, 0, 1, 1], [], []>} : vector<128x128xbf16>, vector<128x128xbf16>, vector<128x128xf32> -> vector<128x128xf32>
    %76 = arith.addf %70, %75 : vector<128x128xf32>
    %77 = arith.truncf %76 : vector<128x128xf32> to vector<128x128xbf16>
    %c0_48 = arith.constant 0 : index
    %c128_49 = arith.constant 128 : index
    %c0_50 = arith.constant 0 : index
    %78 = vector.load %arg3[%c0_48, %c128_49, %c0_50] : memref<1x256x128xbf16, #tpu.memory_space<vmem>>, vector<1x128x128xbf16>
    %79 = vector.shape_cast %78 : vector<1x128x128xbf16> to vector<128x128xbf16>
    %80 = vector.shape_cast %77 : vector<128x128xbf16> to vector<1x128x128xbf16>
    tpu.vector_store %arg3[%c0_48, %c128_49, %c0_50], %80 {strides = array<i32>} : memref<1x256x128xbf16, #tpu.memory_space<vmem>>, vector<1x128x128xbf16>,
    return
  }
  func.func @transform_0(%arg0: i32) -> (i32, i32, i32) {
    %c0_i32 = arith.constant 0 : i32
    %c0_i32_0 = arith.constant 0 : i32
    %c0_i32_1 = arith.constant 0 : i32
    return %arg0, %c0_i32, %c0_i32_0 : i32, i32, i32
  }
  func.func @transform_1(%arg0: i32) -> (i32, i32) {
    %c0_i32 = arith.constant 0 : i32
    %c0_i32_0 = arith.constant 0 : i32
    %c0_i32_1 = arith.constant 0 : i32
    return %c0_i32, %c0_i32_0 : i32, i32
  }
  func.func @transform_2(%arg0: i32) -> (i32, i32, i32) {
    %c0_i32 = arith.constant 0 : i32
    %c0_i32_0 = arith.constant 0 : i32
    %c0_i32_1 = arith.constant 0 : i32
    return %arg0, %c0_i32, %c0_i32_0 : i32, i32, i32
  }
}

</mosaic_0001>

<llo_original>
// kernel: tpu_custom_call.1
$region0: #{tpu_custom_call.1}
  #allocation0 [shape = 'u32[]', space=smem, size = 0x4, offset = 0x4, fixed_abs, tag = 'smem constant byte address 0x4 - core index']
  #allocation1 [shape = 'u32[144,128]{1,0:T(1,128)}', space=vmem, size = 0x12000, scoped, tag = 'internal scratch']
  #allocation2 [shape = 'bf16[256,128]{1,0:T(16,128)(2,1)}', space=vmem, size = 0x10000, scoped, tag = 'scratch operand']
  #allocation3 [shape = 'bf16[256,128]{1,0:T(16,128)(2,1)}', space=vmem, size = 0x10000, scoped, tag = 'scratch operand']
  #allocation4 [shape = 'bf16[256,128]{1,0:T(16,128)(2,1)}', space=vmem, size = 0x10000, scoped, tag = 'scratch operand']
  %s0 = inlined_call_operand.hbm [shape: f32[2,256,512], index: 0, kind: input, shape index: {}]
  %s1 = inlined_call_operand.hbm [shape: bf16[512,384], index: 1, kind: input, shape index: {}]
  %s2 = inlined_call_operand.hbm [shape: bf16[2,256,128], index: 2, kind: output, shape index: {}]
  %s3 = sld [smem:[#allocation0]]
  $region49: #{tpu_custom_call.1} parent=0
    _
  %s5 = ssub.s32 1, %s3
  %s6 = scalar_select 0, %s5, %s3
  $region1: #{tpu_custom_call.1} parent=0
    #allocation5 [shape = 'u8[1048576]{0}', space=vmem, size = 0x100000, scoped, tag = 'input window, operand 0']
    #allocation6 [shape = 's32[2]{0}', space=sflag, size = 0x8, scoped, tag = 'scoped memory for tpu_custom_call.1']
    #allocation7 [shape = 's32[2]{0}', space=sflag, size = 0x8, scoped, tag = 'scoped memory for tpu_custom_call.1']
    #allocation8 [shape = 'u8[393216]{0}', space=vmem, size = 0x60000, scoped, tag = 'input window, operand 1, single buffered']
    #allocation9 [shape = 's32[1]{0}', space=sflag, size = 0x4, scoped, tag = 'scoped memory for tpu_custom_call.1']
    #allocation10 [shape = 'u8[131072]{0}', space=vmem, size = 0x20000, scoped, tag = 'output window, operand 0']
    %7 = vsyncpa [#allocation6], 0
    %s8 = scalar_lea.sflag [#allocation6], 1
    %9 = vsyncpa %s8, 0
    %10 = vsyncpa [#allocation9], 0
    %11 = vsyncpa [#allocation7], 0
    %s12 = scalar_lea.sflag [#allocation7], 1
    %13 = vsyncpa %s12, 0
    loop: start=0, step=1, limit=4
    $region2: #{tpu_custom_call.1} parent=1 // loop_pre_header
      _
    $region3: #{tpu_custom_call.1} parent=1 // loop_header
      %s15 = sphi 0, %s19
      %p16 = scmp.ge.s32.totalorder %s15, 4
      %s25 = sphi 0, %s27
      %s28 = sphi 0, %s25
      %s29 = sphi 0, %s28
      %s45 = sphi 0, %s29
      %s49 = sphi 0, %s49
      %s51 = sphi 0, %s49
      %s52 = sphi 0, %s51
      %s66 = sphi 0, %s52
      %s72 = sphi 0, %s74
      %s75 = sphi 0, %s72
      %s76 = sphi 0, %s75
      %s92 = sphi 0, %s76
    $region4: #{tpu_custom_call.1} parent=1 // loop_header_branch
      %18 = sbr.rel (%p16) target = $region8
    $region5: #{tpu_custom_call.1} parent=1 // loop_body
      %s20 = ssub.s32 %s15, 1
      %s21 = ssub.s32 %s15, 2
      %s22 = sadd.s32 %s15, 1
      %s23 = ssub.s32 %s15, %s22
      %p24 = scmp.eq.s32.totalorder %s23, 0
      %s26 = sadd.s32 %s25, 1
      %s27 = scalar_select %p24, %s25, %s26
      %p30 = pneg %p24
      %p31 = scmp.eq.s32.totalorder %s15, 1
      %p32 = por %p30, %p31
      %p33 = scmp.ne.s32.totalorder %s25, %s28
      %p34 = scmp.eq.s32.totalorder %s15, 0
      %p35 = por %p33, %p34
      %p36 = scmp.ne.s32.totalorder %s25, %s28
      %p37 = scmp.eq.s32.totalorder %s20, 1
      %p38 = por %p36, %p37
      %p39 = scmp.ne.s32.totalorder %s28, %s29
      %p40 = scmp.eq.s32.totalorder %s20, 0
      %p41 = por %p39, %p40
      %p42 = scmp.ne.s32.totalorder %s28, %s29
      %p43 = scmp.eq.s32.totalorder %s21, 1
      %p44 = por %p42, %p43
      %p46 = scmp.ne.s32.totalorder %s29, %s45
      %p47 = scmp.eq.s32.totalorder %s21, 0
      %p48 = por %p46, %p47
      %s50 = sadd.s32 %s49, 1
      %p53 = scmp.eq.s32.totalorder %s15, 1
      %p54 = scmp.ne.s32.totalorder %s49, %s51
      %p55 = scmp.eq.s32.totalorder %s15, 0
      %p56 = por %p54, %p55
      %p57 = scmp.ne.s32.totalorder %s49, %s51
      %p58 = scmp.eq.s32.totalorder %s20, 1
      %p59 = por %p57, %p58
      %p60 = scmp.ne.s32.totalorder %s51, %s52
      %p61 = scmp.eq.s32.totalorder %s20, 0
      %p62 = por %p60, %p61
      %p63 = scmp.ne.s32.totalorder %s51, %s52
      %p64 = scmp.eq.s32.totalorder %s21, 1
      %p65 = por %p63, %p64
      %p67 = scmp.ne.s32.totalorder %s52, %s66
      %p68 = scmp.eq.s32.totalorder %s21, 0
      %p69 = por %p67, %p68
      %s70 = ssub.s32 %s15, %s22
      %p71 = scmp.eq.s32.totalorder %s70, 0
      %s73 = sadd.s32 %s72, 1
      %s74 = scalar_select %p71, %s72, %s73
      %p77 = pneg %p71
      %p78 = scmp.eq.s32.totalorder %s15, 1
      %p79 = por %p77, %p78
      %p80 = scmp.ne.s32.totalorder %s72, %s75
      %p81 = scmp.eq.s32.totalorder %s15, 0
      %p82 = por %p80, %p81
      %p83 = scmp.ne.s32.totalorder %s72, %s75
      %p84 = scmp.eq.s32.totalorder %s20, 1
      %p85 = por %p83, %p84
      %p86 = scmp.ne.s32.totalorder %s75, %s76
      %p87 = scmp.eq.s32.totalorder %s20, 0
      %p88 = por %p86, %p87
      %p89 = scmp.ne.s32.totalorder %s75, %s76
      %p90 = scmp.eq.s32.totalorder %s21, 1
      %p91 = por %p89, %p90
      %p93 = scmp.ne.s32.totalorder %s76, %s92
      %p94 = scmp.eq.s32.totalorder %s21, 0
      %p95 = por %p93, %p94
      %p96 = scmp.le.s32.totalorder 1, %s15
      %p97 = scmp.lt.s32.totalorder %s15, 3
      %p98 = pnand %p96, %p97
      %p99 = pneg %p98
      // Predicated region
      $region9: #{tpu_custom_call.1} parent=5 // pred_check
        _
      $region10: #{tpu_custom_call.1} parent=5 // pred_check_branch
        %101 = sbr.rel (%p98) target = $region12
      $region11: #{tpu_custom_call.1} parent=5 // pred_region
        %s102 = ssub.s32 %s15, 1
        // Predicated region
        $region13: #{tpu_custom_call.1} parent=11 // pred_check
          %p103 = pneg %p62
        $region14: #{tpu_custom_call.1} parent=11 // pred_check_branch
          %105 = sbr.rel (%p103) target = $region16
        $region15: #{tpu_custom_call.1} parent=11 // pred_region
          %s107 = ssub.s32 12288, 12288
          %108 = vsyncadd [#allocation9], %s107
          %s109 = sshll.u32 [#allocation8], 4
          %s110 = int_to_ptr.vmem [resolvable:$true] %s109
          %115 = dma.hbm_to_vmem [thread:$0]  %s1, 12288, %s110, [#allocation9], 192, 192, 12
        $region16: #{tpu_custom_call.1} parent=11 // pred_fallthru
          _
      $region12: #{tpu_custom_call.1} parent=5 // pred_fallthru
        _
      %p116 = scmp.lt.s32.totalorder %s15, 2
      // Predicated region
      $region17: #{tpu_custom_call.1} parent=5 // pred_check
        %p117 = pneg %p116
      $region18: #{tpu_custom_call.1} parent=5 // pred_check_branch
        %119 = sbr.rel (%p117) target = $region20
      $region19: #{tpu_custom_call.1} parent=5 // pred_region
        // Predicated region
        $region21: #{tpu_custom_call.1} parent=19 // pred_check
          %p120 = pneg %p35
        $region22: #{tpu_custom_call.1} parent=19 // pred_check_branch
          %122 = sbr.rel (%p120) target = $region24
        $region23: #{tpu_custom_call.1} parent=19 // pred_region
          %s123 = sand.u32 %s25, 1
          %s124 = scalar_lea.sflag [#allocation6], %s123
          %s125 = sand.u32 %s25, 1
          %s126 = smul.addr %s125, 1024
          %s127 = scalar_lea.vmem [#allocation5], %s126
          %s129 = ssub.s32 16384, 16384
          %130 = vsyncadd %s124, %s129
          %s131 = smul.addr %s15, 128
          %s132 = smul.addr %s131, 128
          %s133 = scalar_lea.hbm %s0, %s132
          %s134 = sshll.u32 %s127, 4
          %s135 = int_to_ptr.vmem [resolvable:$true] %s134
          %140 = dma.hbm_to_vmem [thread:$0]  %s133, 16384, %s135, %s124, 512, 512, 32
        $region24: #{tpu_custom_call.1} parent=19 // pred_fallthru
          _
      $region20: #{tpu_custom_call.1} parent=5 // pred_fallthru
        _
      %p141 = scmp.le.s32.totalorder 1, %s15
      %p142 = scmp.lt.s32.totalorder %s15, 3
      %p143 = pnand %p141, %p142
      %p144 = pneg %p143
      // Predicated region
      $region25: #{tpu_custom_call.1} parent=5 // pred_check
        _
      $region26: #{tpu_custom_call.1} parent=5 // pred_check_branch
        %146 = sbr.rel (%p143) target = $region28
      $region27: #{tpu_custom_call.1} parent=5 // pred_region
        %s147 = ssub.s32 %s15, 1
        %s148 = sand.u32 %s28, 1
        %s149 = scalar_lea.sflag [#allocation6], %s148
        %s150 = sand.u32 %s28, 1
        %s151 = smul.addr %s150, 1024
        %s152 = scalar_lea.vmem [#allocation5], %s151
        // Predicated region
        $region29: #{tpu_custom_call.1} parent=27 // pred_check
          %p153 = pneg %p41
        $region30: #{tpu_custom_call.1} parent=27 // pred_check_branch
          %155 = sbr.rel (%p153) target = $region32
        $region31: #{tpu_custom_call.1} parent=27 // pred_region
          %156 = dma.done %s149, 16384
        $region32: #{tpu_custom_call.1} parent=27 // pred_fallthru
          _
        // Predicated region
        $region33: #{tpu_custom_call.1} parent=27 // pred_check
          %p157 = pneg %p62
        $region34: #{tpu_custom_call.1} parent=27 // pred_check_branch
          %159 = sbr.rel (%p157) target = $region36
        $region35: #{tpu_custom_call.1} parent=27 // pred_region
          %160 = dma.done [#allocation9], 12288
        $region36: #{tpu_custom_call.1} parent=27 // pred_fallthru
          _
        %s161 = sand.u32 %s28, 1
        %s162 = scalar_lea.sflag [#allocation6], %s161
        %s163 = sand.u32 %s28, 1
        %s164 = smul.addr %s163, 1024
        %s165 = scalar_lea.vmem [#allocation5], %s164
        %p166 = pneg %p41
        %p167 = pneg %p38
        %p168 = pneg %p62
        %p169 = pneg %p59
        %p170 = pneg %p88
        %p171 = pneg %p85
        %s172 = sand.u32 %s75, 1
        %s173 = scalar_lea.sflag [#allocation7], %s172
        %s174 = sand.u32 %s75, 1
        %s175 = smul.addr %s174, 128
        %s176 = scalar_lea.vmem [#allocation10], %s175
        %v178 = vld [vmem:[%s152] sm:$0xff]
        %v179 = vld [vmem:[%s152 + $0x8] sm:$0xff]
        %v180 = vld [vmem:[%s152 + $0x10] sm:$0xff]
        %v181 = vld [vmem:[%s152 + $0x18] sm:$0xff]
        %v182 = vld [vmem:[%s152 + $0x20] sm:$0xff]
        %v183 = vld [vmem:[%s152 + $0x28] sm:$0xff]
        %v184 = vld [vmem:[%s152 + $0x30] sm:$0xff]
        %v185 = vld [vmem:[%s152 + $0x38] sm:$0xff]
        %v186 = vld [vmem:[%s152 + $0x40] sm:$0xff]
        %v187 = vld [vmem:[%s152 + $0x48] sm:$0xff]
        %v188 = vld [vmem:[%s152 + $0x50] sm:$0xff]
        %v189 = vld [vmem:[%s152 + $0x58] sm:$0xff]
        %v190 = vld [vmem:[%s152 + $0x60] sm:$0xff]
        %v191 = vld [vmem:[%s152 + $0x68] sm:$0xff]
        %v192 = vld [vmem:[%s152 + $0x70] sm:$0xff]
        %v193 = vld [vmem:[%s152 + $0x78] sm:$0xff]
        %v194 = vld [vmem:[%s152 + $0x80] sm:$0xff]
        %v195 = vld [vmem:[%s152 + $0x88] sm:$0xff]
        %v196 = vld [vmem:[%s152 + $0x90] sm:$0xff]
        %v197 = vld [vmem:[%s152 + $0x98] sm:$0xff]
        %v198 = vld [vmem:[%s152 + $0xa0] sm:$0xff]
        %v199 = vld [vmem:[%s152 + $0xa8] sm:$0xff]
        %v200 = vld [vmem:[%s152 + $0xb0] sm:$0xff]
        %v201 = vld [vmem:[%s152 + $0xb8] sm:$0xff]
        %v202 = vld [vmem:[%s152 + $0xc0] sm:$0xff]
        %v203 = vld [vmem:[%s152 + $0xc8] sm:$0xff]
        %v204 = vld [vmem:[%s152 + $0xd0] sm:$0xff]
        %v205 = vld [vmem:[%s152 + $0xd8] sm:$0xff]
        %v206 = vld [vmem:[%s152 + $0xe0] sm:$0xff]
        %v207 = vld [vmem:[%s152 + $0xe8] sm:$0xff]
        %v208 = vld [vmem:[%s152 + $0xf0] sm:$0xff]
        %v209 = vld [vmem:[%s152 + $0xf8] sm:$0xff]
        %v210 = vld [vmem:[%s152 + $0x100] sm:$0xff]
        %v211 = vld [vmem:[%s152 + $0x108] sm:$0xff]
        %v212 = vld [vmem:[%s152 + $0x110] sm:$0xff]
        %v213 = vld [vmem:[%s152 + $0x118] sm:$0xff]
        %v214 = vld [vmem:[%s152 + $0x120] sm:$0xff]
        %v215 = vld [vmem:[%s152 + $0x128] sm:$0xff]
        %v216 = vld [vmem:[%s152 + $0x130] sm:$0xff]
        %v217 = vld [vmem:[%s152 + $0x138] sm:$0xff]
        %v218 = vld [vmem:[%s152 + $0x140] sm:$0xff]
        %v219 = vld [vmem:[%s152 + $0x148] sm:$0xff]
        %v220 = vld [vmem:[%s152 + $0x150] sm:$0xff]
        %v221 = vld [vmem:[%s152 + $0x158] sm:$0xff]
        %v222 = vld [vmem:[%s152 + $0x160] sm:$0xff]
        %v223 = vld [vmem:[%s152 + $0x168] sm:$0xff]
        %v224 = vld [vmem:[%s152 + $0x170] sm:$0xff]
        %v225 = vld [vmem:[%s152 + $0x178] sm:$0xff]
        %v226 = vld [vmem:[%s152 + $0x180] sm:$0xff]
        %v227 = vld [vmem:[%s152 + $0x188] sm:$0xff]
        %v228 = vld [vmem:[%s152 + $0x190] sm:$0xff]
        %v229 = vld [vmem:[%s152 + $0x198] sm:$0xff]
        %v230 = vld [vmem:[%s152 + $0x1a0] sm:$0xff]
        %v231 = vld [vmem:[%s152 + $0x1a8] sm:$0xff]
        %v232 = vld [vmem:[%s152 + $0x1b0] sm:$0xff]
        %v233 = vld [vmem:[%s152 + $0x1b8] sm:$0xff]
        %v234 = vld [vmem:[%s152 + $0x1c0] sm:$0xff]
        %v235 = vld [vmem:[%s152 + $0x1c8] sm:$0xff]
        %v236 = vld [vmem:[%s152 + $0x1d0] sm:$0xff]
        %v237 = vld [vmem:[%s152 + $0x1d8] sm:$0xff]
        %v238 = vld [vmem:[%s152 + $0x1e0] sm:$0xff]
        %v239 = vld [vmem:[%s152 + $0x1e8] sm:$0xff]
        %v240 = vld [vmem:[%s152 + $0x1f0] sm:$0xff]
        %v241 = vld [vmem:[%s152 + $0x1f8] sm:$0xff]
        %v242 = vld [vmem:[%s152 + $0x200] sm:$0xff]
        %v243 = vld [vmem:[%s152 + $0x208] sm:$0xff]
        %v244 = vld [vmem:[%s152 + $0x210] sm:$0xff]
        %v245 = vld [vmem:[%s152 + $0x218] sm:$0xff]
        %v246 = vld [vmem:[%s152 + $0x220] sm:$0xff]
        %v247 = vld [vmem:[%s152 + $0x228] sm:$0xff]
        %v248 = vld [vmem:[%s152 + $0x230] sm:$0xff]
        %v249 = vld [vmem:[%s152 + $0x238] sm:$0xff]
        %v250 = vld [vmem:[%s152 + $0x240] sm:$0xff]
        %v251 = vld [vmem:[%s152 + $0x248] sm:$0xff]
        %v252 = vld [vmem:[%s152 + $0x250] sm:$0xff]
        %v253 = vld [vmem:[%s152 + $0x258] sm:$0xff]
        %v254 = vld [vmem:[%s152 + $0x260] sm:$0xff]
        %v255 = vld [vmem:[%s152 + $0x268] sm:$0xff]
        %v256 = vld [vmem:[%s152 + $0x270] sm:$0xff]
        %v257 = vld [vmem:[%s152 + $0x278] sm:$0xff]
        %v258 = vld [vmem:[%s152 + $0x280] sm:$0xff]
        %v259 = vld [vmem:[%s152 + $0x288] sm:$0xff]
        %v260 = vld [vmem:[%s152 + $0x290] sm:$0xff]
        %v261 = vld [vmem:[%s152 + $0x298] sm:$0xff]
        %v262 = vld [vmem:[%s152 + $0x2a0] sm:$0xff]
        %v263 = vld [vmem:[%s152 + $0x2a8] sm:$0xff]
        %v264 = vld [vmem:[%s152 + $0x2b0] sm:$0xff]
        %v265 = vld [vmem:[%s152 + $0x2b8] sm:$0xff]
        %v266 = vld [vmem:[%s152 + $0x2c0] sm:$0xff]
        %v267 = vld [vmem:[%s152 + $0x2c8] sm:$0xff]
        %v268 = vld [vmem:[%s152 + $0x2d0] sm:$0xff]
        %v269 = vld [vmem:[%s152 + $0x2d8] sm:$0xff]
        %v270 = vld [vmem:[%s152 + $0x2e0] sm:$0xff]
        %v271 = vld [vmem:[%s152 + $0x2e8] sm:$0xff]
        %v272 = vld [vmem:[%s152 + $0x2f0] sm:$0xff]
        %v273 = vld [vmem:[%s152 + $0x2f8] sm:$0xff]
        %v274 = vld [vmem:[%s152 + $0x300] sm:$0xff]
        %v275 = vld [vmem:[%s152 + $0x308] sm:$0xff]
        %v276 = vld [vmem:[%s152 + $0x310] sm:$0xff]
        %v277 = vld [vmem:[%s152 + $0x318] sm:$0xff]
        %v278 = vld [vmem:[%s152 + $0x320] sm:$0xff]
        %v279 = vld [vmem:[%s152 + $0x328] sm:$0xff]
        %v280 = vld [vmem:[%s152 + $0x330] sm:$0xff]
        %v281 = vld [vmem:[%s152 + $0x338] sm:$0xff]
        %v282 = vld [vmem:[%s152 + $0x340] sm:$0xff]
        %v283 = vld [vmem:[%s152 + $0x348] sm:$0xff]
        %v284 = vld [vmem:[%s152 + $0x350] sm:$0xff]
        %v285 = vld [vmem:[%s152 + $0x358] sm:$0xff]
        %v286 = vld [vmem:[%s152 + $0x360] sm:$0xff]
        %v287 = vld [vmem:[%s152 + $0x368] sm:$0xff]
        %v288 = vld [vmem:[%s152 + $0x370] sm:$0xff]
        %v289 = vld [vmem:[%s152 + $0x378] sm:$0xff]
        %v290 = vld [vmem:[%s152 + $0x380] sm:$0xff]
        %v291 = vld [vmem:[%s152 + $0x388] sm:$0xff]
        %v292 = vld [vmem:[%s152 + $0x390] sm:$0xff]
        %v293 = vld [vmem:[%s152 + $0x398] sm:$0xff]
        %v294 = vld [vmem:[%s152 + $0x3a0] sm:$0xff]
        %v295 = vld [vmem:[%s152 + $0x3a8] sm:$0xff]
        %v296 = vld [vmem:[%s152 + $0x3b0] sm:$0xff]
        %v297 = vld [vmem:[%s152 + $0x3b8] sm:$0xff]
        %v298 = vld [vmem:[%s152 + $0x3c0] sm:$0xff]
        %v299 = vld [vmem:[%s152 + $0x3c8] sm:$0xff]
        %v300 = vld [vmem:[%s152 + $0x3d0] sm:$0xff]
        %v301 = vld [vmem:[%s152 + $0x3d8] sm:$0xff]
        %v302 = vld [vmem:[%s152 + $0x3e0] sm:$0xff]
        %v303 = vld [vmem:[%s152 + $0x3e8] sm:$0xff]
        %v304 = vld [vmem:[%s152 + $0x3f0] sm:$0xff]
        %v305 = vld [vmem:[%s152 + $0x3f8] sm:$0xff]
        %v306 = vpack.c.bf16 %v182, %v178
        %v307 = vpack.c.bf16 %v183, %v179
        %v308 = vpack.c.bf16 %v184, %v180
        %v309 = vpack.c.bf16 %v185, %v181
        %v310 = vpack.c.bf16 %v190, %v186
        %v311 = vpack.c.bf16 %v191, %v187
        %v312 = vpack.c.bf16 %v192, %v188
        %v313 = vpack.c.bf16 %v193, %v189
        %v314 = vpack.c.bf16 %v198, %v194
        %v315 = vpack.c.bf16 %v199, %v195
        %v316 = vpack.c.bf16 %v200, %v196
        %v317 = vpack.c.bf16 %v201, %v197
        %v318 = vpack.c.bf16 %v206, %v202
        %v319 = vpack.c.bf16 %v207, %v203
        %v320 = vpack.c.bf16 %v208, %v204
        %v321 = vpack.c.bf16 %v209, %v205
        %v322 = vpack.c.bf16 %v214, %v210
        %v323 = vpack.c.bf16 %v215, %v211
        %v324 = vpack.c.bf16 %v216, %v212
        %v325 = vpack.c.bf16 %v217, %v213
        %v326 = vpack.c.bf16 %v222, %v218
        %v327 = vpack.c.bf16 %v223, %v219
        %v328 = vpack.c.bf16 %v224, %v220
        %v329 = vpack.c.bf16 %v225, %v221
        %v330 = vpack.c.bf16 %v230, %v226
        %v331 = vpack.c.bf16 %v231, %v227
        %v332 = vpack.c.bf16 %v232, %v228
        %v333 = vpack.c.bf16 %v233, %v229
        %v334 = vpack.c.bf16 %v238, %v234
        %v335 = vpack.c.bf16 %v239, %v235
        %v336 = vpack.c.bf16 %v240, %v236
        %v337 = vpack.c.bf16 %v241, %v237
        %v338 = vpack.c.bf16 %v246, %v242
        %v339 = vpack.c.bf16 %v247, %v243
        %v340 = vpack.c.bf16 %v248, %v244
        %v341 = vpack.c.bf16 %v249, %v245
        %v342 = vpack.c.bf16 %v254, %v250
        %v343 = vpack.c.bf16 %v255, %v251
        %v344 = vpack.c.bf16 %v256, %v252
        %v345 = vpack.c.bf16 %v257, %v253
        %v346 = vpack.c.bf16 %v262, %v258
        %v347 = vpack.c.bf16 %v263, %v259
        %v348 = vpack.c.bf16 %v264, %v260
        %v349 = vpack.c.bf16 %v265, %v261
        %v350 = vpack.c.bf16 %v270, %v266
        %v351 = vpack.c.bf16 %v271, %v267
        %v352 = vpack.c.bf16 %v272, %v268
        %v353 = vpack.c.bf16 %v273, %v269
        %v354 = vpack.c.bf16 %v278, %v274
        %v355 = vpack.c.bf16 %v279, %v275
        %v356 = vpack.c.bf16 %v280, %v276
        %v357 = vpack.c.bf16 %v281, %v277
        %v358 = vpack.c.bf16 %v286, %v282
        %v359 = vpack.c.bf16 %v287, %v283
        %v360 = vpack.c.bf16 %v288, %v284
        %v361 = vpack.c.bf16 %v289, %v285
        %v362 = vpack.c.bf16 %v294, %v290
        %v363 = vpack.c.bf16 %v295, %v291
        %v364 = vpack.c.bf16 %v296, %v292
        %v365 = vpack.c.bf16 %v297, %v293
        %v366 = vpack.c.bf16 %v302, %v298
        %v367 = vpack.c.bf16 %v303, %v299
        %v368 = vpack.c.bf16 %v304, %v300
        %v369 = vpack.c.bf16 %v305, %v301
        %v370 = vld [vmem:[#allocation8] sm:$0xf]
        %v371 = vld [vmem:[#allocation8 + $0xc] sm:$0xf]
        %v372 = vld [vmem:[#allocation8 + $0x18] sm:$0xf]
        %v373 = vld [vmem:[#allocation8 + $0x24] sm:$0xf]
        %v374 = vld [vmem:[#allocation8 + $0x30] sm:$0xf]
        %v375 = vld [vmem:[#allocation8 + $0x3c] sm:$0xf]
        %v376 = vld [vmem:[#allocation8 + $0x48] sm:$0xf]
        %v377 = vld [vmem:[#allocation8 + $0x54] sm:$0xf]
        %v378 = vld [vmem:[#allocation8 + $0x60] sm:$0xf]
        %v379 = vld [vmem:[#allocation8 + $0x6c] sm:$0xf]
        %v380 = vld [vmem:[#allocation8 + $0x78] sm:$0xf]
        %v381 = vld [vmem:[#allocation8 + $0x84] sm:$0xf]
        %v382 = vld [vmem:[#allocation8 + $0x90] sm:$0xf]
        %v383 = vld [vmem:[#allocation8 + $0x9c] sm:$0xf]
        %v384 = vld [vmem:[#allocation8 + $0xa8] sm:$0xf]
        %v385 = vld [vmem:[#allocation8 + $0xb4] sm:$0xf]
        %v386 = vld [vmem:[#allocation8 + $0xc0] sm:$0xf]
        %v387 = vld [vmem:[#allocation8 + $0xcc] sm:$0xf]
        %v388 = vld [vmem:[#allocation8 + $0xd8] sm:$0xf]
        %v389 = vld [vmem:[#allocation8 + $0xe4] sm:$0xf]
        %v390 = vld [vmem:[#allocation8 + $0xf0] sm:$0xf]
        %v391 = vld [vmem:[#allocation8 + $0xfc] sm:$0xf]
        %v392 = vld [vmem:[#allocation8 + $0x108] sm:$0xf]
        %v393 = vld [vmem:[#allocation8 + $0x114] sm:$0xf]
        %v394 = vld [vmem:[#allocation8 + $0x120] sm:$0xf]
        %v395 = vld [vmem:[#allocation8 + $0x12c] sm:$0xf]
        %v396 = vld [vmem:[#allocation8 + $0x138] sm:$0xf]
        %v397 = vld [vmem:[#allocation8 + $0x144] sm:$0xf]
        %v398 = vld [vmem:[#allocation8 + $0x150] sm:$0xf]
        %v399 = vld [vmem:[#allocation8 + $0x15c] sm:$0xf]
        %v400 = vld [vmem:[#allocation8 + $0x168] sm:$0xf]
        %v401 = vld [vmem:[#allocation8 + $0x174] sm:$0xf]
        %v402 = vld [vmem:[#allocation8 + $0x180] sm:$0xf]
        %v403 = vld [vmem:[#allocation8 + $0x18c] sm:$0xf]
        %v404 = vld [vmem:[#allocation8 + $0x198] sm:$0xf]
        %v405 = vld [vmem:[#allocation8 + $0x1a4] sm:$0xf]
        %v406 = vld [vmem:[#allocation8 + $0x1b0] sm:$0xf]
        %v407 = vld [vmem:[#allocation8 + $0x1bc] sm:$0xf]
        %v408 = vld [vmem:[#allocation8 + $0x1c8] sm:$0xf]
        %v409 = vld [vmem:[#allocation8 + $0x1d4] sm:$0xf]
        %v410 = vld [vmem:[#allocation8 + $0x1e0] sm:$0xf]
        %v411 = vld [vmem:[#allocation8 + $0x1ec] sm:$0xf]
        %v412 = vld [vmem:[#allocation8 + $0x1f8] sm:$0xf]
        %v413 = vld [vmem:[#allocation8 + $0x204] sm:$0xf]
        %v414 = vld [vmem:[#allocation8 + $0x210] sm:$0xf]
        %v415 = vld [vmem:[#allocation8 + $0x21c] sm:$0xf]
        %v416 = vld [vmem:[#allocation8 + $0x228] sm:$0xf]
        %v417 = vld [vmem:[#allocation8 + $0x234] sm:$0xf]
        %v418 = vld [vmem:[#allocation8 + $0x240] sm:$0xf]
        %v419 = vld [vmem:[#allocation8 + $0x24c] sm:$0xf]
        %v420 = vld [vmem:[#allocation8 + $0x258] sm:$0xf]
        %v421 = vld [vmem:[#allocation8 + $0x264] sm:$0xf]
        %v422 = vld [vmem:[#allocation8 + $0x270] sm:$0xf]
        %v423 = vld [vmem:[#allocation8 + $0x27c] sm:$0xf]
        %v424 = vld [vmem:[#allocation8 + $0x288] sm:$0xf]
        %v425 = vld [vmem:[#allocation8 + $0x294] sm:$0xf]
        %v426 = vld [vmem:[#allocation8 + $0x2a0] sm:$0xf]
        %v427 = vld [vmem:[#allocation8 + $0x2ac] sm:$0xf]
        %v428 = vld [vmem:[#allocation8 + $0x2b8] sm:$0xf]
        %v429 = vld [vmem:[#allocation8 + $0x2c4] sm:$0xf]
        %v430 = vld [vmem:[#allocation8 + $0x2d0] sm:$0xf]
        %v431 = vld [vmem:[#allocation8 + $0x2dc] sm:$0xf]
        %v432 = vld [vmem:[#allocation8 + $0x2e8] sm:$0xf]
        %v433 = vld [vmem:[#allocation8 + $0x2f4] sm:$0xf]
        %v498 = vunpack.c.l.b16 %v370
        %v499 = vunpack.c.l.b16 %v371
        %v500 = vunpack.c.l.b16 %v372
        %v501 = vunpack.c.l.b16 %v373
        %v502 = vunpack.c.l.b16 %v374
        %v503 = vunpack.c.l.b16 %v375
        %v504 = vunpack.c.l.b16 %v376
        %v505 = vunpack.c.l.b16 %v377
        %v506 = vunpack.c.l.b16 %v378
        %v507 = vunpack.c.l.b16 %v379
        %v508 = vunpack.c.l.b16 %v380
        %v509 = vunpack.c.l.b16 %v381
        %v510 = vunpack.c.l.b16 %v382
        %v511 = vunpack.c.l.b16 %v383
        %v512 = vunpack.c.l.b16 %v384
        %v513 = vunpack.c.l.b16 %v385
        %v514 = vunpack.c.l.b16 %v386
        %v515 = vunpack.c.l.b16 %v387
        %v516 = vunpack.c.l.b16 %v388
        %v517 = vunpack.c.l.b16 %v389
        %v518 = vunpack.c.l.b16 %v390
        %v519 = vunpack.c.l.b16 %v391
        %v520 = vunpack.c.l.b16 %v392
        %v521 = vunpack.c.l.b16 %v393
        %v522 = vunpack.c.l.b16 %v394
        %v523 = vunpack.c.l.b16 %v395
        %v524 = vunpack.c.l.b16 %v396
        %v525 = vunpack.c.l.b16 %v397
        %v526 = vunpack.c.l.b16 %v398
        %v527 = vunpack.c.l.b16 %v399
        %v528 = vunpack.c.l.b16 %v400
        %v529 = vunpack.c.l.b16 %v401
        %v530 = vunpack.c.l.b16 %v402
        %v531 = vunpack.c.l.b16 %v403
        %v532 = vunpack.c.l.b16 %v404
        %v533 = vunpack.c.l.b16 %v405
        %v534 = vunpack.c.l.b16 %v406
        %v535 = vunpack.c.l.b16 %v407
        %v536 = vunpack.c.l.b16 %v408
        %v537 = vunpack.c.l.b16 %v409
        %v538 = vunpack.c.l.b16 %v410
        %v539 = vunpack.c.l.b16 %v411
        %v540 = vunpack.c.l.b16 %v412
        %v541 = vunpack.c.l.b16 %v413
        %v542 = vunpack.c.l.b16 %v414
        %v543 = vunpack.c.l.b16 %v415
        %v544 = vunpack.c.l.b16 %v416
        %v545 = vunpack.c.l.b16 %v417
        %v546 = vunpack.c.l.b16 %v418
        %v547 = vunpack.c.l.b16 %v419
        %v548 = vunpack.c.l.b16 %v420
        %v549 = vunpack.c.l.b16 %v421
        %v550 = vunpack.c.l.b16 %v422
        %v551 = vunpack.c.l.b16 %v423
        %v552 = vunpack.c.l.b16 %v424
        %v553 = vunpack.c.l.b16 %v425
        %v554 = vunpack.c.l.b16 %v426
        %v555 = vunpack.c.l.b16 %v427
        %v556 = vunpack.c.l.b16 %v428
        %v557 = vunpack.c.l.b16 %v429
        %v558 = vunpack.c.l.b16 %v430
        %v559 = vunpack.c.l.b16 %v431
        %v560 = vunpack.c.l.b16 %v432
        %v561 = vunpack.c.l.b16 %v433
        %v562 = vpack.c.b16 %v499, %v498
        %v563 = vpack.c.b16 %v501, %v500
        %v564 = vpack.c.b16 %v503, %v502
        %v565 = vpack.c.b16 %v505, %v504
        %v566 = vpack.c.b16 %v507, %v506
        %v567 = vpack.c.b16 %v509, %v508
        %v568 = vpack.c.b16 %v511, %v510
        %v569 = vpack.c.b16 %v513, %v512
        %v570 = vpack.c.b16 %v515, %v514
        %v571 = vpack.c.b16 %v517, %v516
        %v572 = vpack.c.b16 %v519, %v518
        %v573 = vpack.c.b16 %v521, %v520
        %v574 = vpack.c.b16 %v523, %v522
        %v575 = vpack.c.b16 %v525, %v524
        %v576 = vpack.c.b16 %v527, %v526
        %v577 = vpack.c.b16 %v529, %v528
        %v578 = vpack.c.b16 %v531, %v530
        %v579 = vpack.c.b16 %v533, %v532
        %v580 = vpack.c.b16 %v535, %v534
        %v581 = vpack.c.b16 %v537, %v536
        %v582 = vpack.c.b16 %v539, %v538
        %v583 = vpack.c.b16 %v541, %v540
        %v584 = vpack.c.b16 %v543, %v542
        %v585 = vpack.c.b16 %v545, %v544
        %v586 = vpack.c.b16 %v547, %v546
        %v587 = vpack.c.b16 %v549, %v548
        %v588 = vpack.c.b16 %v551, %v550
        %v589 = vpack.c.b16 %v553, %v552
        %v590 = vpack.c.b16 %v555, %v554
        %v591 = vpack.c.b16 %v557, %v556
        %v592 = vpack.c.b16 %v559, %v558
        %v593 = vpack.c.b16 %v561, %v560
        %626 = vmatprep.subr.bf16.mxu0 0
        %627 = vmatpush1.bf16.msra.mxu0 %v562
        %628 = vmatprep.subr.bf16.mxu0 0
        %629 = vmatpush1.bf16.msra.mxu0 %v563
        %630 = vmatprep.subr.bf16.mxu0 0
        %631 = vmatpush1.bf16.msra.mxu0 %v564
        %632 = vmatprep.subr.bf16.mxu0 0
        %633 = vmatpush1.bf16.msra.mxu0 %v565
        %634 = vmatprep.subr.bf16.mxu0 0
        %635 = vmatpush1.bf16.msra.mxu0 %v566
        %636 = vmatprep.subr.bf16.mxu0 0
        %637 = vmatpush1.bf16.msra.mxu0 %v567
        %638 = vmatprep.subr.bf16.mxu0 0
        %639 = vmatpush1.bf16.msra.mxu0 %v568
        %640 = vmatprep.subr.bf16.mxu0 0
        %641 = vmatpush1.bf16.msra.mxu0 %v569
        %642 = vmatprep.subr.bf16.mxu0 0
        %643 = vmatpush1.bf16.msra.mxu0 %v570
        %644 = vmatprep.subr.bf16.mxu0 0
        %645 = vmatpush1.bf16.msra.mxu0 %v571
        %646 = vmatprep.subr.bf16.mxu0 0
        %647 = vmatpush1.bf16.msra.mxu0 %v572
        %648 = vmatprep.subr.bf16.mxu0 0
        %649 = vmatpush1.bf16.msra.mxu0 %v573
        %650 = vmatprep.subr.bf16.mxu0 0
        %651 = vmatpush1.bf16.msra.mxu0 %v574
        %652 = vmatprep.subr.bf16.mxu0 0
        %653 = vmatpush1.bf16.msra.mxu0 %v575
        %654 = vmatprep.subr.bf16.mxu0 0
        %655 = vmatpush1.bf16.msra.mxu0 %v576
        %656 = vmatprep.subr.bf16.mxu0 0
        %657 = vmatpush1.bf16.msra.mxu0 %v577
        %658 = vmatprep.mubr.bf16.mxu0 %v307
        %659 = vmatmul.mubr.bf16.gmra.mrb[0].mxu0 %v306
        %v660 = vpop.f32.mrb[0].mxu0
        %v661 = vadd.f32 0.0, %v660
        %v662 = vpop.f32.mrb[0].mxu0
        %v663 = vpop.f32.mrb[0].mxu0
        %v664 = vadd.f32 0.0, %v663
        %v665 = vpop.f32.mrb[0].mxu0
        %666 = vmatprep.mubr.bf16.mxu0 %v311
        %667 = vmatmul.mubr.bf16.gmra.mrb[0].mxu0 %v310
        %v668 = vpop.f32.mrb[0].mxu0
        %v669 = vadd.f32 0.0, %v668
        %v670 = vpop.f32.mrb[0].mxu0
        %v671 = vpop.f32.mrb[0].mxu0
        %v672 = vadd.f32 0.0, %v671
        %v673 = vpop.f32.mrb[0].mxu0
        %674 = vmatprep.mubr.bf16.mxu0 %v315
        %675 = vmatmul.mubr.bf16.gmra.mrb[0].mxu0 %v314
        %v676 = vpop.f32.mrb[0].mxu0
        %v677 = vadd.f32 0.0, %v676
        %v678 = vpop.f32.mrb[0].mxu0
        %v679 = vpop.f32.mrb[0].mxu0
        %v680 = vadd.f32 0.0, %v679
        %v681 = vpop.f32.mrb[0].mxu0
        %682 = vmatprep.mubr.bf16.mxu0 %v319
        %683 = vmatmul.mubr.bf16.gmra.mrb[0].mxu0 %v318
        %v684 = vpop.f32.mrb[0].mxu0
        %v685 = vadd.f32 0.0, %v684
        %v686 = vpop.f32.mrb[0].mxu0
        %v687 = vpop.f32.mrb[0].mxu0
        %v688 = vadd.f32 0.0, %v687
        %v689 = vpop.f32.mrb[0].mxu0
        %690 = vmatprep.mubr.bf16.mxu0 %v323
        %691 = vmatmul.mubr.bf16.gmra.mrb[0].mxu0 %v322
        %v692 = vpop.f32.mrb[0].mxu0
        %v693 = vadd.f32 0.0, %v692
        %v694 = vpop.f32.mrb[0].mxu0
        %v695 = vpop.f32.mrb[0].mxu0
        %v696 = vadd.f32 0.0, %v695
        %v697 = vpop.f32.mrb[0].mxu0
        %698 = vmatprep.mubr.bf16.mxu0 %v327
        %699 = vmatmul.mubr.bf16.gmra.mrb[0].mxu0 %v326
        %v700 = vpop.f32.mrb[0].mxu0
        %v701 = vadd.f32 0.0, %v700
        %v702 = vpop.f32.mrb[0].mxu0
        %v703 = vpop.f32.mrb[0].mxu0
        %v704 = vadd.f32 0.0, %v703
        %v705 = vpop.f32.mrb[0].mxu0
        %706 = vmatprep.mubr.bf16.mxu0 %v331
        %707 = vmatmul.mubr.bf16.gmra.mrb[0].mxu0 %v330
        %v708 = vpop.f32.mrb[0].mxu0
        %v709 = vadd.f32 0.0, %v708
        %v710 = vpop.f32.mrb[0].mxu0
        %v711 = vpop.f32.mrb[0].mxu0
        %v712 = vadd.f32 0.0, %v711
        %v713 = vpop.f32.mrb[0].mxu0
        %714 = vmatprep.mubr.bf16.mxu0 %v335
        %715 = vmatmul.mubr.bf16.gmra.mrb[0].mxu0 %v334
        %v716 = vpop.f32.mrb[0].mxu0
        %v717 = vadd.f32 0.0, %v716
        %v718 = vpop.f32.mrb[0].mxu0
        %v719 = vpop.f32.mrb[0].mxu0
        %v720 = vadd.f32 0.0, %v719
        %v721 = vpop.f32.mrb[0].mxu0
        %722 = vmatprep.mubr.bf16.mxu0 %v339
        %723 = vmatmul.mubr.bf16.gmra.mrb[0].mxu0 %v338
        %v724 = vpop.f32.mrb[0].mxu0
        %v725 = vadd.f32 0.0, %v724
        %v726 = vpop.f32.mrb[0].mxu0
        %v727 = vpop.f32.mrb[0].mxu0
        %v728 = vadd.f32 0.0, %v727
        %v729 = vpop.f32.mrb[0].mxu0
        %730 = vmatprep.mubr.bf16.mxu0 %v343
        %731 = vmatmul.mubr.bf16.gmra.mrb[0].mxu0 %v342
        %v732 = vpop.f32.mrb[0].mxu0
        %v733 = vadd.f32 0.0, %v732
        %v734 = vpop.f32.mrb[0].mxu0
        %v735 = vpop.f32.mrb[0].mxu0
        %v736 = vadd.f32 0.0, %v735
        %v737 = vpop.f32.mrb[0].mxu0
        %738 = vmatprep.mubr.bf16.mxu0 %v347
        %739 = vmatmul.mubr.bf16.gmra.mrb[0].mxu0 %v346
        %v740 = vpop.f32.mrb[0].mxu0
        %v741 = vadd.f32 0.0, %v740
        %v742 = vpop.f32.mrb[0].mxu0
        %v743 = vpop.f32.mrb[0].mxu0
        %v744 = vadd.f32 0.0, %v743
        %v745 = vpop.f32.mrb[0].mxu0
        %746 = vmatprep.mubr.bf16.mxu0 %v351
        %747 = vmatmul.mubr.bf16.gmra.mrb[0].mxu0 %v350
        %v748 = vpop.f32.mrb[0].mxu0
        %v749 = vadd.f32 0.0, %v748
        %v750 = vpop.f32.mrb[0].mxu0
        %v751 = vpop.f32.mrb[0].mxu0
        %v752 = vadd.f32 0.0, %v751
        %v753 = vpop.f32.mrb[0].mxu0
        %754 = vmatprep.mubr.bf16.mxu0 %v355
        %755 = vmatmul.mubr.bf16.gmra.mrb[0].mxu0 %v354
        %v756 = vpop.f32.mrb[0].mxu0
        %v757 = vadd.f32 0.0, %v756
        %v758 = vpop.f32.mrb[0].mxu0
        %v759 = vpop.f32.mrb[0].mxu0
        %v760 = vadd.f32 0.0, %v759
        %v761 = vpop.f32.mrb[0].mxu0
        %762 = vmatprep.mubr.bf16.mxu0 %v359
        %763 = vmatmul.mubr.bf16.gmra.mrb[0].mxu0 %v358
        %v764 = vpop.f32.mrb[0].mxu0
        %v765 = vadd.f32 0.0, %v764
        %v766 = vpop.f32.mrb[0].mxu0
        %v767 = vpop.f32.mrb[0].mxu0
        %v768 = vadd.f32 0.0, %v767
        %v769 = vpop.f32.mrb[0].mxu0
        %770 = vmatprep.mubr.bf16.mxu0 %v363
        %771 = vmatmul.mubr.bf16.gmra.mrb[0].mxu0 %v362
        %v772 = vpop.f32.mrb[0].mxu0
        %v773 = vadd.f32 0.0, %v772
        %v774 = vpop.f32.mrb[0].mxu0
        %v775 = vpop.f32.mrb[0].mxu0
        %v776 = vadd.f32 0.0, %v775
        %v777 = vpop.f32.mrb[0].mxu0
        %778 = vmatprep.mubr.bf16.mxu0 %v367
        %779 = vmatmul.mubr.bf16.gmra.mrb[0].mxu0 %v366
        %v780 = vpop.f32.mrb[0].mxu0
        %v781 = vadd.f32 0.0, %v780
        %v782 = vpop.f32.mrb[0].mxu0
        %v783 = vpop.f32.mrb[0].mxu0
        %v784 = vadd.f32 0.0, %v783
        %v785 = vpop.f32.mrb[0].mxu0
        %786 = vdwg.mxu0
        %787 = vmatprep.subr.bf16.mxu0 0
        %788 = vmatpush1.bf16.msra.mxu0 %v578
        %789 = vmatprep.subr.bf16.mxu0 0
        %790 = vmatpush1.bf16.msra.mxu0 %v579
        %791 = vmatprep.subr.bf16.mxu0 0
        %792 = vmatpush1.bf16.msra.mxu0 %v580
        %793 = vmatprep.subr.bf16.mxu0 0
        %794 = vmatpush1.bf16.msra.mxu0 %v581
        %795 = vmatprep.subr.bf16.mxu0 0
        %796 = vmatpush1.bf16.msra.mxu0 %v582
        %797 = vmatprep.subr.bf16.mxu0 0
        %798 = vmatpush1.bf16.msra.mxu0 %v583
        %799 = vmatprep.subr.bf16.mxu0 0
        %800 = vmatpush1.bf16.msra.mxu0 %v584
        %801 = vmatprep.subr.bf16.mxu0 0
        %802 = vmatpush1.bf16.msra.mxu0 %v585
        %803 = vmatprep.subr.bf16.mxu0 0
        %804 = vmatpush1.bf16.msra.mxu0 %v586
        %805 = vmatprep.subr.bf16.mxu0 0
        %806 = vmatpush1.bf16.msra.mxu0 %v587
        %807 = vmatprep.subr.bf16.mxu0 0
        %808 = vmatpush1.bf16.msra.mxu0 %v588
        %809 = vmatprep.subr.bf16.mxu0 0
        %810 = vmatpush1.bf16.msra.mxu0 %v589
        %811 = vmatprep.subr.bf16.mxu0 0
        %812 = vmatpush1.bf16.msra.mxu0 %v590
        %813 = vmatprep.subr.bf16.mxu0 0
        %814 = vmatpush1.bf16.msra.mxu0 %v591
        %815 = vmatprep.subr.bf16.mxu0 0
        %816 = vmatpush1.bf16.msra.mxu0 %v592
        %817 = vmatprep.subr.bf16.mxu0 0
        %818 = vmatpush1.bf16.msra.mxu0 %v593
        %819 = vmatprep.mubr.bf16.mxu0 %v309
        %820 = vmatmul.mubr.bf16.gmra.mrb[0].mxu0 %v308
        %v821 = vpop.f32.mrb[0].mxu0
        %v822 = vadd.f32 %v661, %v821
        %v823 = vpop.f32.mrb[0].mxu0
        %v824 = vpop.f32.mrb[0].mxu0
        %v825 = vadd.f32 %v664, %v824
        %v826 = vpop.f32.mrb[0].mxu0
        %827 = vmatprep.mubr.bf16.mxu0 %v313
        %828 = vmatmul.mubr.bf16.gmra.mrb[0].mxu0 %v312
        %v829 = vpop.f32.mrb[0].mxu0
        %v830 = vadd.f32 %v669, %v829
        %v831 = vpop.f32.mrb[0].mxu0
        %v832 = vpop.f32.mrb[0].mxu0
        %v833 = vadd.f32 %v672, %v832
        %v834 = vpop.f32.mrb[0].mxu0
        %835 = vmatprep.mubr.bf16.mxu0 %v317
        %836 = vmatmul.mubr.bf16.gmra.mrb[0].mxu0 %v316
        %v837 = vpop.f32.mrb[0].mxu0
        %v838 = vadd.f32 %v677, %v837
        %v839 = vpop.f32.mrb[0].mxu0
        %v840 = vpop.f32.mrb[0].mxu0
        %v841 = vadd.f32 %v680, %v840
        %v842 = vpop.f32.mrb[0].mxu0
        %843 = vmatprep.mubr.bf16.mxu0 %v321
        %844 = vmatmul.mubr.bf16.gmra.mrb[0].mxu0 %v320
        %v845 = vpop.f32.mrb[0].mxu0
        %v846 = vadd.f32 %v685, %v845
        %v847 = vpop.f32.mrb[0].mxu0
        %v848 = vpop.f32.mrb[0].mxu0
        %v849 = vadd.f32 %v688, %v848
        %v850 = vpop.f32.mrb[0].mxu0
        %851 = vmatprep.mubr.bf16.mxu0 %v325
        %852 = vmatmul.mubr.bf16.gmra.mrb[0].mxu0 %v324
        %v853 = vpop.f32.mrb[0].mxu0
        %v854 = vadd.f32 %v693, %v853
        %v855 = vpop.f32.mrb[0].mxu0
        %v856 = vpop.f32.mrb[0].mxu0
        %v857 = vadd.f32 %v696, %v856
        %v858 = vpop.f32.mrb[0].mxu0
        %859 = vmatprep.mubr.bf16.mxu0 %v329
        %860 = vmatmul.mubr.bf16.gmra.mrb[0].mxu0 %v328
        %v861 = vpop.f32.mrb[0].mxu0
        %v862 = vadd.f32 %v701, %v861
        %v863 = vpop.f32.mrb[0].mxu0
        %v864 = vpop.f32.mrb[0].mxu0
        %v865 = vadd.f32 %v704, %v864
        %v866 = vpop.f32.mrb[0].mxu0
        %867 = vmatprep.mubr.bf16.mxu0 %v333
        %868 = vmatmul.mubr.bf16.gmra.mrb[0].mxu0 %v332
        %v869 = vpop.f32.mrb[0].mxu0
        %v870 = vadd.f32 %v709, %v869
        %v871 = vpop.f32.mrb[0].mxu0
        %v872 = vpop.f32.mrb[0].mxu0
        %v873 = vadd.f32 %v712, %v872
        %v874 = vpop.f32.mrb[0].mxu0
        %875 = vmatprep.mubr.bf16.mxu0 %v337
        %876 = vmatmul.mubr.bf16.gmra.mrb[0].mxu0 %v336
        %v877 = vpop.f32.mrb[0].mxu0
        %v878 = vadd.f32 %v717, %v877
        %v879 = vpop.f32.mrb[0].mxu0
        %v880 = vpop.f32.mrb[0].mxu0
        %v881 = vadd.f32 %v720, %v880
        %v882 = vpop.f32.mrb[0].mxu0
        %883 = vmatprep.mubr.bf16.mxu0 %v341
        %884 = vmatmul.mubr.bf16.gmra.mrb[0].mxu0 %v340
        %v885 = vpop.f32.mrb[0].mxu0
        %v886 = vadd.f32 %v725, %v885
        %v887 = vpop.f32.mrb[0].mxu0
        %v888 = vpop.f32.mrb[0].mxu0
        %v889 = vadd.f32 %v728, %v888
        %v890 = vpop.f32.mrb[0].mxu0
        %891 = vmatprep.mubr.bf16.mxu0 %v345
        %892 = vmatmul.mubr.bf16.gmra.mrb[0].mxu0 %v344
        %v893 = vpop.f32.mrb[0].mxu0
        %v894 = vadd.f32 %v733, %v893
        %v895 = vpop.f32.mrb[0].mxu0
        %v896 = vpop.f32.mrb[0].mxu0
        %v897 = vadd.f32 %v736, %v896
        %v898 = vpop.f32.mrb[0].mxu0
        %899 = vmatprep.mubr.bf16.mxu0 %v349
        %900 = vmatmul.mubr.bf16.gmra.mrb[0].mxu0 %v348
        %v901 = vpop.f32.mrb[0].mxu0
        %v902 = vadd.f32 %v741, %v901
        %v903 = vpop.f32.mrb[0].mxu0
        %v904 = vpop.f32.mrb[0].mxu0
        %v905 = vadd.f32 %v744, %v904
        %v906 = vpop.f32.mrb[0].mxu0
        %907 = vmatprep.mubr.bf16.mxu0 %v353
        %908 = vmatmul.mubr.bf16.gmra.mrb[0].mxu0 %v352
        %v909 = vpop.f32.mrb[0].mxu0
        %v910 = vadd.f32 %v749, %v909
        %v911 = vpop.f32.mrb[0].mxu0
        %v912 = vpop.f32.mrb[0].mxu0
        %v913 = vadd.f32 %v752, %v912
        %v914 = vpop.f32.mrb[0].mxu0
        %915 = vmatprep.mubr.bf16.mxu0 %v357
        %916 = vmatmul.mubr.bf16.gmra.mrb[0].mxu0 %v356
        %v917 = vpop.f32.mrb[0].mxu0
        %v918 = vadd.f32 %v757, %v917
        %v919 = vpop.f32.mrb[0].mxu0
        %v920 = vpop.f32.mrb[0].mxu0
        %v921 = vadd.f32 %v760, %v920
        %v922 = vpop.f32.mrb[0].mxu0
        %923 = vmatprep.mubr.bf16.mxu0 %v361
        %924 = vmatmul.mubr.bf16.gmra.mrb[0].mxu0 %v360
        %v925 = vpop.f32.mrb[0].mxu0
        %v926 = vadd.f32 %v765, %v925
        %v927 = vpop.f32.mrb[0].mxu0
        %v928 = vpop.f32.mrb[0].mxu0
        %v929 = vadd.f32 %v768, %v928
        %v930 = vpop.f32.mrb[0].mxu0
        %931 = vmatprep.mubr.bf16.mxu0 %v365
        %932 = vmatmul.mubr.bf16.gmra.mrb[0].mxu0 %v364
        %v933 = vpop.f32.mrb[0].mxu0
        %v934 = vadd.f32 %v773, %v933
        %v935 = vpop.f32.mrb[0].mxu0
        %v936 = vpop.f32.mrb[0].mxu0
        %v937 = vadd.f32 %v776, %v936
        %v938 = vpop.f32.mrb[0].mxu0
        %939 = vmatprep.mubr.bf16.mxu0 %v369
        %940 = vmatmul.mubr.bf16.gmra.mrb[0].mxu0 %v368
        %v941 = vpop.f32.mrb[0].mxu0
        %v942 = vadd.f32 %v781, %v941
        %v943 = vpop.f32.mrb[0].mxu0
        %v944 = vpop.f32.mrb[0].mxu0
        %v945 = vadd.f32 %v784, %v944
        %v946 = vpop.f32.mrb[0].mxu0
        %947 = vdwg.mxu0
        %v948 = vpack.c.bf16 %v825, %v822
        %v949 = vpack.c.bf16 %v833, %v830
        %v950 = vpack.c.bf16 %v841, %v838
        %v951 = vpack.c.bf16 %v849, %v846
        %v952 = vpack.c.bf16 %v857, %v854
        %v953 = vpack.c.bf16 %v865, %v862
        %v954 = vpack.c.bf16 %v873, %v870
        %v955 = vpack.c.bf16 %v881, %v878
        %v956 = vpack.c.bf16 %v889, %v886
        %v957 = vpack.c.bf16 %v897, %v894
        %v958 = vpack.c.bf16 %v905, %v902
        %v959 = vpack.c.bf16 %v913, %v910
        %v960 = vpack.c.bf16 %v921, %v918
        %v961 = vpack.c.bf16 %v929, %v926
        %v962 = vpack.c.bf16 %v937, %v934
        %v963 = vpack.c.bf16 %v945, %v942
        %964 = vst [vmem:[#allocation2] sm:$0xff] %v948
        %965 = vst [vmem:[#allocation2 + $0x8] sm:$0xff] %v949
        %966 = vst [vmem:[#allocation2 + $0x10] sm:$0xff] %v950
        %967 = vst [vmem:[#allocation2 + $0x18] sm:$0xff] %v951
        %968 = vst [vmem:[#allocation2 + $0x20] sm:$0xff] %v952
        %969 = vst [vmem:[#allocation2 + $0x28] sm:$0xff] %v953
        %970 = vst [vmem:[#allocation2 + $0x30] sm:$0xff] %v954
        %971 = vst [vmem:[#allocation2 + $0x38] sm:$0xff] %v955
        %972 = vst [vmem:[#allocation2 + $0x40] sm:$0xff] %v956
        %973 = vst [vmem:[#allocation2 + $0x48] sm:$0xff] %v957
        %974 = vst [vmem:[#allocation2 + $0x50] sm:$0xff] %v958
        %975 = vst [vmem:[#allocation2 + $0x58] sm:$0xff] %v959
        %976 = vst [vmem:[#allocation2 + $0x60] sm:$0xff] %v960
        %977 = vst [vmem:[#allocation2 + $0x68] sm:$0xff] %v961
        %978 = vst [vmem:[#allocation2 + $0x70] sm:$0xff] %v962
        %979 = vst [vmem:[#allocation2 + $0x78] sm:$0xff] %v963
        %v980 = vld [vmem:[#allocation8 + $0x4] sm:$0xf]
        %v981 = vld [vmem:[#allocation8 + $0x10] sm:$0xf]
        %v982 = vld [vmem:[#allocation8 + $0x1c] sm:$0xf]
        %v983 = vld [vmem:[#allocation8 + $0x28] sm:$0xf]
        %v984 = vld [vmem:[#allocation8 + $0x34] sm:$0xf]
        %v985 = vld [vmem:[#allocation8 + $0x40] sm:$0xf]
        %v986 = vld [vmem:[#allocation8 + $0x4c] sm:$0xf]
        %v987 = vld [vmem:[#allocation8 + $0x58] sm:$0xf]
        %v988 = vld [vmem:[#allocation8 + $0x64] sm:$0xf]
        %v989 = vld [vmem:[#allocation8 + $0x70] sm:$0xf]
        %v990 = vld [vmem:[#allocation8 + $0x7c] sm:$0xf]
        %v991 = vld [vmem:[#allocation8 + $0x88] sm:$0xf]
        %v992 = vld [vmem:[#allocation8 + $0x94] sm:$0xf]
        %v993 = vld [vmem:[#allocation8 + $0xa0] sm:$0xf]
        %v994 = vld [vmem:[#allocation8 + $0xac] sm:$0xf]
        %v995 = vld [vmem:[#allocation8 + $0xb8] sm:$0xf]
        %v996 = vld [vmem:[#allocation8 + $0xc4] sm:$0xf]
        %v997 = vld [vmem:[#allocation8 + $0xd0] sm:$0xf]
        %v998 = vld [vmem:[#allocation8 + $0xdc] sm:$0xf]
        %v999 = vld [vmem:[#allocation8 + $0xe8] sm:$0xf]
        %v1000 = vld [vmem:[#allocation8 + $0xf4] sm:$0xf]
        %v1001 = vld [vmem:[#allocation8 + $0x100] sm:$0xf]
        %v1002 = vld [vmem:[#allocation8 + $0x10c] sm:$0xf]
        %v1003 = vld [vmem:[#allocation8 + $0x118] sm:$0xf]
        %v1004 = vld [vmem:[#allocation8 + $0x124] sm:$0xf]
        %v1005 = vld [vmem:[#allocation8 + $0x130] sm:$0xf]
        %v1006 = vld [vmem:[#allocation8 + $0x13c] sm:$0xf]
        %v1007 = vld [vmem:[#allocation8 + $0x148] sm:$0xf]
        %v1008 = vld [vmem:[#allocation8 + $0x154] sm:$0xf]
        %v1009 = vld [vmem:[#allocation8 + $0x160] sm:$0xf]
        %v1010 = vld [vmem:[#allocation8 + $0x16c] sm:$0xf]
        %v1011 = vld [vmem:[#allocation8 + $0x178] sm:$0xf]
        %v1012 = vld [vmem:[#allocation8 + $0x184] sm:$0xf]
        %v1013 = vld [vmem:[#allocation8 + $0x190] sm:$0xf]
        %v1014 = vld [vmem:[#allocation8 + $0x19c] sm:$0xf]
        %v1015 = vld [vmem:[#allocation8 + $0x1a8] sm:$0xf]
        %v1016 = vld [vmem:[#allocation8 + $0x1b4] sm:$0xf]
        %v1017 = vld [vmem:[#allocation8 + $0x1c0] sm:$0xf]
        %v1018 = vld [vmem:[#allocation8 + $0x1cc] sm:$0xf]
        %v1019 = vld [vmem:[#allocation8 + $0x1d8] sm:$0xf]
        %v1020 = vld [vmem:[#allocation8 + $0x1e4] sm:$0xf]
        %v1021 = vld [vmem:[#allocation8 + $0x1f0] sm:$0xf]
        %v1022 = vld [vmem:[#allocation8 + $0x1fc] sm:$0xf]
        %v1023 = vld [vmem:[#allocation8 + $0x208] sm:$0xf]
        %v1024 = vld [vmem:[#allocation8 + $0x214] sm:$0xf]
        %v1025 = vld [vmem:[#allocation8 + $0x220] sm:$0xf]
        %v1026 = vld [vmem:[#allocation8 + $0x22c] sm:$0xf]
        %v1027 = vld [vmem:[#allocation8 + $0x238] sm:$0xf]
        %v1028 = vld [vmem:[#allocation8 + $0x244] sm:$0xf]
        %v1029 = vld [vmem:[#allocation8 + $0x250] sm:$0xf]
        %v1030 = vld [vmem:[#allocation8 + $0x25c] sm:$0xf]
        %v1031 = vld [vmem:[#allocation8 + $0x268] sm:$0xf]
        %v1032 = vld [vmem:[#allocation8 + $0x274] sm:$0xf]
        %v1033 = vld [vmem:[#allocation8 + $0x280] sm:$0xf]
        %v1034 = vld [vmem:[#allocation8 + $0x28c] sm:$0xf]
        %v1035 = vld [vmem:[#allocation8 + $0x298] sm:$0xf]
        %v1036 = vld [vmem:[#allocation8 + $0x2a4] sm:$0xf]
        %v1037 = vld [vmem:[#allocation8 + $0x2b0] sm:$0xf]
        %v1038 = vld [vmem:[#allocation8 + $0x2bc] sm:$0xf]
        %v1039 = vld [vmem:[#allocation8 + $0x2c8] sm:$0xf]
        %v1040 = vld [vmem:[#allocation8 + $0x2d4] sm:$0xf]
        %v1041 = vld [vmem:[#allocation8 + $0x2e0] sm:$0xf]
        %v1042 = vld [vmem:[#allocation8 + $0x2ec] sm:$0xf]
        %v1043 = vld [vmem:[#allocation8 + $0x2f8] sm:$0xf]
        %v1108 = vunpack.c.l.b16 %v980
        %v1109 = vunpack.c.l.b16 %v981
        %v1110 = vunpack.c.l.b16 %v982
        %v1111 = vunpack.c.l.b16 %v983
        %v1112 = vunpack.c.l.b16 %v984
        %v1113 = vunpack.c.l.b16 %v985
        %v1114 = vunpack.c.l.b16 %v986
        %v1115 = vunpack.c.l.b16 %v987
        %v1116 = vunpack.c.l.b16 %v988
        %v1117 = vunpack.c.l.b16 %v989
        %v1118 = vunpack.c.l.b16 %v990
        %v1119 = vunpack.c.l.b16 %v991
        %v1120 = vunpack.c.l.b16 %v992
        %v1121 = vunpack.c.l.b16 %v993
        %v1122 = vunpack.c.l.b16 %v994
        %v1123 = vunpack.c.l.b16 %v995
        %v1124 = vunpack.c.l.b16 %v996
        %v1125 = vunpack.c.l.b16 %v997
        %v1126 = vunpack.c.l.b16 %v998
        %v1127 = vunpack.c.l.b16 %v999
        %v1128 = vunpack.c.l.b16 %v1000
        %v1129 = vunpack.c.l.b16 %v1001
        %v1130 = vunpack.c.l.b16 %v1002
        %v1131 = vunpack.c.l.b16 %v1003
        %v1132 = vunpack.c.l.b16 %v1004
        %v1133 = vunpack.c.l.b16 %v1005
        %v1134 = vunpack.c.l.b16 %v1006
        %v1135 = vunpack.c.l.b16 %v1007
        %v1136 = vunpack.c.l.b16 %v1008
        %v1137 = vunpack.c.l.b16 %v1009
        %v1138 = vunpack.c.l.b16 %v1010
        %v1139 = vunpack.c.l.b16 %v1011
        %v1140 = vunpack.c.l.b16 %v1012
        %v1141 = vunpack.c.l.b16 %v1013
        %v1142 = vunpack.c.l.b16 %v1014
        %v1143 = vunpack.c.l.b16 %v1015
        %v1144 = vunpack.c.l.b16 %v1016
        %v1145 = vunpack.c.l.b16 %v1017
        %v1146 = vunpack.c.l.b16 %v1018
        %v1147 = vunpack.c.l.b16 %v1019
        %v1148 = vunpack.c.l.b16 %v1020
        %v1149 = vunpack.c.l.b16 %v1021
        %v1150 = vunpack.c.l.b16 %v1022
        %v1151 = vunpack.c.l.b16 %v1023
        %v1152 = vunpack.c.l.b16 %v1024
        %v1153 = vunpack.c.l.b16 %v1025
        %v1154 = vunpack.c.l.b16 %v1026
        %v1155 = vunpack.c.l.b16 %v1027
        %v1156 = vunpack.c.l.b16 %v1028
        %v1157 = vunpack.c.l.b16 %v1029
        %v1158 = vunpack.c.l.b16 %v1030
        %v1159 = vunpack.c.l.b16 %v1031
        %v1160 = vunpack.c.l.b16 %v1032
        %v1161 = vunpack.c.l.b16 %v1033
        %v1162 = vunpack.c.l.b16 %v1034
        %v1163 = vunpack.c.l.b16 %v1035
        %v1164 = vunpack.c.l.b16 %v1036
        %v1165 = vunpack.c.l.b16 %v1037
        %v1166 = vunpack.c.l.b16 %v1038
        %v1167 = vunpack.c.l.b16 %v1039
        %v1168 = vunpack.c.l.b16 %v1040
        %v1169 = vunpack.c.l.b16 %v1041
        %v1170 = vunpack.c.l.b16 %v1042
        %v1171 = vunpack.c.l.b16 %v1043
        %v1172 = vpack.c.b16 %v1109, %v1108
        %v1173 = vpack.c.b16 %v1111, %v1110
        %v1174 = vpack.c.b16 %v1113, %v1112
        %v1175 = vpack.c.b16 %v1115, %v1114
        %v1176 = vpack.c.b16 %v1117, %v1116
        %v1177 = vpack.c.b16 %v1119, %v1118
        %v1178 = vpack.c.b16 %v1121, %v1120
        %v1179 = vpack.c.b16 %v1123, %v1122
        %v1180 = vpack.c.b16 %v1125, %v1124
        %v1181 = vpack.c.b16 %v1127, %v1126
        %v1182 = vpack.c.b16 %v1129, %v1128
        %v1183 = vpack.c.b16 %v1131, %v1130
        %v1184 = vpack.c.b16 %v1133, %v1132
        %v1185 = vpack.c.b16 %v1135, %v1134
        %v1186 = vpack.c.b16 %v1137, %v1136
        %v1187 = vpack.c.b16 %v1139, %v1138
        %v1188 = vpack.c.b16 %v1141, %v1140
        %v1189 = vpack.c.b16 %v1143, %v1142
        %v1190 = vpack.c.b16 %v1145, %v1144
        %v1191 = vpack.c.b16 %v1147, %v1146
        %v1192 = vpack.c.b16 %v1149, %v1148
        %v1193 = vpack.c.b16 %v1151, %v1150
        %v1194 = vpack.c.b16 %v1153, %v1152
        %v1195 = vpack.c.b16 %v1155, %v1154
        %v1196 = vpack.c.b16 %v1157, %v1156
        %v1197 = vpack.c.b16 %v1159, %v1158
        %v1198 = vpack.c.b16 %v1161, %v1160
        %v1199 = vpack.c.b16 %v1163, %v1162
        %v1200 = vpack.c.b16 %v1165, %v1164
        %v1201 = vpack.c.b16 %v1167, %v1166
        %v1202 = vpack.c.b16 %v1169, %v1168
        %v1203 = vpack.c.b16 %v1171, %v1170
        %1236 = vmatprep.subr.bf16.mxu0 0
        %1237 = vmatpush1.bf16.msra.mxu0 %v1172
        %1238 = vmatprep.subr.bf16.mxu0 0
        %1239 = vmatpush1.bf16.msra.mxu0 %v1173
        %1240 = vmatprep.subr.bf16.mxu0 0
        %1241 = vmatpush1.bf16.msra.mxu0 %v1174
        %1242 = vmatprep.subr.bf16.mxu0 0
        %1243 = vmatpush1.bf16.msra.mxu0 %v1175
        %1244 = vmatprep.subr.bf16.mxu0 0
        %1245 = vmatpush1.bf16.msra.mxu0 %v1176
        %1246 = vmatprep.subr.bf16.mxu0 0
        %1247 = vmatpush1.bf16.msra.mxu0 %v1177
        %1248 = vmatprep.subr.bf16.mxu0 0
        %1249 = vmatpush1.bf16.msra.mxu0 %v1178
        %1250 = vmatprep.subr.bf16.mxu0 0
        %1251 = vmatpush1.bf16.msra.mxu0 %v1179
        %1252 = vmatprep.subr.bf16.mxu0 0
        %1253 = vmatpush1.bf16.msra.mxu0 %v1180
        %1254 = vmatprep.subr.bf16.mxu0 0
        %1255 = vmatpush1.bf16.msra.mxu0 %v1181
        %1256 = vmatprep.subr.bf16.mxu0 0
        %1257 = vmatpush1.bf16.msra.mxu0 %v1182
        %1258 = vmatprep.subr.bf16.mxu0 0
        %1259 = vmatpush1.bf16.msra.mxu0 %v1183
        %1260 = vmatprep.subr.bf16.mxu0 0
        %1261 = vmatpush1.bf16.msra.mxu0 %v1184
        %1262 = vmatprep.subr.bf16.mxu0 0
        %1263 = vmatpush1.bf16.msra.mxu0 %v1185
        %1264 = vmatprep.subr.bf16.mxu0 0
        %1265 = vmatpush1.bf16.msra.mxu0 %v1186
        %1266 = vmatprep.subr.bf16.mxu0 0
        %1267 = vmatpush1.bf16.msra.mxu0 %v1187
        %1268 = vmatprep.mubr.bf16.mxu0 %v307
        %1269 = vmatmul.mubr.bf16.gmra.mrb[0].mxu0 %v306
        %v1270 = vpop.f32.mrb[0].mxu0
        %v1271 = vadd.f32 0.0, %v1270
        %v1272 = vpop.f32.mrb[0].mxu0
        %v1273 = vpop.f32.mrb[0].mxu0
        %v1274 = vadd.f32 0.0, %v1273
        %v1275 = vpop.f32.mrb[0].mxu0
        %1276 = vmatprep.mubr.bf16.mxu0 %v311
        %1277 = vmatmul.mubr.bf16.gmra.mrb[0].mxu0 %v310
        %v1278 = vpop.f32.mrb[0].mxu0
        %v1279 = vadd.f32 0.0, %v1278
        %v1280 = vpop.f32.mrb[0].mxu0
        %v1281 = vpop.f32.mrb[0].mxu0
        %v1282 = vadd.f32 0.0, %v1281
        %v1283 = vpop.f32.mrb[0].mxu0
        %1284 = vmatprep.mubr.bf16.mxu0 %v315
        %1285 = vmatmul.mubr.bf16.gmra.mrb[0].mxu0 %v314
        %v1286 = vpop.f32.mrb[0].mxu0
        %v1287 = vadd.f32 0.0, %v1286
        %v1288 = vpop.f32.mrb[0].mxu0
        %v1289 = vpop.f32.mrb[0].mxu0
        %v1290 = vadd.f32 0.0, %v1289
        %v1291 = vpop.f32.mrb[0].mxu0
        %1292 = vmatprep.mubr.bf16.mxu0 %v319
        %1293 = vmatmul.mubr.bf16.gmra.mrb[0].mxu0 %v318
        %v1294 = vpop.f32.mrb[0].mxu0
        %v1295 = vadd.f32 0.0, %v1294
        %v1296 = vpop.f32.mrb[0].mxu0
        %v1297 = vpop.f32.mrb[0].mxu0
        %v1298 = vadd.f32 0.0, %v1297
        %v1299 = vpop.f32.mrb[0].mxu0
        %1300 = vmatprep.mubr.bf16.mxu0 %v323
        %1301 = vmatmul.mubr.bf16.gmra.mrb[0].mxu0 %v322
        %v1302 = vpop.f32.mrb[0].mxu0
        %v1303 = vadd.f32 0.0, %v1302
        %v1304 = vpop.f32.mrb[0].mxu0
        %v1305 = vpop.f32.mrb[0].mxu0
        %v1306 = vadd.f32 0.0, %v1305
        %v1307 = vpop.f32.mrb[0].mxu0
        %1308 = vmatprep.mubr.bf16.mxu0 %v327
        %1309 = vmatmul.mubr.bf16.gmra.mrb[0].mxu0 %v326
        %v1310 = vpop.f32.mrb[0].mxu0
        %v1311 = vadd.f32 0.0, %v1310
        %v1312 = vpop.f32.mrb[0].mxu0
        %v1313 = vpop.f32.mrb[0].mxu0
        %v1314 = vadd.f32 0.0, %v1313
        %v1315 = vpop.f32.mrb[0].mxu0
        %1316 = vmatprep.mubr.bf16.mxu0 %v331
        %1317 = vmatmul.mubr.bf16.gmra.mrb[0].mxu0 %v330
        %v1318 = vpop.f32.mrb[0].mxu0
        %v1319 = vadd.f32 0.0, %v1318
        %v1320 = vpop.f32.mrb[0].mxu0
        %v1321 = vpop.f32.mrb[0].mxu0
        %v1322 = vadd.f32 0.0, %v1321
        %v1323 = vpop.f32.mrb[0].mxu0
        %1324 = vmatprep.mubr.bf16.mxu0 %v335
        %1325 = vmatmul.mubr.bf16.gmra.mrb[0].mxu0 %v334
        %v1326 = vpop.f32.mrb[0].mxu0
        %v1327 = vadd.f32 0.0, %v1326
        %v1328 = vpop.f32.mrb[0].mxu0
        %v1329 = vpop.f32.mrb[0].mxu0
        %v1330 = vadd.f32 0.0, %v1329
        %v1331 = vpop.f32.mrb[0].mxu0
        %1332 = vmatprep.mubr.bf16.mxu0 %v339
        %1333 = vmatmul.mubr.bf16.gmra.mrb[0].mxu0 %v338
        %v1334 = vpop.f32.mrb[0].mxu0
        %v1335 = vadd.f32 0.0, %v1334
        %v1336 = vpop.f32.mrb[0].mxu0
        %v1337 = vpop.f32.mrb[0].mxu0
        %v1338 = vadd.f32 0.0, %v1337
        %v1339 = vpop.f32.mrb[0].mxu0
        %1340 = vmatprep.mubr.bf16.mxu0 %v343
        %1341 = vmatmul.mubr.bf16.gmra.mrb[0].mxu0 %v342
        %v1342 = vpop.f32.mrb[0].mxu0
        %v1343 = vadd.f32 0.0, %v1342
        %v1344 = vpop.f32.mrb[0].mxu0
        %v1345 = vpop.f32.mrb[0].mxu0
        %v1346 = vadd.f32 0.0, %v1345
        %v1347 = vpop.f32.mrb[0].mxu0
        %1348 = vmatprep.mubr.bf16.mxu0 %v347
        %1349 = vmatmul.mubr.bf16.gmra.mrb[0].mxu0 %v346
        %v1350 = vpop.f32.mrb[0].mxu0
        %v1351 = vadd.f32 0.0, %v1350
        %v1352 = vpop.f32.mrb[0].mxu0
        %v1353 = vpop.f32.mrb[0].mxu0
        %v1354 = vadd.f32 0.0, %v1353
        %v1355 = vpop.f32.mrb[0].mxu0
        %1356 = vmatprep.mubr.bf16.mxu0 %v351
        %1357 = vmatmul.mubr.bf16.gmra.mrb[0].mxu0 %v350
        %v1358 = vpop.f32.mrb[0].mxu0
        %v1359 = vadd.f32 0.0, %v1358
        %v1360 = vpop.f32.mrb[0].mxu0
        %v1361 = vpop.f32.mrb[0].mxu0
        %v1362 = vadd.f32 0.0, %v1361
        %v1363 = vpop.f32.mrb[0].mxu0
        %1364 = vmatprep.mubr.bf16.mxu0 %v355
        %1365 = vmatmul.mubr.bf16.gmra.mrb[0].mxu0 %v354
        %v1366 = vpop.f32.mrb[0].mxu0
        %v1367 = vadd.f32 0.0, %v1366
        %v1368 = vpop.f32.mrb[0].mxu0
        %v1369 = vpop.f32.mrb[0].mxu0
        %v1370 = vadd.f32 0.0, %v1369
        %v1371 = vpop.f32.mrb[0].mxu0
        %1372 = vmatprep.mubr.bf16.mxu0 %v359
        %1373 = vmatmul.mubr.bf16.gmra.mrb[0].mxu0 %v358
        %v1374 = vpop.f32.mrb[0].mxu0
        %v1375 = vadd.f32 0.0, %v1374
        %v1376 = vpop.f32.mrb[0].mxu0
        %v1377 = vpop.f32.mrb[0].mxu0
        %v1378 = vadd.f32 0.0, %v1377
        %v1379 = vpop.f32.mrb[0].mxu0
        %1380 = vmatprep.mubr.bf16.mxu0 %v363
        %1381 = vmatmul.mubr.bf16.gmra.mrb[0].mxu0 %v362
        %v1382 = vpop.f32.mrb[0].mxu0
        %v1383 = vadd.f32 0.0, %v1382
        %v1384 = vpop.f32.mrb[0].mxu0
        %v1385 = vpop.f32.mrb[0].mxu0
        %v1386 = vadd.f32 0.0, %v1385
        %v1387 = vpop.f32.mrb[0].mxu0
        %1388 = vmatprep.mubr.bf16.mxu0 %v367
        %1389 = vmatmul.mubr.bf16.gmra.mrb[0].mxu0 %v366
        %v1390 = vpop.f32.mrb[0].mxu0
        %v1391 = vadd.f32 0.0, %v1390
        %v1392 = vpop.f32.mrb[0].mxu0
        %v1393 = vpop.f32.mrb[0].mxu0
        %v1394 = vadd.f32 0.0, %v1393
        %v1395 = vpop.f32.mrb[0].mxu0
        %1396 = vdwg.mxu0
        %1397 = vmatprep.subr.bf16.mxu0 0
        %1398 = vmatpush1.bf16.msra.mxu0 %v1188
        %1399 = vmatprep.subr.bf16.mxu0 0
        %1400 = vmatpush1.bf16.msra.mxu0 %v1189
        %1401 = vmatprep.subr.bf16.mxu0 0
        %1402 = vmatpush1.bf16.msra.mxu0 %v1190
        %1403 = vmatprep.subr.bf16.mxu0 0
        %1404 = vmatpush1.bf16.msra.mxu0 %v1191
        %1405 = vmatprep.subr.bf16.mxu0 0
        %1406 = vmatpush1.bf16.msra.mxu0 %v1192
        %1407 = vmatprep.subr.bf16.mxu0 0
        %1408 = vmatpush1.bf16.msra.mxu0 %v1193
        %1409 = vmatprep.subr.bf16.mxu0 0
        %1410 = vmatpush1.bf16.msra.mxu0 %v1194
        %1411 = vmatprep.subr.bf16.mxu0 0
        %1412 = vmatpush1.bf16.msra.mxu0 %v1195
        %1413 = vmatprep.subr.bf16.mxu0 0
        %1414 = vmatpush1.bf16.msra.mxu0 %v1196
        %1415 = vmatprep.subr.bf16.mxu0 0
        %1416 = vmatpush1.bf16.msra.mxu0 %v1197
        %1417 = vmatprep.subr.bf16.mxu0 0
        %1418 = vmatpush1.bf16.msra.mxu0 %v1198
        %1419 = vmatprep.subr.bf16.mxu0 0
        %1420 = vmatpush1.bf16.msra.mxu0 %v1199
        %1421 = vmatprep.subr.bf16.mxu0 0
        %1422 = vmatpush1.bf16.msra.mxu0 %v1200
        %1423 = vmatprep.subr.bf16.mxu0 0
        %1424 = vmatpush1.bf16.msra.mxu0 %v1201
        %1425 = vmatprep.subr.bf16.mxu0 0
        %1426 = vmatpush1.bf16.msra.mxu0 %v1202
        %1427 = vmatprep.subr.bf16.mxu0 0
        %1428 = vmatpush1.bf16.msra.mxu0 %v1203
        %1429 = vmatprep.mubr.bf16.mxu0 %v309
        %1430 = vmatmul.mubr.bf16.gmra.mrb[0].mxu0 %v308
        %v1431 = vpop.f32.mrb[0].mxu0
        %v1432 = vadd.f32 %v1271, %v1431
        %v1433 = vpop.f32.mrb[0].mxu0
        %v1434 = vpop.f32.mrb[0].mxu0
        %v1435 = vadd.f32 %v1274, %v1434
        %v1436 = vpop.f32.mrb[0].mxu0
        %1437 = vmatprep.mubr.bf16.mxu0 %v313
        %1438 = vmatmul.mubr.bf16.gmra.mrb[0].mxu0 %v312
        %v1439 = vpop.f32.mrb[0].mxu0
        %v1440 = vadd.f32 %v1279, %v1439
        %v1441 = vpop.f32.mrb[0].mxu0
        %v1442 = vpop.f32.mrb[0].mxu0
        %v1443 = vadd.f32 %v1282, %v1442
        %v1444 = vpop.f32.mrb[0].mxu0
        %1445 = vmatprep.mubr.bf16.mxu0 %v317
        %1446 = vmatmul.mubr.bf16.gmra.mrb[0].mxu0 %v316
        %v1447 = vpop.f32.mrb[0].mxu0
        %v1448 = vadd.f32 %v1287, %v1447
        %v1449 = vpop.f32.mrb[0].mxu0
        %v1450 = vpop.f32.mrb[0].mxu0
        %v1451 = vadd.f32 %v1290, %v1450
        %v1452 = vpop.f32.mrb[0].mxu0
        %1453 = vmatprep.mubr.bf16.mxu0 %v321
        %1454 = vmatmul.mubr.bf16.gmra.mrb[0].mxu0 %v320
        %v1455 = vpop.f32.mrb[0].mxu0
        %v1456 = vadd.f32 %v1295, %v1455
        %v1457 = vpop.f32.mrb[0].mxu0
        %v1458 = vpop.f32.mrb[0].mxu0
        %v1459 = vadd.f32 %v1298, %v1458
        %v1460 = vpop.f32.mrb[0].mxu0
        %1461 = vmatprep.mubr.bf16.mxu0 %v325
        %1462 = vmatmul.mubr.bf16.gmra.mrb[0].mxu0 %v324
        %v1463 = vpop.f32.mrb[0].mxu0
        %v1464 = vadd.f32 %v1303, %v1463
        %v1465 = vpop.f32.mrb[0].mxu0
        %v1466 = vpop.f32.mrb[0].mxu0
        %v1467 = vadd.f32 %v1306, %v1466
        %v1468 = vpop.f32.mrb[0].mxu0
        %1469 = vmatprep.mubr.bf16.mxu0 %v329
        %1470 = vmatmul.mubr.bf16.gmra.mrb[0].mxu0 %v328
        %v1471 = vpop.f32.mrb[0].mxu0
        %v1472 = vadd.f32 %v1311, %v1471
        %v1473 = vpop.f32.mrb[0].mxu0
        %v1474 = vpop.f32.mrb[0].mxu0
        %v1475 = vadd.f32 %v1314, %v1474
        %v1476 = vpop.f32.mrb[0].mxu0
        %1477 = vmatprep.mubr.bf16.mxu0 %v333
        %1478 = vmatmul.mubr.bf16.gmra.mrb[0].mxu0 %v332
        %v1479 = vpop.f32.mrb[0].mxu0
        %v1480 = vadd.f32 %v1319, %v1479
        %v1481 = vpop.f32.mrb[0].mxu0
        %v1482 = vpop.f32.mrb[0].mxu0
        %v1483 = vadd.f32 %v1322, %v1482
        %v1484 = vpop.f32.mrb[0].mxu0
        %1485 = vmatprep.mubr.bf16.mxu0 %v337
        %1486 = vmatmul.mubr.bf16.gmra.mrb[0].mxu0 %v336
        %v1487 = vpop.f32.mrb[0].mxu0
        %v1488 = vadd.f32 %v1327, %v1487
        %v1489 = vpop.f32.mrb[0].mxu0
        %v1490 = vpop.f32.mrb[0].mxu0
        %v1491 = vadd.f32 %v1330, %v1490
        %v1492 = vpop.f32.mrb[0].mxu0
        %1493 = vmatprep.mubr.bf16.mxu0 %v341
        %1494 = vmatmul.mubr.bf16.gmra.mrb[0].mxu0 %v340
        %v1495 = vpop.f32.mrb[0].mxu0
        %v1496 = vadd.f32 %v1335, %v1495
        %v1497 = vpop.f32.mrb[0].mxu0
        %v1498 = vpop.f32.mrb[0].mxu0
        %v1499 = vadd.f32 %v1338, %v1498
        %v1500 = vpop.f32.mrb[0].mxu0
        %1501 = vmatprep.mubr.bf16.mxu0 %v345
        %1502 = vmatmul.mubr.bf16.gmra.mrb[0].mxu0 %v344
        %v1503 = vpop.f32.mrb[0].mxu0
        %v1504 = vadd.f32 %v1343, %v1503
        %v1505 = vpop.f32.mrb[0].mxu0
        %v1506 = vpop.f32.mrb[0].mxu0
        %v1507 = vadd.f32 %v1346, %v1506
        %v1508 = vpop.f32.mrb[0].mxu0
        %1509 = vmatprep.mubr.bf16.mxu0 %v349
        %1510 = vmatmul.mubr.bf16.gmra.mrb[0].mxu0 %v348
        %v1511 = vpop.f32.mrb[0].mxu0
        %v1512 = vadd.f32 %v1351, %v1511
        %v1513 = vpop.f32.mrb[0].mxu0
        %v1514 = vpop.f32.mrb[0].mxu0
        %v1515 = vadd.f32 %v1354, %v1514
        %v1516 = vpop.f32.mrb[0].mxu0
        %1517 = vmatprep.mubr.bf16.mxu0 %v353
        %1518 = vmatmul.mubr.bf16.gmra.mrb[0].mxu0 %v352
        %v1519 = vpop.f32.mrb[0].mxu0
        %v1520 = vadd.f32 %v1359, %v1519
        %v1521 = vpop.f32.mrb[0].mxu0
        %v1522 = vpop.f32.mrb[0].mxu0
        %v1523 = vadd.f32 %v1362, %v1522
        %v1524 = vpop.f32.mrb[0].mxu0
        %1525 = vmatprep.mubr.bf16.mxu0 %v357
        %1526 = vmatmul.mubr.bf16.gmra.mrb[0].mxu0 %v356
        %v1527 = vpop.f32.mrb[0].mxu0
        %v1528 = vadd.f32 %v1367, %v1527
        %v1529 = vpop.f32.mrb[0].mxu0
        %v1530 = vpop.f32.mrb[0].mxu0
        %v1531 = vadd.f32 %v1370, %v1530
        %v1532 = vpop.f32.mrb[0].mxu0
        %1533 = vmatprep.mubr.bf16.mxu0 %v361
        %1534 = vmatmul.mubr.bf16.gmra.mrb[0].mxu0 %v360
        %v1535 = vpop.f32.mrb[0].mxu0
        %v1536 = vadd.f32 %v1375, %v1535
        %v1537 = vpop.f32.mrb[0].mxu0
        %v1538 = vpop.f32.mrb[0].mxu0
        %v1539 = vadd.f32 %v1378, %v1538
        %v1540 = vpop.f32.mrb[0].mxu0
        %1541 = vmatprep.mubr.bf16.mxu0 %v365
        %1542 = vmatmul.mubr.bf16.gmra.mrb[0].mxu0 %v364
        %v1543 = vpop.f32.mrb[0].mxu0
        %v1544 = vadd.f32 %v1383, %v1543
        %v1545 = vpop.f32.mrb[0].mxu0
        %v1546 = vpop.f32.mrb[0].mxu0
        %v1547 = vadd.f32 %v1386, %v1546
        %v1548 = vpop.f32.mrb[0].mxu0
        %1549 = vmatprep.mubr.bf16.mxu0 %v369
        %1550 = vmatmul.mubr.bf16.gmra.mrb[0].mxu0 %v368
        %v1551 = vpop.f32.mrb[0].mxu0
        %v1552 = vadd.f32 %v1391, %v1551
        %v1553 = vpop.f32.mrb[0].mxu0
        %v1554 = vpop.f32.mrb[0].mxu0
        %v1555 = vadd.f32 %v1394, %v1554
        %v1556 = vpop.f32.mrb[0].mxu0
        %1557 = vdwg.mxu0
        %v1558 = vmul.f32 %v1432, 0.044194173
        %v1559 = vmul.f32 %v1435, 0.044194173
        %v1560 = vmul.f32 %v1440, 0.044194173
        %v1561 = vmul.f32 %v1443, 0.044194173
        %v1562 = vmul.f32 %v1448, 0.044194173
        %v1563 = vmul.f32 %v1451, 0.044194173
        %v1564 = vmul.f32 %v1456, 0.044194173
        %v1565 = vmul.f32 %v1459, 0.044194173
        %v1566 = vmul.f32 %v1464, 0.044194173
        %v1567 = vmul.f32 %v1467, 0.044194173
        %v1568 = vmul.f32 %v1472, 0.044194173
        %v1569 = vmul.f32 %v1475, 0.044194173
        %v1570 = vmul.f32 %v1480, 0.044194173
        %v1571 = vmul.f32 %v1483, 0.044194173
        %v1572 = vmul.f32 %v1488, 0.044194173
        %v1573 = vmul.f32 %v1491, 0.044194173
        %v1574 = vmul.f32 %v1496, 0.044194173
        %v1575 = vmul.f32 %v1499, 0.044194173
        %v1576 = vmul.f32 %v1504, 0.044194173
        %v1577 = vmul.f32 %v1507, 0.044194173
        %v1578 = vmul.f32 %v1512, 0.044194173
        %v1579 = vmul.f32 %v1515, 0.044194173
        %v1580 = vmul.f32 %v1520, 0.044194173
        %v1581 = vmul.f32 %v1523, 0.044194173
        %v1582 = vmul.f32 %v1528, 0.044194173
        %v1583 = vmul.f32 %v1531, 0.044194173
        %v1584 = vmul.f32 %v1536, 0.044194173
        %v1585 = vmul.f32 %v1539, 0.044194173
        %v1586 = vmul.f32 %v1544, 0.044194173
        %v1587 = vmul.f32 %v1547, 0.044194173
        %v1588 = vmul.f32 %v1552, 0.044194173
        %v1589 = vmul.f32 %v1555, 0.044194173
        %v1590 = vpack.c.bf16 %v1559, %v1558
        %v1591 = vpack.c.bf16 %v1561, %v1560
        %v1592 = vpack.c.bf16 %v1563, %v1562
        %v1593 = vpack.c.bf16 %v1565, %v1564
        %v1594 = vpack.c.bf16 %v1567, %v1566
        %v1595 = vpack.c.bf16 %v1569, %v1568
        %v1596 = vpack.c.bf16 %v1571, %v1570
        %v1597 = vpack.c.bf16 %v1573, %v1572
        %v1598 = vpack.c.bf16 %v1575, %v1574
        %v1599 = vpack.c.bf16 %v1577, %v1576
        %v1600 = vpack.c.bf16 %v1579, %v1578
        %v1601 = vpack.c.bf16 %v1581, %v1580
        %v1602 = vpack.c.bf16 %v1583, %v1582
        %v1603 = vpack.c.bf16 %v1585, %v1584
        %v1604 = vpack.c.bf16 %v1587, %v1586
        %v1605 = vpack.c.bf16 %v1589, %v1588
        %1606 = vst [vmem:[#allocation3] sm:$0xff] %v1590
        %1607 = vst [vmem:[#allocation3 + $0x8] sm:$0xff] %v1591
        %1608 = vst [vmem:[#allocation3 + $0x10] sm:$0xff] %v1592
        %1609 = vst [vmem:[#allocation3 + $0x18] sm:$0xff] %v1593
        %1610 = vst [vmem:[#allocation3 + $0x20] sm:$0xff] %v1594
        %1611 = vst [vmem:[#allocation3 + $0x28] sm:$0xff] %v1595
        %1612 = vst [vmem:[#allocation3 + $0x30] sm:$0xff] %v1596
        %1613 = vst [vmem:[#allocation3 + $0x38] sm:$0xff] %v1597
        %1614 = vst [vmem:[#allocation3 + $0x40] sm:$0xff] %v1598
        %1615 = vst [vmem:[#allocation3 + $0x48] sm:$0xff] %v1599
        %1616 = vst [vmem:[#allocation3 + $0x50] sm:$0xff] %v1600
        %1617 = vst [vmem:[#allocation3 + $0x58] sm:$0xff] %v1601
        %1618 = vst [vmem:[#allocation3 + $0x60] sm:$0xff] %v1602
        %1619 = vst [vmem:[#allocation3 + $0x68] sm:$0xff] %v1603
        %1620 = vst [vmem:[#allocation3 + $0x70] sm:$0xff] %v1604
        %1621 = vst [vmem:[#allocation3 + $0x78] sm:$0xff] %v1605
        %v1622 = vld [vmem:[#allocation8 + $0x8] sm:$0xf]
        %v1623 = vld [vmem:[#allocation8 + $0x14] sm:$0xf]
        %v1624 = vld [vmem:[#allocation8 + $0x20] sm:$0xf]
        %v1625 = vld [vmem:[#allocation8 + $0x2c] sm:$0xf]
        %v1626 = vld [vmem:[#allocation8 + $0x38] sm:$0xf]
        %v1627 = vld [vmem:[#allocation8 + $0x44] sm:$0xf]
        %v1628 = vld [vmem:[#allocation8 + $0x50] sm:$0xf]
        %v1629 = vld [vmem:[#allocation8 + $0x5c] sm:$0xf]
        %v1630 = vld [vmem:[#allocation8 + $0x68] sm:$0xf]
        %v1631 = vld [vmem:[#allocation8 + $0x74] sm:$0xf]
        %v1632 = vld [vmem:[#allocation8 + $0x80] sm:$0xf]
        %v1633 = vld [vmem:[#allocation8 + $0x8c] sm:$0xf]
        %v1634 = vld [vmem:[#allocation8 + $0x98] sm:$0xf]
        %v1635 = vld [vmem:[#allocation8 + $0xa4] sm:$0xf]
        %v1636 = vld [vmem:[#allocation8 + $0xb0] sm:$0xf]
        %v1637 = vld [vmem:[#allocation8 + $0xbc] sm:$0xf]
        %v1638 = vld [vmem:[#allocation8 + $0xc8] sm:$0xf]
        %v1639 = vld [vmem:[#allocation8 + $0xd4] sm:$0xf]
        %v1640 = vld [vmem:[#allocation8 + $0xe0] sm:$0xf]
        %v1641 = vld [vmem:[#allocation8 + $0xec] sm:$0xf]
        %v1642 = vld [vmem:[#allocation8 + $0xf8] sm:$0xf]
        %v1643 = vld [vmem:[#allocation8 + $0x104] sm:$0xf]
        %v1644 = vld [vmem:[#allocation8 + $0x110] sm:$0xf]
        %v1645 = vld [vmem:[#allocation8 + $0x11c] sm:$0xf]
        %v1646 = vld [vmem:[#allocation8 + $0x128] sm:$0xf]
        %v1647 = vld [vmem:[#allocation8 + $0x134] sm:$0xf]
        %v1648 = vld [vmem:[#allocation8 + $0x140] sm:$0xf]
        %v1649 = vld [vmem:[#allocation8 + $0x14c] sm:$0xf]
        %v1650 = vld [vmem:[#allocation8 + $0x158] sm:$0xf]
        %v1651 = vld [vmem:[#allocation8 + $0x164] sm:$0xf]
        %v1652 = vld [vmem:[#allocation8 + $0x170] sm:$0xf]
        %v1653 = vld [vmem:[#allocation8 + $0x17c] sm:$0xf]
        %v1654 = vld [vmem:[#allocation8 + $0x188] sm:$0xf]
        %v1655 = vld [vmem:[#allocation8 + $0x194] sm:$0xf]
        %v1656 = vld [vmem:[#allocation8 + $0x1a0] sm:$0xf]
        %v1657 = vld [vmem:[#allocation8 + $0x1ac] sm:$0xf]
        %v1658 = vld [vmem:[#allocation8 + $0x1b8] sm:$0xf]
        %v1659 = vld [vmem:[#allocation8 + $0x1c4] sm:$0xf]
        %v1660 = vld [vmem:[#allocation8 + $0x1d0] sm:$0xf]
        %v1661 = vld [vmem:[#allocation8 + $0x1dc] sm:$0xf]
        %v1662 = vld [vmem:[#allocation8 + $0x1e8] sm:$0xf]
        %v1663 = vld [vmem:[#allocation8 + $0x1f4] sm:$0xf]
        %v1664 = vld [vmem:[#allocation8 + $0x200] sm:$0xf]
        %v1665 = vld [vmem:[#allocation8 + $0x20c] sm:$0xf]
        %v1666 = vld [vmem:[#allocation8 + $0x218] sm:$0xf]
        %v1667 = vld [vmem:[#allocation8 + $0x224] sm:$0xf]
        %v1668 = vld [vmem:[#allocation8 + $0x230] sm:$0xf]
        %v1669 = vld [vmem:[#allocation8 + $0x23c] sm:$0xf]
        %v1670 = vld [vmem:[#allocation8 + $0x248] sm:$0xf]
        %v1671 = vld [vmem:[#allocation8 + $0x254] sm:$0xf]
        %v1672 = vld [vmem:[#allocation8 + $0x260] sm:$0xf]
        %v1673 = vld [vmem:[#allocation8 + $0x26c] sm:$0xf]
        %v1674 = vld [vmem:[#allocation8 + $0x278] sm:$0xf]
        %v1675 = vld [vmem:[#allocation8 + $0x284] sm:$0xf]
        %v1676 = vld [vmem:[#allocation8 + $0x290] sm:$0xf]
        %v1677 = vld [vmem:[#allocation8 + $0x29c] sm:$0xf]
        %v1678 = vld [vmem:[#allocation8 + $0x2a8] sm:$0xf]
        %v1679 = vld [vmem:[#allocation8 + $0x2b4] sm:$0xf]
        %v1680 = vld [vmem:[#allocation8 + $0x2c0] sm:$0xf]
        %v1681 = vld [vmem:[#allocation8 + $0x2cc] sm:$0xf]
        %v1682 = vld [vmem:[#allocation8 + $0x2d8] sm:$0xf]
        %v1683 = vld [vmem:[#allocation8 + $0x2e4] sm:$0xf]
        %v1684 = vld [vmem:[#allocation8 + $0x2f0] sm:$0xf]
        %v1685 = vld [vmem:[#allocation8 + $0x2fc] sm:$0xf]
        %v1750 = vunpack.c.l.b16 %v1622
        %v1751 = vunpack.c.l.b16 %v1623
        %v1752 = vunpack.c.l.b16 %v1624
        %v1753 = vunpack.c.l.b16 %v1625
        %v1754 = vunpack.c.l.b16 %v1626
        %v1755 = vunpack.c.l.b16 %v1627
        %v1756 = vunpack.c.l.b16 %v1628
        %v1757 = vunpack.c.l.b16 %v1629
        %v1758 = vunpack.c.l.b16 %v1630
        %v1759 = vunpack.c.l.b16 %v1631
        %v1760 = vunpack.c.l.b16 %v1632
        %v1761 = vunpack.c.l.b16 %v1633
        %v1762 = vunpack.c.l.b16 %v1634
        %v1763 = vunpack.c.l.b16 %v1635
        %v1764 = vunpack.c.l.b16 %v1636
        %v1765 = vunpack.c.l.b16 %v1637
        %v1766 = vunpack.c.l.b16 %v1638
        %v1767 = vunpack.c.l.b16 %v1639
        %v1768 = vunpack.c.l.b16 %v1640
        %v1769 = vunpack.c.l.b16 %v1641
        %v1770 = vunpack.c.l.b16 %v1642
        %v1771 = vunpack.c.l.b16 %v1643
        %v1772 = vunpack.c.l.b16 %v1644
        %v1773 = vunpack.c.l.b16 %v1645
        %v1774 = vunpack.c.l.b16 %v1646
        %v1775 = vunpack.c.l.b16 %v1647
        %v1776 = vunpack.c.l.b16 %v1648
        %v1777 = vunpack.c.l.b16 %v1649
        %v1778 = vunpack.c.l.b16 %v1650
        %v1779 = vunpack.c.l.b16 %v1651
        %v1780 = vunpack.c.l.b16 %v1652
        %v1781 = vunpack.c.l.b16 %v1653
        %v1782 = vunpack.c.l.b16 %v1654
        %v1783 = vunpack.c.l.b16 %v1655
        %v1784 = vunpack.c.l.b16 %v1656
        %v1785 = vunpack.c.l.b16 %v1657
        %v1786 = vunpack.c.l.b16 %v1658
        %v1787 = vunpack.c.l.b16 %v1659
        %v1788 = vunpack.c.l.b16 %v1660
        %v1789 = vunpack.c.l.b16 %v1661
        %v1790 = vunpack.c.l.b16 %v1662
        %v1791 = vunpack.c.l.b16 %v1663
        %v1792 = vunpack.c.l.b16 %v1664
        %v1793 = vunpack.c.l.b16 %v1665
        %v1794 = vunpack.c.l.b16 %v1666
        %v1795 = vunpack.c.l.b16 %v1667
        %v1796 = vunpack.c.l.b16 %v1668
        %v1797 = vunpack.c.l.b16 %v1669
        %v1798 = vunpack.c.l.b16 %v1670
        %v1799 = vunpack.c.l.b16 %v1671
        %v1800 = vunpack.c.l.b16 %v1672
        %v1801 = vunpack.c.l.b16 %v1673
        %v1802 = vunpack.c.l.b16 %v1674
        %v1803 = vunpack.c.l.b16 %v1675
        %v1804 = vunpack.c.l.b16 %v1676
        %v1805 = vunpack.c.l.b16 %v1677
        %v1806 = vunpack.c.l.b16 %v1678
        %v1807 = vunpack.c.l.b16 %v1679
        %v1808 = vunpack.c.l.b16 %v1680
        %v1809 = vunpack.c.l.b16 %v1681
        %v1810 = vunpack.c.l.b16 %v1682
        %v1811 = vunpack.c.l.b16 %v1683
        %v1812 = vunpack.c.l.b16 %v1684
        %v1813 = vunpack.c.l.b16 %v1685
        %v1814 = vpack.c.b16 %v1751, %v1750
        %v1815 = vpack.c.b16 %v1753, %v1752
        %v1816 = vpack.c.b16 %v1755, %v1754
        %v1817 = vpack.c.b16 %v1757, %v1756
        %v1818 = vpack.c.b16 %v1759, %v1758
        %v1819 = vpack.c.b16 %v1761, %v1760
        %v1820 = vpack.c.b16 %v1763, %v1762
        %v1821 = vpack.c.b16 %v1765, %v1764
        %v1822 = vpack.c.b16 %v1767, %v1766
        %v1823 = vpack.c.b16 %v1769, %v1768
        %v1824 = vpack.c.b16 %v1771, %v1770
        %v1825 = vpack.c.b16 %v1773, %v1772
        %v1826 = vpack.c.b16 %v1775, %v1774
        %v1827 = vpack.c.b16 %v1777, %v1776
        %v1828 = vpack.c.b16 %v1779, %v1778
        %v1829 = vpack.c.b16 %v1781, %v1780
        %v1830 = vpack.c.b16 %v1783, %v1782
        %v1831 = vpack.c.b16 %v1785, %v1784
        %v1832 = vpack.c.b16 %v1787, %v1786
        %v1833 = vpack.c.b16 %v1789, %v1788
        %v1834 = vpack.c.b16 %v1791, %v1790
        %v1835 = vpack.c.b16 %v1793, %v1792
        %v1836 = vpack.c.b16 %v1795, %v1794
        %v1837 = vpack.c.b16 %v1797, %v1796
        %v1838 = vpack.c.b16 %v1799, %v1798
        %v1839 = vpack.c.b16 %v1801, %v1800
        %v1840 = vpack.c.b16 %v1803, %v1802
        %v1841 = vpack.c.b16 %v1805, %v1804
        %v1842 = vpack.c.b16 %v1807, %v1806
        %v1843 = vpack.c.b16 %v1809, %v1808
        %v1844 = vpack.c.b16 %v1811, %v1810
        %v1845 = vpack.c.b16 %v1813, %v1812
        %1878 = vmatprep.subr.bf16.mxu0 0
        %1879 = vmatpush1.bf16.msra.mxu0 %v1814
        %1880 = vmatprep.subr.bf16.mxu0 0
        %1881 = vmatpush1.bf16.msra.mxu0 %v1815
        %1882 = vmatprep.subr.bf16.mxu0 0
        %1883 = vmatpush1.bf16.msra.mxu0 %v1816
        %1884 = vmatprep.subr.bf16.mxu0 0
        %1885 = vmatpush1.bf16.msra.mxu0 %v1817
        %1886 = vmatprep.subr.bf16.mxu0 0
        %1887 = vmatpush1.bf16.msra.mxu0 %v1818
        %1888 = vmatprep.subr.bf16.mxu0 0
        %1889 = vmatpush1.bf16.msra.mxu0 %v1819
        %1890 = vmatprep.subr.bf16.mxu0 0
        %1891 = vmatpush1.bf16.msra.mxu0 %v1820
        %1892 = vmatprep.subr.bf16.mxu0 0
        %1893 = vmatpush1.bf16.msra.mxu0 %v1821
        %1894 = vmatprep.subr.bf16.mxu0 0
        %1895 = vmatpush1.bf16.msra.mxu0 %v1822
        %1896 = vmatprep.subr.bf16.mxu0 0
        %1897 = vmatpush1.bf16.msra.mxu0 %v1823
        %1898 = vmatprep.subr.bf16.mxu0 0
        %1899 = vmatpush1.bf16.msra.mxu0 %v1824
        %1900 = vmatprep.subr.bf16.mxu0 0
        %1901 = vmatpush1.bf16.msra.mxu0 %v1825
        %1902 = vmatprep.subr.bf16.mxu0 0
        %1903 = vmatpush1.bf16.msra.mxu0 %v1826
        %1904 = vmatprep.subr.bf16.mxu0 0
        %1905 = vmatpush1.bf16.msra.mxu0 %v1827
        %1906 = vmatprep.subr.bf16.mxu0 0
        %1907 = vmatpush1.bf16.msra.mxu0 %v1828
        %1908 = vmatprep.subr.bf16.mxu0 0
        %1909 = vmatpush1.bf16.msra.mxu0 %v1829
        %1910 = vmatprep.mubr.bf16.mxu0 %v307
        %1911 = vmatmul.mubr.bf16.gmra.mrb[0].mxu0 %v306
        %v1912 = vpop.f32.mrb[0].mxu0
        %v1913 = vadd.f32 0.0, %v1912
        %v1914 = vpop.f32.mrb[0].mxu0
        %v1915 = vpop.f32.mrb[0].mxu0
        %v1916 = vadd.f32 0.0, %v1915
        %v1917 = vpop.f32.mrb[0].mxu0
        %1918 = vmatprep.mubr.bf16.mxu0 %v311
        %1919 = vmatmul.mubr.bf16.gmra.mrb[0].mxu0 %v310
        %v1920 = vpop.f32.mrb[0].mxu0
        %v1921 = vadd.f32 0.0, %v1920
        %v1922 = vpop.f32.mrb[0].mxu0
        %v1923 = vpop.f32.mrb[0].mxu0
        %v1924 = vadd.f32 0.0, %v1923
        %v1925 = vpop.f32.mrb[0].mxu0
        %1926 = vmatprep.mubr.bf16.mxu0 %v315
        %1927 = vmatmul.mubr.bf16.gmra.mrb[0].mxu0 %v314
        %v1928 = vpop.f32.mrb[0].mxu0
        %v1929 = vadd.f32 0.0, %v1928
        %v1930 = vpop.f32.mrb[0].mxu0
        %v1931 = vpop.f32.mrb[0].mxu0
        %v1932 = vadd.f32 0.0, %v1931
        %v1933 = vpop.f32.mrb[0].mxu0
        %1934 = vmatprep.mubr.bf16.mxu0 %v319
        %1935 = vmatmul.mubr.bf16.gmra.mrb[0].mxu0 %v318
        %v1936 = vpop.f32.mrb[0].mxu0
        %v1937 = vadd.f32 0.0, %v1936
        %v1938 = vpop.f32.mrb[0].mxu0
        %v1939 = vpop.f32.mrb[0].mxu0
        %v1940 = vadd.f32 0.0, %v1939
        %v1941 = vpop.f32.mrb[0].mxu0
        %1942 = vmatprep.mubr.bf16.mxu0 %v323
        %1943 = vmatmul.mubr.bf16.gmra.mrb[0].mxu0 %v322
        %v1944 = vpop.f32.mrb[0].mxu0
        %v1945 = vadd.f32 0.0, %v1944
        %v1946 = vpop.f32.mrb[0].mxu0
        %v1947 = vpop.f32.mrb[0].mxu0
        %v1948 = vadd.f32 0.0, %v1947
        %v1949 = vpop.f32.mrb[0].mxu0
        %1950 = vmatprep.mubr.bf16.mxu0 %v327
        %1951 = vmatmul.mubr.bf16.gmra.mrb[0].mxu0 %v326
        %v1952 = vpop.f32.mrb[0].mxu0
        %v1953 = vadd.f32 0.0, %v1952
        %v1954 = vpop.f32.mrb[0].mxu0
        %v1955 = vpop.f32.mrb[0].mxu0
        %v1956 = vadd.f32 0.0, %v1955
        %v1957 = vpop.f32.mrb[0].mxu0
        %1958 = vmatprep.mubr.bf16.mxu0 %v331
        %1959 = vmatmul.mubr.bf16.gmra.mrb[0].mxu0 %v330
        %v1960 = vpop.f32.mrb[0].mxu0
        %v1961 = vadd.f32 0.0, %v1960
        %v1962 = vpop.f32.mrb[0].mxu0
        %v1963 = vpop.f32.mrb[0].mxu0
        %v1964 = vadd.f32 0.0, %v1963
        %v1965 = vpop.f32.mrb[0].mxu0
        %1966 = vmatprep.mubr.bf16.mxu0 %v335
        %1967 = vmatmul.mubr.bf16.gmra.mrb[0].mxu0 %v334
        %v1968 = vpop.f32.mrb[0].mxu0
        %v1969 = vadd.f32 0.0, %v1968
        %v1970 = vpop.f32.mrb[0].mxu0
        %v1971 = vpop.f32.mrb[0].mxu0
        %v1972 = vadd.f32 0.0, %v1971
        %v1973 = vpop.f32.mrb[0].mxu0
        %1974 = vmatprep.mubr.bf16.mxu0 %v339
        %1975 = vmatmul.mubr.bf16.gmra.mrb[0].mxu0 %v338
        %v1976 = vpop.f32.mrb[0].mxu0
        %v1977 = vadd.f32 0.0, %v1976
        %v1978 = vpop.f32.mrb[0].mxu0
        %v1979 = vpop.f32.mrb[0].mxu0
        %v1980 = vadd.f32 0.0, %v1979
        %v1981 = vpop.f32.mrb[0].mxu0
        %1982 = vmatprep.mubr.bf16.mxu0 %v343
        %1983 = vmatmul.mubr.bf16.gmra.mrb[0].mxu0 %v342
        %v1984 = vpop.f32.mrb[0].mxu0
        %v1985 = vadd.f32 0.0, %v1984
        %v1986 = vpop.f32.mrb[0].mxu0
        %v1987 = vpop.f32.mrb[0].mxu0
        %v1988 = vadd.f32 0.0, %v1987
        %v1989 = vpop.f32.mrb[0].mxu0
        %1990 = vmatprep.mubr.bf16.mxu0 %v347
        %1991 = vmatmul.mubr.bf16.gmra.mrb[0].mxu0 %v346
        %v1992 = vpop.f32.mrb[0].mxu0
        %v1993 = vadd.f32 0.0, %v1992
        %v1994 = vpop.f32.mrb[0].mxu0
        %v1995 = vpop.f32.mrb[0].mxu0
        %v1996 = vadd.f32 0.0, %v1995
        %v1997 = vpop.f32.mrb[0].mxu0
        %1998 = vmatprep.mubr.bf16.mxu0 %v351
        %1999 = vmatmul.mubr.bf16.gmra.mrb[0].mxu0 %v350
        %v2000 = vpop.f32.mrb[0].mxu0
        %v2001 = vadd.f32 0.0, %v2000
        %v2002 = vpop.f32.mrb[0].mxu0
        %v2003 = vpop.f32.mrb[0].mxu0
        %v2004 = vadd.f32 0.0, %v2003
        %v2005 = vpop.f32.mrb[0].mxu0
        %2006 = vmatprep.mubr.bf16.mxu0 %v355
        %2007 = vmatmul.mubr.bf16.gmra.mrb[0].mxu0 %v354
        %v2008 = vpop.f32.mrb[0].mxu0
        %v2009 = vadd.f32 0.0, %v2008
        %v2010 = vpop.f32.mrb[0].mxu0
        %v2011 = vpop.f32.mrb[0].mxu0
        %v2012 = vadd.f32 0.0, %v2011
        %v2013 = vpop.f32.mrb[0].mxu0
        %2014 = vmatprep.mubr.bf16.mxu0 %v359
        %2015 = vmatmul.mubr.bf16.gmra.mrb[0].mxu0 %v358
        %v2016 = vpop.f32.mrb[0].mxu0
        %v2017 = vadd.f32 0.0, %v2016
        %v2018 = vpop.f32.mrb[0].mxu0
        %v2019 = vpop.f32.mrb[0].mxu0
        %v2020 = vadd.f32 0.0, %v2019
        %v2021 = vpop.f32.mrb[0].mxu0
        %2022 = vmatprep.mubr.bf16.mxu0 %v363
        %2023 = vmatmul.mubr.bf16.gmra.mrb[0].mxu0 %v362
        %v2024 = vpop.f32.mrb[0].mxu0
        %v2025 = vadd.f32 0.0, %v2024
        %v2026 = vpop.f32.mrb[0].mxu0
        %v2027 = vpop.f32.mrb[0].mxu0
        %v2028 = vadd.f32 0.0, %v2027
        %v2029 = vpop.f32.mrb[0].mxu0
        %2030 = vmatprep.mubr.bf16.mxu0 %v367
        %2031 = vmatmul.mubr.bf16.gmra.mrb[0].mxu0 %v366
        %v2032 = vpop.f32.mrb[0].mxu0
        %v2033 = vadd.f32 0.0, %v2032
        %v2034 = vpop.f32.mrb[0].mxu0
        %v2035 = vpop.f32.mrb[0].mxu0
        %v2036 = vadd.f32 0.0, %v2035
        %v2037 = vpop.f32.mrb[0].mxu0
        %2038 = vdwg.mxu0
        %2039 = vmatprep.subr.bf16.mxu0 0
        %2040 = vmatpush1.bf16.msra.mxu0 %v1830
        %2041 = vmatprep.subr.bf16.mxu0 0
        %2042 = vmatpush1.bf16.msra.mxu0 %v1831
        %2043 = vmatprep.subr.bf16.mxu0 0
        %2044 = vmatpush1.bf16.msra.mxu0 %v1832
        %2045 = vmatprep.subr.bf16.mxu0 0
        %2046 = vmatpush1.bf16.msra.mxu0 %v1833
        %2047 = vmatprep.subr.bf16.mxu0 0
        %2048 = vmatpush1.bf16.msra.mxu0 %v1834
        %2049 = vmatprep.subr.bf16.mxu0 0
        %2050 = vmatpush1.bf16.msra.mxu0 %v1835
        %2051 = vmatprep.subr.bf16.mxu0 0
        %2052 = vmatpush1.bf16.msra.mxu0 %v1836
        %2053 = vmatprep.subr.bf16.mxu0 0
        %2054 = vmatpush1.bf16.msra.mxu0 %v1837
        %2055 = vmatprep.subr.bf16.mxu0 0
        %2056 = vmatpush1.bf16.msra.mxu0 %v1838
        %2057 = vmatprep.subr.bf16.mxu0 0
        %2058 = vmatpush1.bf16.msra.mxu0 %v1839
        %2059 = vmatprep.subr.bf16.mxu0 0
        %2060 = vmatpush1.bf16.msra.mxu0 %v1840
        %2061 = vmatprep.subr.bf16.mxu0 0
        %2062 = vmatpush1.bf16.msra.mxu0 %v1841
        %2063 = vmatprep.subr.bf16.mxu0 0
        %2064 = vmatpush1.bf16.msra.mxu0 %v1842
        %2065 = vmatprep.subr.bf16.mxu0 0
        %2066 = vmatpush1.bf16.msra.mxu0 %v1843
        %2067 = vmatprep.subr.bf16.mxu0 0
        %2068 = vmatpush1.bf16.msra.mxu0 %v1844
        %2069 = vmatprep.subr.bf16.mxu0 0
        %2070 = vmatpush1.bf16.msra.mxu0 %v1845
        %2071 = vmatprep.mubr.bf16.mxu0 %v309
        %2072 = vmatmul.mubr.bf16.gmra.mrb[0].mxu0 %v308
        %v2073 = vpop.f32.mrb[0].mxu0
        %v2074 = vadd.f32 %v1913, %v2073
        %v2075 = vpop.f32.mrb[0].mxu0
        %v2076 = vpop.f32.mrb[0].mxu0
        %v2077 = vadd.f32 %v1916, %v2076
        %v2078 = vpop.f32.mrb[0].mxu0
        %2079 = vmatprep.mubr.bf16.mxu0 %v313
        %2080 = vmatmul.mubr.bf16.gmra.mrb[0].mxu0 %v312
        %v2081 = vpop.f32.mrb[0].mxu0
        %v2082 = vadd.f32 %v1921, %v2081
        %v2083 = vpop.f32.mrb[0].mxu0
        %v2084 = vpop.f32.mrb[0].mxu0
        %v2085 = vadd.f32 %v1924, %v2084
        %v2086 = vpop.f32.mrb[0].mxu0
        %2087 = vmatprep.mubr.bf16.mxu0 %v317
        %2088 = vmatmul.mubr.bf16.gmra.mrb[0].mxu0 %v316
        %v2089 = vpop.f32.mrb[0].mxu0
        %v2090 = vadd.f32 %v1929, %v2089
        %v2091 = vpop.f32.mrb[0].mxu0
        %v2092 = vpop.f32.mrb[0].mxu0
        %v2093 = vadd.f32 %v1932, %v2092
        %v2094 = vpop.f32.mrb[0].mxu0
        %2095 = vmatprep.mubr.bf16.mxu0 %v321
        %2096 = vmatmul.mubr.bf16.gmra.mrb[0].mxu0 %v320
        %v2097 = vpop.f32.mrb[0].mxu0
        %v2098 = vadd.f32 %v1937, %v2097
        %v2099 = vpop.f32.mrb[0].mxu0
        %v2100 = vpop.f32.mrb[0].mxu0
        %v2101 = vadd.f32 %v1940, %v2100
        %v2102 = vpop.f32.mrb[0].mxu0
        %2103 = vmatprep.mubr.bf16.mxu0 %v325
        %2104 = vmatmul.mubr.bf16.gmra.mrb[0].mxu0 %v324
        %v2105 = vpop.f32.mrb[0].mxu0
        %v2106 = vadd.f32 %v1945, %v2105
        %v2107 = vpop.f32.mrb[0].mxu0
        %v2108 = vpop.f32.mrb[0].mxu0
        %v2109 = vadd.f32 %v1948, %v2108
        %v2110 = vpop.f32.mrb[0].mxu0
        %2111 = vmatprep.mubr.bf16.mxu0 %v329
        %2112 = vmatmul.mubr.bf16.gmra.mrb[0].mxu0 %v328
        %v2113 = vpop.f32.mrb[0].mxu0
        %v2114 = vadd.f32 %v1953, %v2113
        %v2115 = vpop.f32.mrb[0].mxu0
        %v2116 = vpop.f32.mrb[0].mxu0
        %v2117 = vadd.f32 %v1956, %v2116
        %v2118 = vpop.f32.mrb[0].mxu0
        %2119 = vmatprep.mubr.bf16.mxu0 %v333
        %2120 = vmatmul.mubr.bf16.gmra.mrb[0].mxu0 %v332
        %v2121 = vpop.f32.mrb[0].mxu0
        %v2122 = vadd.f32 %v1961, %v2121
        %v2123 = vpop.f32.mrb[0].mxu0
        %v2124 = vpop.f32.mrb[0].mxu0
        %v2125 = vadd.f32 %v1964, %v2124
        %v2126 = vpop.f32.mrb[0].mxu0
        %2127 = vmatprep.mubr.bf16.mxu0 %v337
        %2128 = vmatmul.mubr.bf16.gmra.mrb[0].mxu0 %v336
        %v2129 = vpop.f32.mrb[0].mxu0
        %v2130 = vadd.f32 %v1969, %v2129
        %v2131 = vpop.f32.mrb[0].mxu0
        %v2132 = vpop.f32.mrb[0].mxu0
        %v2133 = vadd.f32 %v1972, %v2132
        %v2134 = vpop.f32.mrb[0].mxu0
        %2135 = vmatprep.mubr.bf16.mxu0 %v341
        %2136 = vmatmul.mubr.bf16.gmra.mrb[0].mxu0 %v340
        %v2137 = vpop.f32.mrb[0].mxu0
        %v2138 = vadd.f32 %v1977, %v2137
        %v2139 = vpop.f32.mrb[0].mxu0
        %v2140 = vpop.f32.mrb[0].mxu0
        %v2141 = vadd.f32 %v1980, %v2140
        %v2142 = vpop.f32.mrb[0].mxu0
        %2143 = vmatprep.mubr.bf16.mxu0 %v345
        %2144 = vmatmul.mubr.bf16.gmra.mrb[0].mxu0 %v344
        %v2145 = vpop.f32.mrb[0].mxu0
        %v2146 = vadd.f32 %v1985, %v2145
        %v2147 = vpop.f32.mrb[0].mxu0
        %v2148 = vpop.f32.mrb[0].mxu0
        %v2149 = vadd.f32 %v1988, %v2148
        %v2150 = vpop.f32.mrb[0].mxu0
        %2151 = vmatprep.mubr.bf16.mxu0 %v349
        %2152 = vmatmul.mubr.bf16.gmra.mrb[0].mxu0 %v348
        %v2153 = vpop.f32.mrb[0].mxu0
        %v2154 = vadd.f32 %v1993, %v2153
        %v2155 = vpop.f32.mrb[0].mxu0
        %v2156 = vpop.f32.mrb[0].mxu0
        %v2157 = vadd.f32 %v1996, %v2156
        %v2158 = vpop.f32.mrb[0].mxu0
        %2159 = vmatprep.mubr.bf16.mxu0 %v353
        %2160 = vmatmul.mubr.bf16.gmra.mrb[0].mxu0 %v352
        %v2161 = vpop.f32.mrb[0].mxu0
        %v2162 = vadd.f32 %v2001, %v2161
        %v2163 = vpop.f32.mrb[0].mxu0
        %v2164 = vpop.f32.mrb[0].mxu0
        %v2165 = vadd.f32 %v2004, %v2164
        %v2166 = vpop.f32.mrb[0].mxu0
        %2167 = vmatprep.mubr.bf16.mxu0 %v357
        %2168 = vmatmul.mubr.bf16.gmra.mrb[0].mxu0 %v356
        %v2169 = vpop.f32.mrb[0].mxu0
        %v2170 = vadd.f32 %v2009, %v2169
        %v2171 = vpop.f32.mrb[0].mxu0
        %v2172 = vpop.f32.mrb[0].mxu0
        %v2173 = vadd.f32 %v2012, %v2172
        %v2174 = vpop.f32.mrb[0].mxu0
        %2175 = vmatprep.mubr.bf16.mxu0 %v361
        %2176 = vmatmul.mubr.bf16.gmra.mrb[0].mxu0 %v360
        %v2177 = vpop.f32.mrb[0].mxu0
        %v2178 = vadd.f32 %v2017, %v2177
        %v2179 = vpop.f32.mrb[0].mxu0
        %v2180 = vpop.f32.mrb[0].mxu0
        %v2181 = vadd.f32 %v2020, %v2180
        %v2182 = vpop.f32.mrb[0].mxu0
        %2183 = vmatprep.mubr.bf16.mxu0 %v365
        %2184 = vmatmul.mubr.bf16.gmra.mrb[0].mxu0 %v364
        %v2185 = vpop.f32.mrb[0].mxu0
        %v2186 = vadd.f32 %v2025, %v2185
        %v2187 = vpop.f32.mrb[0].mxu0
        %v2188 = vpop.f32.mrb[0].mxu0
        %v2189 = vadd.f32 %v2028, %v2188
        %v2190 = vpop.f32.mrb[0].mxu0
        %2191 = vmatprep.mubr.bf16.mxu0 %v369
        %2192 = vmatmul.mubr.bf16.gmra.mrb[0].mxu0 %v368
        %v2193 = vpop.f32.mrb[0].mxu0
        %v2194 = vadd.f32 %v2033, %v2193
        %v2195 = vpop.f32.mrb[0].mxu0
        %v2196 = vpop.f32.mrb[0].mxu0
        %v2197 = vadd.f32 %v2036, %v2196
        %v2198 = vpop.f32.mrb[0].mxu0
        %2199 = vdwg.mxu0
        %v2200 = vpack.c.bf16 %v2077, %v2074
        %v2201 = vpack.c.bf16 %v2085, %v2082
        %v2202 = vpack.c.bf16 %v2093, %v2090
        %v2203 = vpack.c.bf16 %v2101, %v2098
        %v2204 = vpack.c.bf16 %v2109, %v2106
        %v2205 = vpack.c.bf16 %v2117, %v2114
        %v2206 = vpack.c.bf16 %v2125, %v2122
        %v2207 = vpack.c.bf16 %v2133, %v2130
        %v2208 = vpack.c.bf16 %v2141, %v2138
        %v2209 = vpack.c.bf16 %v2149, %v2146
        %v2210 = vpack.c.bf16 %v2157, %v2154
        %v2211 = vpack.c.bf16 %v2165, %v2162
        %v2212 = vpack.c.bf16 %v2173, %v2170
        %v2213 = vpack.c.bf16 %v2181, %v2178
        %v2214 = vpack.c.bf16 %v2189, %v2186
        %v2215 = vpack.c.bf16 %v2197, %v2194
        %2216 = vst [vmem:[#allocation4] sm:$0xff] %v2200
        %2217 = vst [vmem:[#allocation4 + $0x8] sm:$0xff] %v2201
        %2218 = vst [vmem:[#allocation4 + $0x10] sm:$0xff] %v2202
        %2219 = vst [vmem:[#allocation4 + $0x18] sm:$0xff] %v2203
        %2220 = vst [vmem:[#allocation4 + $0x20] sm:$0xff] %v2204
        %2221 = vst [vmem:[#allocation4 + $0x28] sm:$0xff] %v2205
        %2222 = vst [vmem:[#allocation4 + $0x30] sm:$0xff] %v2206
        %2223 = vst [vmem:[#allocation4 + $0x38] sm:$0xff] %v2207
        %2224 = vst [vmem:[#allocation4 + $0x40] sm:$0xff] %v2208
        %2225 = vst [vmem:[#allocation4 + $0x48] sm:$0xff] %v2209
        %2226 = vst [vmem:[#allocation4 + $0x50] sm:$0xff] %v2210
        %2227 = vst [vmem:[#allocation4 + $0x58] sm:$0xff] %v2211
        %2228 = vst [vmem:[#allocation4 + $0x60] sm:$0xff] %v2212
        %2229 = vst [vmem:[#allocation4 + $0x68] sm:$0xff] %v2213
        %2230 = vst [vmem:[#allocation4 + $0x70] sm:$0xff] %v2214
        %2231 = vst [vmem:[#allocation4 + $0x78] sm:$0xff] %v2215
        %v2232 = vlaneseq
        %v2233 = vshrl.u32 %v2232, 7
        %v2234 = vadd.s32 %v2233, 8
        %v2235 = vadd.s32 %v2233, 16
        %v2236 = vadd.s32 %v2233, 24
        %v2237 = vadd.s32 %v2233, 32
        %v2238 = vadd.s32 %v2233, 40
        %v2239 = vadd.s32 %v2233, 48
        %v2240 = vadd.s32 %v2233, 56
        %v2241 = vadd.s32 %v2233, 64
        %v2242 = vadd.s32 %v2233, 72
        %v2243 = vadd.s32 %v2233, 80
        %v2244 = vadd.s32 %v2233, 88
        %v2245 = vadd.s32 %v2233, 96
        %v2246 = vadd.s32 %v2233, 104
        %v2247 = vadd.s32 %v2233, 112
        %v2248 = vadd.s32 %v2233, 120
        %v2249 = vlaneseq
        %v2250 = vand.u32 %v2249, 127
        %vm2251 = vcmp.le.s32.totalorder %v2250, %v2233
        %vm2252 = vcmp.le.s32.totalorder %v2250, %v2234
        %vm2253 = vcmp.le.s32.totalorder %v2250, %v2235
        %vm2254 = vcmp.le.s32.totalorder %v2250, %v2236
        %vm2255 = vcmp.le.s32.totalorder %v2250, %v2237
        %vm2256 = vcmp.le.s32.totalorder %v2250, %v2238
        %vm2257 = vcmp.le.s32.totalorder %v2250, %v2239
        %vm2258 = vcmp.le.s32.totalorder %v2250, %v2240
        %vm2259 = vcmp.le.s32.totalorder %v2250, %v2241
        %vm2260 = vcmp.le.s32.totalorder %v2250, %v2242
        %vm2261 = vcmp.le.s32.totalorder %v2250, %v2243
        %vm2262 = vcmp.le.s32.totalorder %v2250, %v2244
        %vm2263 = vcmp.le.s32.totalorder %v2250, %v2245
        %vm2264 = vcmp.le.s32.totalorder %v2250, %v2246
        %vm2265 = vcmp.le.s32.totalorder %v2250, %v2247
        %vm2266 = vcmp.le.s32.totalorder %v2250, %v2248
        %v2267 = vld [vmem:[#allocation3] sm:$0xff]
        %v2268 = vld [vmem:[#allocation3 + $0x8] sm:$0xff]
        %v2269 = vld [vmem:[#allocation3 + $0x10] sm:$0xff]
        %v2270 = vld [vmem:[#allocation3 + $0x18] sm:$0xff]
        %v2271 = vld [vmem:[#allocation3 + $0x20] sm:$0xff]
        %v2272 = vld [vmem:[#allocation3 + $0x28] sm:$0xff]
        %v2273 = vld [vmem:[#allocation3 + $0x30] sm:$0xff]
        %v2274 = vld [vmem:[#allocation3 + $0x38] sm:$0xff]
        %v2275 = vld [vmem:[#allocation2] sm:$0xff]
        %v2276 = vld [vmem:[#allocation2 + $0x8] sm:$0xff]
        %v2277 = vld [vmem:[#allocation2 + $0x10] sm:$0xff]
        %v2278 = vld [vmem:[#allocation2 + $0x18] sm:$0xff]
        %v2279 = vld [vmem:[#allocation2 + $0x20] sm:$0xff]
        %v2280 = vld [vmem:[#allocation2 + $0x28] sm:$0xff]
        %v2281 = vld [vmem:[#allocation2 + $0x30] sm:$0xff]
        %v2282 = vld [vmem:[#allocation2 + $0x38] sm:$0xff]
        %2283 = vmatprep.subr.bf16.mxu0 0
        %2284 = vmatpush1.bf16.xpose.msra.mxu0 %v2275
        %2285 = vmatprep.subr.bf16.mxu0 0
        %2286 = vmatpush1.bf16.xpose.msra.mxu0 %v2276
        %2287 = vmatprep.subr.bf16.mxu0 0
        %2288 = vmatpush1.bf16.xpose.msra.mxu0 %v2277
        %2289 = vmatprep.subr.bf16.mxu0 0
        %2290 = vmatpush1.bf16.xpose.msra.mxu0 %v2278
        %2291 = vmatprep.subr.bf16.mxu0 0
        %2292 = vmatpush1.bf16.xpose.msra.mxu0 %v2279
        %2293 = vmatprep.subr.bf16.mxu0 0
        %2294 = vmatpush1.bf16.xpose.msra.mxu0 %v2280
        %2295 = vmatprep.subr.bf16.mxu0 0
        %2296 = vmatpush1.bf16.xpose.msra.mxu0 %v2281
        %2297 = vmatprep.subr.bf16.mxu0 0
        %2298 = vmatpush1.bf16.xpose.msra.mxu0 %v2282
        %2299 = vmatprep.subr.bf16.mxu0 0
        %2300 = vmatpush1.bf16.xpose.msra.mxu0 0
        %2301 = vmatprep.subr.bf16.mxu0 0
        %2302 = vmatpush1.bf16.xpose.msra.mxu0 0
        %2303 = vmatprep.subr.bf16.mxu0 0
        %2304 = vmatpush1.bf16.xpose.msra.mxu0 0
        %2305 = vmatprep.subr.bf16.mxu0 0
        %2306 = vmatpush1.bf16.xpose.msra.mxu0 0
        %2307 = vmatprep.subr.bf16.mxu0 0
        %2308 = vmatpush1.bf16.xpose.msra.mxu0 0
        %2309 = vmatprep.subr.bf16.mxu0 0
        %2310 = vmatpush1.bf16.xpose.msra.mxu0 0
        %2311 = vmatprep.subr.bf16.mxu0 0
        %2312 = vmatpush1.bf16.xpose.msra.mxu0 0
        %2313 = vmatprep.subr.bf16.mxu0 0
        %2314 = vmatpush1.bf16.xpose.msra.mxu0 0
        %2315 = vmatprep.mubr.bf16.mxu0 0
        %2316 = vmatmul.mubr.bf16.gmra.mrb[0].mxu0 %v2267
        %v2317 = vpop.f32.mrb[0].mxu0
        %v2318 = vadd.f32 0.0, %v2317
        %v2319 = vpop.f32.mrb[0].mxu0
        %v2320 = vpop.f32.mrb[0].mxu0
        %v2321 = vadd.f32 0.0, %v2320
        %v2322 = vpop.f32.mrb[0].mxu0
        %2323 = vmatprep.mubr.bf16.mxu0 0
        %2324 = vmatmul.mubr.bf16.gmra.mrb[0].mxu0 %v2268
        %v2325 = vpop.f32.mrb[0].mxu0
        %v2326 = vadd.f32 0.0, %v2325
        %v2327 = vpop.f32.mrb[0].mxu0
        %v2328 = vpop.f32.mrb[0].mxu0
        %v2329 = vadd.f32 0.0, %v2328
        %v2330 = vpop.f32.mrb[0].mxu0
        %2331 = vmatprep.mubr.bf16.mxu0 0
        %2332 = vmatmul.mubr.bf16.gmra.mrb[0].mxu0 %v2269
        %v2333 = vpop.f32.mrb[0].mxu0
        %v2334 = vadd.f32 0.0, %v2333
        %v2335 = vpop.f32.mrb[0].mxu0
        %v2336 = vpop.f32.mrb[0].mxu0
        %v2337 = vadd.f32 0.0, %v2336
        %v2338 = vpop.f32.mrb[0].mxu0
        %2339 = vmatprep.mubr.bf16.mxu0 0
        %2340 = vmatmul.mubr.bf16.gmra.mrb[0].mxu0 %v2270
        %v2341 = vpop.f32.mrb[0].mxu0
        %v2342 = vadd.f32 0.0, %v2341
        %v2343 = vpop.f32.mrb[0].mxu0
        %v2344 = vpop.f32.mrb[0].mxu0
        %v2345 = vadd.f32 0.0, %v2344
        %v2346 = vpop.f32.mrb[0].mxu0
        %2347 = vmatprep.mubr.bf16.mxu0 0
        %2348 = vmatmul.mubr.bf16.gmra.mrb[0].mxu0 %v2271
        %v2349 = vpop.f32.mrb[0].mxu0
        %v2350 = vadd.f32 0.0, %v2349
        %v2351 = vpop.f32.mrb[0].mxu0
        %v2352 = vpop.f32.mrb[0].mxu0
        %v2353 = vadd.f32 0.0, %v2352
        %v2354 = vpop.f32.mrb[0].mxu0
        %2355 = vmatprep.mubr.bf16.mxu0 0
        %2356 = vmatmul.mubr.bf16.gmra.mrb[0].mxu0 %v2272
        %v2357 = vpop.f32.mrb[0].mxu0
        %v2358 = vadd.f32 0.0, %v2357
        %v2359 = vpop.f32.mrb[0].mxu0
        %v2360 = vpop.f32.mrb[0].mxu0
        %v2361 = vadd.f32 0.0, %v2360
        %v2362 = vpop.f32.mrb[0].mxu0
        %2363 = vmatprep.mubr.bf16.mxu0 0
        %2364 = vmatmul.mubr.bf16.gmra.mrb[0].mxu0 %v2273
        %v2365 = vpop.f32.mrb[0].mxu0
        %v2366 = vadd.f32 0.0, %v2365
        %v2367 = vpop.f32.mrb[0].mxu0
        %v2368 = vpop.f32.mrb[0].mxu0
        %v2369 = vadd.f32 0.0, %v2368
        %v2370 = vpop.f32.mrb[0].mxu0
        %2371 = vmatprep.mubr.bf16.mxu0 0
        %2372 = vmatmul.mubr.bf16.gmra.mrb[0].mxu0 %v2274
        %v2373 = vpop.f32.mrb[0].mxu0
        %v2374 = vadd.f32 0.0, %v2373
        %v2375 = vpop.f32.mrb[0].mxu0
        %v2376 = vpop.f32.mrb[0].mxu0
        %v2377 = vadd.f32 0.0, %v2376
        %v2378 = vpop.f32.mrb[0].mxu0
        %2379 = vdwg.mxu0
        %v2380 = vsel %vm2251, %v2318, -1e+30
        %v2381 = vsel %vm2252, %v2321, -1e+30
        %v2382 = vsel %vm2253, %v2326, -1e+30
        %v2383 = vsel %vm2254, %v2329, -1e+30
        %v2384 = vsel %vm2255, %v2334, -1e+30
        %v2385 = vsel %vm2256, %v2337, -1e+30
        %v2386 = vsel %vm2257, %v2342, -1e+30
        %v2387 = vsel %vm2258, %v2345, -1e+30
        %v2388 = vsel %vm2259, %v2350, -1e+30
        %v2389 = vsel %vm2260, %v2353, -1e+30
        %v2390 = vsel %vm2261, %v2358, -1e+30
        %v2391 = vsel %vm2262, %v2361, -1e+30
        %v2392 = vsel %vm2263, %v2366, -1e+30
        %v2393 = vsel %vm2264, %v2369, -1e+30
        %v2394 = vsel %vm2265, %v2374, -1e+30
        %v2395 = vsel %vm2266, %v2377, -1e+30
        %2396 = vmax.xlane.f32.xlu0 %v2380
        %v2397 = vpop.xlane.xlu0 %2396
        %2398 = vmax.xlane.f32.xlu0 %v2381
        %v2399 = vpop.xlane.xlu0 %2398
        %2400 = vmax.xlane.f32.xlu0 %v2382
        %v2401 = vpop.xlane.xlu0 %2400
        %2402 = vmax.xlane.f32.xlu0 %v2383
        %v2403 = vpop.xlane.xlu0 %2402
        %2404 = vmax.xlane.f32.xlu0 %v2384
        %v2405 = vpop.xlane.xlu0 %2404
        %2406 = vmax.xlane.f32.xlu0 %v2385
        %v2407 = vpop.xlane.xlu0 %2406
        %2408 = vmax.xlane.f32.xlu0 %v2386
        %v2409 = vpop.xlane.xlu0 %2408
        %2410 = vmax.xlane.f32.xlu0 %v2387
        %v2411 = vpop.xlane.xlu0 %2410
        %2412 = vmax.xlane.f32.xlu0 %v2388
        %v2413 = vpop.xlane.xlu0 %2412
        %2414 = vmax.xlane.f32.xlu0 %v2389
        %v2415 = vpop.xlane.xlu0 %2414
        %2416 = vmax.xlane.f32.xlu0 %v2390
        %v2417 = vpop.xlane.xlu0 %2416
        %2418 = vmax.xlane.f32.xlu0 %v2391
        %v2419 = vpop.xlane.xlu0 %2418
        %2420 = vmax.xlane.f32.xlu0 %v2392
        %v2421 = vpop.xlane.xlu0 %2420
        %2422 = vmax.xlane.f32.xlu0 %v2393
        %v2423 = vpop.xlane.xlu0 %2422
        %2424 = vmax.xlane.f32.xlu0 %v2394
        %v2425 = vpop.xlane.xlu0 %2424
        %2426 = vmax.xlane.f32.xlu0 %v2395
        %v2427 = vpop.xlane.xlu0 %2426
        %v2428 = vsub.f32 %v2380, %v2397
        %v2429 = vsub.f32 %v2381, %v2399
        %v2430 = vsub.f32 %v2382, %v2401
        %v2431 = vsub.f32 %v2383, %v2403
        %v2432 = vsub.f32 %v2384, %v2405
        %v2433 = vsub.f32 %v2385, %v2407
        %v2434 = vsub.f32 %v2386, %v2409
        %v2435 = vsub.f32 %v2387, %v2411
        %v2436 = vsub.f32 %v2388, %v2413
        %v2437 = vsub.f32 %v2389, %v2415
        %v2438 = vsub.f32 %v2390, %v2417
        %v2439 = vsub.f32 %v2391, %v2419
        %v2440 = vsub.f32 %v2392, %v2421
        %v2441 = vsub.f32 %v2393, %v2423
        %v2442 = vsub.f32 %v2394, %v2425
        %v2443 = vsub.f32 %v2395, %v2427
        %v2444 = vmul.f32 %v2428, 1.442695
        %v2445 = vpow.pop %v2444
        %v2446 = vmul.f32 %v2429, 1.442695
        %v2447 = vpow.pop %v2446
        %v2448 = vmul.f32 %v2430, 1.442695
        %v2449 = vpow.pop %v2448
        %v2450 = vmul.f32 %v2431, 1.442695
        %v2451 = vpow.pop %v2450
        %v2452 = vmul.f32 %v2432, 1.442695
        %v2453 = vpow.pop %v2452
        %v2454 = vmul.f32 %v2433, 1.442695
        %v2455 = vpow.pop %v2454
        %v2456 = vmul.f32 %v2434, 1.442695
        %v2457 = vpow.pop %v2456
        %v2458 = vmul.f32 %v2435, 1.442695
        %v2459 = vpow.pop %v2458
        %v2460 = vmul.f32 %v2436, 1.442695
        %v2461 = vpow.pop %v2460
        %v2462 = vmul.f32 %v2437, 1.442695
        %v2463 = vpow.pop %v2462
        %v2464 = vmul.f32 %v2438, 1.442695
        %v2465 = vpow.pop %v2464
        %v2466 = vmul.f32 %v2439, 1.442695
        %v2467 = vpow.pop %v2466
        %v2468 = vmul.f32 %v2440, 1.442695
        %v2469 = vpow.pop %v2468
        %v2470 = vmul.f32 %v2441, 1.442695
        %v2471 = vpow.pop %v2470
        %v2472 = vmul.f32 %v2442, 1.442695
        %v2473 = vpow.pop %v2472
        %v2474 = vmul.f32 %v2443, 1.442695
        %v2475 = vpow.pop %v2474
        %2476 = vadd.xlane.f32.xlu0 %v2445
        %v2477 = vpop.xlane.xlu0 %2476
        %2478 = vadd.xlane.f32.xlu0 %v2447
        %v2479 = vpop.xlane.xlu0 %2478
        %2480 = vadd.xlane.f32.xlu0 %v2449
        %v2481 = vpop.xlane.xlu0 %2480
        %2482 = vadd.xlane.f32.xlu0 %v2451
        %v2483 = vpop.xlane.xlu0 %2482
        %2484 = vadd.xlane.f32.xlu0 %v2453
        %v2485 = vpop.xlane.xlu0 %2484
        %2486 = vadd.xlane.f32.xlu0 %v2455
        %v2487 = vpop.xlane.xlu0 %2486
        %2488 = vadd.xlane.f32.xlu0 %v2457
        %v2489 = vpop.xlane.xlu0 %2488
        %2490 = vadd.xlane.f32.xlu0 %v2459
        %v2491 = vpop.xlane.xlu0 %2490
        %2492 = vadd.xlane.f32.xlu0 %v2461
        %v2493 = vpop.xlane.xlu0 %2492
        %2494 = vadd.xlane.f32.xlu0 %v2463
        %v2495 = vpop.xlane.xlu0 %2494
        %2496 = vadd.xlane.f32.xlu0 %v2465
        %v2497 = vpop.xlane.xlu0 %2496
        %2498 = vadd.xlane.f32.xlu0 %v2467
        %v2499 = vpop.xlane.xlu0 %2498
        %2500 = vadd.xlane.f32.xlu0 %v2469
        %v2501 = vpop.xlane.xlu0 %2500
        %2502 = vadd.xlane.f32.xlu0 %v2471
        %v2503 = vpop.xlane.xlu0 %2502
        %2504 = vadd.xlane.f32.xlu0 %v2473
        %v2505 = vpop.xlane.xlu0 %2504
        %2506 = vadd.xlane.f32.xlu0 %v2475
        %v2507 = vpop.xlane.xlu0 %2506
        %v2508 = vrcp.pop %v2477
        %v2509 = vrcp.pop %v2479
        %v2510 = vrcp.pop %v2481
        %v2511 = vrcp.pop %v2483
        %v2512 = vrcp.pop %v2485
        %v2513 = vrcp.pop %v2487
        %v2514 = vrcp.pop %v2489
        %v2515 = vrcp.pop %v2491
        %v2516 = vrcp.pop %v2493
        %v2517 = vrcp.pop %v2495
        %v2518 = vrcp.pop %v2497
        %v2519 = vrcp.pop %v2499
        %v2520 = vrcp.pop %v2501
        %v2521 = vrcp.pop %v2503
        %v2522 = vrcp.pop %v2505
        %v2523 = vrcp.pop %v2507
        %v2524 = vmul.f32 %v2445, %v2508
        %v2525 = vmul.f32 %v2447, %v2509
        %v2526 = vmul.f32 %v2449, %v2510
        %v2527 = vmul.f32 %v2451, %v2511
        %v2528 = vmul.f32 %v2453, %v2512
        %v2529 = vmul.f32 %v2455, %v2513
        %v2530 = vmul.f32 %v2457, %v2514
        %v2531 = vmul.f32 %v2459, %v2515
        %v2532 = vmul.f32 %v2461, %v2516
        %v2533 = vmul.f32 %v2463, %v2517
        %v2534 = vmul.f32 %v2465, %v2518
        %v2535 = vmul.f32 %v2467, %v2519
        %v2536 = vmul.f32 %v2469, %v2520
        %v2537 = vmul.f32 %v2471, %v2521
        %v2538 = vmul.f32 %v2473, %v2522
        %v2539 = vmul.f32 %v2475, %v2523
        %v2540 = vpack.c.bf16 %v2525, %v2524
        %v2541 = vpack.c.bf16 %v2527, %v2526
        %v2542 = vpack.c.bf16 %v2529, %v2528
        %v2543 = vpack.c.bf16 %v2531, %v2530
        %v2544 = vpack.c.bf16 %v2533, %v2532
        %v2545 = vpack.c.bf16 %v2535, %v2534
        %v2546 = vpack.c.bf16 %v2537, %v2536
        %v2547 = vpack.c.bf16 %v2539, %v2538
        %v2548 = vld [vmem:[#allocation4] sm:$0xff]
        %v2549 = vld [vmem:[#allocation4 + $0x8] sm:$0xff]
        %v2550 = vld [vmem:[#allocation4 + $0x10] sm:$0xff]
        %v2551 = vld [vmem:[#allocation4 + $0x18] sm:$0xff]
        %v2552 = vld [vmem:[#allocation4 + $0x20] sm:$0xff]
        %v2553 = vld [vmem:[#allocation4 + $0x28] sm:$0xff]
        %v2554 = vld [vmem:[#allocation4 + $0x30] sm:$0xff]
        %v2555 = vld [vmem:[#allocation4 + $0x38] sm:$0xff]
        %2556 = vmatprep.subr.bf16.mxu0 0
        %2557 = vmatpush1.bf16.msra.mxu0 %v2548
        %2558 = vmatprep.subr.bf16.mxu0 0
        %2559 = vmatpush1.bf16.msra.mxu0 %v2549
        %2560 = vmatprep.subr.bf16.mxu0 0
        %2561 = vmatpush1.bf16.msra.mxu0 %v2550
        %2562 = vmatprep.subr.bf16.mxu0 0
        %2563 = vmatpush1.bf16.msra.mxu0 %v2551
        %2564 = vmatprep.subr.bf16.mxu0 0
        %2565 = vmatpush1.bf16.msra.mxu0 %v2552
        %2566 = vmatprep.subr.bf16.mxu0 0
        %2567 = vmatpush1.bf16.msra.mxu0 %v2553
        %2568 = vmatprep.subr.bf16.mxu0 0
        %2569 = vmatpush1.bf16.msra.mxu0 %v2554
        %2570 = vmatprep.subr.bf16.mxu0 0
        %2571 = vmatpush1.bf16.msra.mxu0 %v2555
        %2572 = vmatprep.subr.bf16.mxu0 0
        %2573 = vmatpush1.bf16.msra.mxu0 0
        %2574 = vmatprep.subr.bf16.mxu0 0
        %2575 = vmatpush1.bf16.msra.mxu0 0
        %2576 = vmatprep.subr.bf16.mxu0 0
        %2577 = vmatpush1.bf16.msra.mxu0 0
        %2578 = vmatprep.subr.bf16.mxu0 0
        %2579 = vmatpush1.bf16.msra.mxu0 0
        %2580 = vmatprep.subr.bf16.mxu0 0
        %2581 = vmatpush1.bf16.msra.mxu0 0
        %2582 = vmatprep.subr.bf16.mxu0 0
        %2583 = vmatpush1.bf16.msra.mxu0 0
        %2584 = vmatprep.subr.bf16.mxu0 0
        %2585 = vmatpush1.bf16.msra.mxu0 0
        %2586 = vmatprep.subr.bf16.mxu0 0
        %2587 = vmatpush1.bf16.msra.mxu0 0
        %2588 = vmatprep.mubr.bf16.mxu0 0
        %2589 = vmatmul.mubr.bf16.gmra.mrb[0].mxu0 %v2540
        %v2590 = vpop.f32.mrb[0].mxu0
        %v2591 = vadd.f32 0.0, %v2590
        %v2592 = vpop.f32.mrb[0].mxu0
        %v2593 = vpop.f32.mrb[0].mxu0
        %v2594 = vadd.f32 0.0, %v2593
        %v2595 = vpop.f32.mrb[0].mxu0
        %2596 = vmatprep.mubr.bf16.mxu0 0
        %2597 = vmatmul.mubr.bf16.gmra.mrb[0].mxu0 %v2541
        %v2598 = vpop.f32.mrb[0].mxu0
        %v2599 = vadd.f32 0.0, %v2598
        %v2600 = vpop.f32.mrb[0].mxu0
        %v2601 = vpop.f32.mrb[0].mxu0
        %v2602 = vadd.f32 0.0, %v2601
        %v2603 = vpop.f32.mrb[0].mxu0
        %2604 = vmatprep.mubr.bf16.mxu0 0
        %2605 = vmatmul.mubr.bf16.gmra.mrb[0].mxu0 %v2542
        %v2606 = vpop.f32.mrb[0].mxu0
        %v2607 = vadd.f32 0.0, %v2606
        %v2608 = vpop.f32.mrb[0].mxu0
        %v2609 = vpop.f32.mrb[0].mxu0
        %v2610 = vadd.f32 0.0, %v2609
        %v2611 = vpop.f32.mrb[0].mxu0
        %2612 = vmatprep.mubr.bf16.mxu0 0
        %2613 = vmatmul.mubr.bf16.gmra.mrb[0].mxu0 %v2543
        %v2614 = vpop.f32.mrb[0].mxu0
        %v2615 = vadd.f32 0.0, %v2614
        %v2616 = vpop.f32.mrb[0].mxu0
        %v2617 = vpop.f32.mrb[0].mxu0
        %v2618 = vadd.f32 0.0, %v2617
        %v2619 = vpop.f32.mrb[0].mxu0
        %2620 = vmatprep.mubr.bf16.mxu0 0
        %2621 = vmatmul.mubr.bf16.gmra.mrb[0].mxu0 %v2544
        %v2622 = vpop.f32.mrb[0].mxu0
        %v2623 = vadd.f32 0.0, %v2622
        %v2624 = vpop.f32.mrb[0].mxu0
        %v2625 = vpop.f32.mrb[0].mxu0
        %v2626 = vadd.f32 0.0, %v2625
        %v2627 = vpop.f32.mrb[0].mxu0
        %2628 = vmatprep.mubr.bf16.mxu0 0
        %2629 = vmatmul.mubr.bf16.gmra.mrb[0].mxu0 %v2545
        %v2630 = vpop.f32.mrb[0].mxu0
        %v2631 = vadd.f32 0.0, %v2630
        %v2632 = vpop.f32.mrb[0].mxu0
        %v2633 = vpop.f32.mrb[0].mxu0
        %v2634 = vadd.f32 0.0, %v2633
        %v2635 = vpop.f32.mrb[0].mxu0
        %2636 = vmatprep.mubr.bf16.mxu0 0
        %2637 = vmatmul.mubr.bf16.gmra.mrb[0].mxu0 %v2546
        %v2638 = vpop.f32.mrb[0].mxu0
        %v2639 = vadd.f32 0.0, %v2638
        %v2640 = vpop.f32.mrb[0].mxu0
        %v2641 = vpop.f32.mrb[0].mxu0
        %v2642 = vadd.f32 0.0, %v2641
        %v2643 = vpop.f32.mrb[0].mxu0
        %2644 = vmatprep.mubr.bf16.mxu0 0
        %2645 = vmatmul.mubr.bf16.gmra.mrb[0].mxu0 %v2547
        %v2646 = vpop.f32.mrb[0].mxu0
        %v2647 = vadd.f32 0.0, %v2646
        %v2648 = vpop.f32.mrb[0].mxu0
        %v2649 = vpop.f32.mrb[0].mxu0
        %v2650 = vadd.f32 0.0, %v2649
        %v2651 = vpop.f32.mrb[0].mxu0
        %2652 = vdwg.mxu0
        %v2653 = vpack.c.bf16 %v2594, %v2591
        %v2654 = vpack.c.bf16 %v2602, %v2599
        %v2655 = vpack.c.bf16 %v2610, %v2607
        %v2656 = vpack.c.bf16 %v2618, %v2615
        %v2657 = vpack.c.bf16 %v2626, %v2623
        %v2658 = vpack.c.bf16 %v2634, %v2631
        %v2659 = vpack.c.bf16 %v2642, %v2639
        %v2660 = vpack.c.bf16 %v2650, %v2647
        %v2669 = vunpack.c.l.b16 %v2653
        %v2670 = vunpack.c.h.b16 %v2653
        %v2671 = vunpack.c.l.b16 %v2654
        %v2672 = vunpack.c.h.b16 %v2654
        %v2673 = vunpack.c.l.b16 %v2655
        %v2674 = vunpack.c.h.b16 %v2655
        %v2675 = vunpack.c.l.b16 %v2656
        %v2676 = vunpack.c.h.b16 %v2656
        %v2677 = vunpack.c.l.b16 %v2657
        %v2678 = vunpack.c.h.b16 %v2657
        %v2679 = vunpack.c.l.b16 %v2658
        %v2680 = vunpack.c.h.b16 %v2658
        %v2681 = vunpack.c.l.b16 %v2659
        %v2682 = vunpack.c.h.b16 %v2659
        %v2683 = vunpack.c.l.b16 %v2660
        %v2684 = vunpack.c.h.b16 %v2660
        %v2685 = vpack.c.b16 %v2669, %v2669
        %v2686 = vpack.c.b16 %v2670, %v2670
        %v2687 = vpack.c.b16 %v2671, %v2671
        %v2688 = vpack.c.b16 %v2672, %v2672
        %v2689 = vpack.c.b16 %v2673, %v2673
        %v2690 = vpack.c.b16 %v2674, %v2674
        %v2691 = vpack.c.b16 %v2675, %v2675
        %v2692 = vpack.c.b16 %v2676, %v2676
        %v2693 = vpack.c.b16 %v2677, %v2677
        %v2694 = vpack.c.b16 %v2678, %v2678
        %v2695 = vpack.c.b16 %v2679, %v2679
        %v2696 = vpack.c.b16 %v2680, %v2680
        %v2697 = vpack.c.b16 %v2681, %v2681
        %v2698 = vpack.c.b16 %v2682, %v2682
        %v2699 = vpack.c.b16 %v2683, %v2683
        %v2700 = vpack.c.b16 %v2684, %v2684
        %2717 = vst [vmem:[%s176] sm:$0xf] %v2685
        %2718 = vst [vmem:[%s176 + $0x4] sm:$0xf] %v2686
        %2719 = vst [vmem:[%s176 + $0x8] sm:$0xf] %v2687
        %2720 = vst [vmem:[%s176 + $0xc] sm:$0xf] %v2688
        %2721 = vst [vmem:[%s176 + $0x10] sm:$0xf] %v2689
        %2722 = vst [vmem:[%s176 + $0x14] sm:$0xf] %v2690
        %2723 = vst [vmem:[%s176 + $0x18] sm:$0xf] %v2691
        %2724 = vst [vmem:[%s176 + $0x1c] sm:$0xf] %v2692
        %2725 = vst [vmem:[%s176 + $0x20] sm:$0xf] %v2693
        %2726 = vst [vmem:[%s176 + $0x24] sm:$0xf] %v2694
        %2727 = vst [vmem:[%s176 + $0x28] sm:$0xf] %v2695
        %2728 = vst [vmem:[%s176 + $0x2c] sm:$0xf] %v2696
        %2729 = vst [vmem:[%s176 + $0x30] sm:$0xf] %v2697
        %2730 = vst [vmem:[%s176 + $0x34] sm:$0xf] %v2698
        %2731 = vst [vmem:[%s176 + $0x38] sm:$0xf] %v2699
        %2732 = vst [vmem:[%s176 + $0x3c] sm:$0xf] %v2700
        %v2733 = vld [vmem:[#allocation3 + $0x40] sm:$0xff]
        %v2734 = vld [vmem:[#allocation3 + $0x48] sm:$0xff]
        %v2735 = vld [vmem:[#allocation3 + $0x50] sm:$0xff]
        %v2736 = vld [vmem:[#allocation3 + $0x58] sm:$0xff]
        %v2737 = vld [vmem:[#allocation3 + $0x60] sm:$0xff]
        %v2738 = vld [vmem:[#allocation3 + $0x68] sm:$0xff]
        %v2739 = vld [vmem:[#allocation3 + $0x70] sm:$0xff]
        %v2740 = vld [vmem:[#allocation3 + $0x78] sm:$0xff]
        %v2741 = vld [vmem:[#allocation2 + $0x40] sm:$0xff]
        %v2742 = vld [vmem:[#allocation2 + $0x48] sm:$0xff]
        %v2743 = vld [vmem:[#allocation2 + $0x50] sm:$0xff]
        %v2744 = vld [vmem:[#allocation2 + $0x58] sm:$0xff]
        %v2745 = vld [vmem:[#allocation2 + $0x60] sm:$0xff]
        %v2746 = vld [vmem:[#allocation2 + $0x68] sm:$0xff]
        %v2747 = vld [vmem:[#allocation2 + $0x70] sm:$0xff]
        %v2748 = vld [vmem:[#allocation2 + $0x78] sm:$0xff]
        %2749 = vmatprep.subr.bf16.mxu0 0
        %2750 = vmatpush1.bf16.xpose.msra.mxu0 %v2741
        %2751 = vmatprep.subr.bf16.mxu0 0
        %2752 = vmatpush1.bf16.xpose.msra.mxu0 %v2742
        %2753 = vmatprep.subr.bf16.mxu0 0
        %2754 = vmatpush1.bf16.xpose.msra.mxu0 %v2743
        %2755 = vmatprep.subr.bf16.mxu0 0
        %2756 = vmatpush1.bf16.xpose.msra.mxu0 %v2744
        %2757 = vmatprep.subr.bf16.mxu0 0
        %2758 = vmatpush1.bf16.xpose.msra.mxu0 %v2745
        %2759 = vmatprep.subr.bf16.mxu0 0
        %2760 = vmatpush1.bf16.xpose.msra.mxu0 %v2746
        %2761 = vmatprep.subr.bf16.mxu0 0
        %2762 = vmatpush1.bf16.xpose.msra.mxu0 %v2747
        %2763 = vmatprep.subr.bf16.mxu0 0
        %2764 = vmatpush1.bf16.xpose.msra.mxu0 %v2748
        %2765 = vmatprep.subr.bf16.mxu0 0
        %2766 = vmatpush1.bf16.xpose.msra.mxu0 0
        %2767 = vmatprep.subr.bf16.mxu0 0
        %2768 = vmatpush1.bf16.xpose.msra.mxu0 0
        %2769 = vmatprep.subr.bf16.mxu0 0
        %2770 = vmatpush1.bf16.xpose.msra.mxu0 0
        %2771 = vmatprep.subr.bf16.mxu0 0
        %2772 = vmatpush1.bf16.xpose.msra.mxu0 0
        %2773 = vmatprep.subr.bf16.mxu0 0
        %2774 = vmatpush1.bf16.xpose.msra.mxu0 0
        %2775 = vmatprep.subr.bf16.mxu0 0
        %2776 = vmatpush1.bf16.xpose.msra.mxu0 0
        %2777 = vmatprep.subr.bf16.mxu0 0
        %2778 = vmatpush1.bf16.xpose.msra.mxu0 0
        %2779 = vmatprep.subr.bf16.mxu0 0
        %2780 = vmatpush1.bf16.xpose.msra.mxu0 0
        %2781 = vmatprep.mubr.bf16.mxu0 0
        %2782 = vmatmul.mubr.bf16.gmra.mrb[0].mxu0 %v2733
        %v2783 = vpop.f32.mrb[0].mxu0
        %v2784 = vadd.f32 0.0, %v2783
        %v2785 = vpop.f32.mrb[0].mxu0
        %v2786 = vpop.f32.mrb[0].mxu0
        %v2787 = vadd.f32 0.0, %v2786
        %v2788 = vpop.f32.mrb[0].mxu0
        %2789 = vmatprep.mubr.bf16.mxu0 0
        %2790 = vmatmul.mubr.bf16.gmra.mrb[0].mxu0 %v2734
        %v2791 = vpop.f32.mrb[0].mxu0
        %v2792 = vadd.f32 0.0, %v2791
        %v2793 = vpop.f32.mrb[0].mxu0
        %v2794 = vpop.f32.mrb[0].mxu0
        %v2795 = vadd.f32 0.0, %v2794
        %v2796 = vpop.f32.mrb[0].mxu0
        %2797 = vmatprep.mubr.bf16.mxu0 0
        %2798 = vmatmul.mubr.bf16.gmra.mrb[0].mxu0 %v2735
        %v2799 = vpop.f32.mrb[0].mxu0
        %v2800 = vadd.f32 0.0, %v2799
        %v2801 = vpop.f32.mrb[0].mxu0
        %v2802 = vpop.f32.mrb[0].mxu0
        %v2803 = vadd.f32 0.0, %v2802
        %v2804 = vpop.f32.mrb[0].mxu0
        %2805 = vmatprep.mubr.bf16.mxu0 0
        %2806 = vmatmul.mubr.bf16.gmra.mrb[0].mxu0 %v2736
        %v2807 = vpop.f32.mrb[0].mxu0
        %v2808 = vadd.f32 0.0, %v2807
        %v2809 = vpop.f32.mrb[0].mxu0
        %v2810 = vpop.f32.mrb[0].mxu0
        %v2811 = vadd.f32 0.0, %v2810
        %v2812 = vpop.f32.mrb[0].mxu0
        %2813 = vmatprep.mubr.bf16.mxu0 0
        %2814 = vmatmul.mubr.bf16.gmra.mrb[0].mxu0 %v2737
        %v2815 = vpop.f32.mrb[0].mxu0
        %v2816 = vadd.f32 0.0, %v2815
        %v2817 = vpop.f32.mrb[0].mxu0
        %v2818 = vpop.f32.mrb[0].mxu0
        %v2819 = vadd.f32 0.0, %v2818
        %v2820 = vpop.f32.mrb[0].mxu0
        %2821 = vmatprep.mubr.bf16.mxu0 0
        %2822 = vmatmul.mubr.bf16.gmra.mrb[0].mxu0 %v2738
        %v2823 = vpop.f32.mrb[0].mxu0
        %v2824 = vadd.f32 0.0, %v2823
        %v2825 = vpop.f32.mrb[0].mxu0
        %v2826 = vpop.f32.mrb[0].mxu0
        %v2827 = vadd.f32 0.0, %v2826
        %v2828 = vpop.f32.mrb[0].mxu0
        %2829 = vmatprep.mubr.bf16.mxu0 0
        %2830 = vmatmul.mubr.bf16.gmra.mrb[0].mxu0 %v2739
        %v2831 = vpop.f32.mrb[0].mxu0
        %v2832 = vadd.f32 0.0, %v2831
        %v2833 = vpop.f32.mrb[0].mxu0
        %v2834 = vpop.f32.mrb[0].mxu0
        %v2835 = vadd.f32 0.0, %v2834
        %v2836 = vpop.f32.mrb[0].mxu0
        %2837 = vmatprep.mubr.bf16.mxu0 0
        %2838 = vmatmul.mubr.bf16.gmra.mrb[0].mxu0 %v2740
        %v2839 = vpop.f32.mrb[0].mxu0
        %v2840 = vadd.f32 0.0, %v2839
        %v2841 = vpop.f32.mrb[0].mxu0
        %v2842 = vpop.f32.mrb[0].mxu0
        %v2843 = vadd.f32 0.0, %v2842
        %v2844 = vpop.f32.mrb[0].mxu0
        %2845 = vdwg.mxu0
        %v2846 = vsel %vm2251, %v2784, -1e+30
        %v2847 = vsel %vm2252, %v2787, -1e+30
        %v2848 = vsel %vm2253, %v2792, -1e+30
        %v2849 = vsel %vm2254, %v2795, -1e+30
        %v2850 = vsel %vm2255, %v2800, -1e+30
        %v2851 = vsel %vm2256, %v2803, -1e+30
        %v2852 = vsel %vm2257, %v2808, -1e+30
        %v2853 = vsel %vm2258, %v2811, -1e+30
        %v2854 = vsel %vm2259, %v2816, -1e+30
        %v2855 = vsel %vm2260, %v2819, -1e+30
        %v2856 = vsel %vm2261, %v2824, -1e+30
        %v2857 = vsel %vm2262, %v2827, -1e+30
        %v2858 = vsel %vm2263, %v2832, -1e+30
        %v2859 = vsel %vm2264, %v2835, -1e+30
        %v2860 = vsel %vm2265, %v2840, -1e+30
        %v2861 = vsel %vm2266, %v2843, -1e+30
        %v2862 = vld [vmem:[#allocation2] sm:$0xff]
        %v2863 = vld [vmem:[#allocation2 + $0x8] sm:$0xff]
        %v2864 = vld [vmem:[#allocation2 + $0x10] sm:$0xff]
        %v2865 = vld [vmem:[#allocation2 + $0x18] sm:$0xff]
        %v2866 = vld [vmem:[#allocation2 + $0x20] sm:$0xff]
        %v2867 = vld [vmem:[#allocation2 + $0x28] sm:$0xff]
        %v2868 = vld [vmem:[#allocation2 + $0x30] sm:$0xff]
        %v2869 = vld [vmem:[#allocation2 + $0x38] sm:$0xff]
        %2870 = vmatprep.subr.bf16.mxu0 0
        %2871 = vmatpush1.bf16.xpose.msra.mxu0 %v2862
        %2872 = vmatprep.subr.bf16.mxu0 0
        %2873 = vmatpush1.bf16.xpose.msra.mxu0 %v2863
        %2874 = vmatprep.subr.bf16.mxu0 0
        %2875 = vmatpush1.bf16.xpose.msra.mxu0 %v2864
        %2876 = vmatprep.subr.bf16.mxu0 0
        %2877 = vmatpush1.bf16.xpose.msra.mxu0 %v2865
        %2878 = vmatprep.subr.bf16.mxu0 0
        %2879 = vmatpush1.bf16.xpose.msra.mxu0 %v2866
        %2880 = vmatprep.subr.bf16.mxu0 0
        %2881 = vmatpush1.bf16.xpose.msra.mxu0 %v2867
        %2882 = vmatprep.subr.bf16.mxu0 0
        %2883 = vmatpush1.bf16.xpose.msra.mxu0 %v2868
        %2884 = vmatprep.subr.bf16.mxu0 0
        %2885 = vmatpush1.bf16.xpose.msra.mxu0 %v2869
        %2886 = vmatprep.subr.bf16.mxu0 0
        %2887 = vmatpush1.bf16.xpose.msra.mxu0 0
        %2888 = vmatprep.subr.bf16.mxu0 0
        %2889 = vmatpush1.bf16.xpose.msra.mxu0 0
        %2890 = vmatprep.subr.bf16.mxu0 0
        %2891 = vmatpush1.bf16.xpose.msra.mxu0 0
        %2892 = vmatprep.subr.bf16.mxu0 0
        %2893 = vmatpush1.bf16.xpose.msra.mxu0 0
        %2894 = vmatprep.subr.bf16.mxu0 0
        %2895 = vmatpush1.bf16.xpose.msra.mxu0 0
        %2896 = vmatprep.subr.bf16.mxu0 0
        %2897 = vmatpush1.bf16.xpose.msra.mxu0 0
        %2898 = vmatprep.subr.bf16.mxu0 0
        %2899 = vmatpush1.bf16.xpose.msra.mxu0 0
        %2900 = vmatprep.subr.bf16.mxu0 0
        %2901 = vmatpush1.bf16.xpose.msra.mxu0 0
        %2902 = vmatprep.mubr.bf16.mxu0 0
        %2903 = vmatmul.mubr.bf16.gmra.mrb[0].mxu0 %v2733
        %v2904 = vpop.f32.mrb[0].mxu0
        %v2905 = vadd.f32 0.0, %v2904
        %v2906 = vpop.f32.mrb[0].mxu0
        %v2907 = vpop.f32.mrb[0].mxu0
        %v2908 = vadd.f32 0.0, %v2907
        %v2909 = vpop.f32.mrb[0].mxu0
        %2910 = vmatprep.mubr.bf16.mxu0 0
        %2911 = vmatmul.mubr.bf16.gmra.mrb[0].mxu0 %v2734
        %v2912 = vpop.f32.mrb[0].mxu0
        %v2913 = vadd.f32 0.0, %v2912
        %v2914 = vpop.f32.mrb[0].mxu0
        %v2915 = vpop.f32.mrb[0].mxu0
        %v2916 = vadd.f32 0.0, %v2915
        %v2917 = vpop.f32.mrb[0].mxu0
        %2918 = vmatprep.mubr.bf16.mxu0 0
        %2919 = vmatmul.mubr.bf16.gmra.mrb[0].mxu0 %v2735
        %v2920 = vpop.f32.mrb[0].mxu0
        %v2921 = vadd.f32 0.0, %v2920
        %v2922 = vpop.f32.mrb[0].mxu0
        %v2923 = vpop.f32.mrb[0].mxu0
        %v2924 = vadd.f32 0.0, %v2923
        %v2925 = vpop.f32.mrb[0].mxu0
        %2926 = vmatprep.mubr.bf16.mxu0 0
        %2927 = vmatmul.mubr.bf16.gmra.mrb[0].mxu0 %v2736
        %v2928 = vpop.f32.mrb[0].mxu0
        %v2929 = vadd.f32 0.0, %v2928
        %v2930 = vpop.f32.mrb[0].mxu0
        %v2931 = vpop.f32.mrb[0].mxu0
        %v2932 = vadd.f32 0.0, %v2931
        %v2933 = vpop.f32.mrb[0].mxu0
        %2934 = vmatprep.mubr.bf16.mxu0 0
        %2935 = vmatmul.mubr.bf16.gmra.mrb[0].mxu0 %v2737
        %v2936 = vpop.f32.mrb[0].mxu0
        %v2937 = vadd.f32 0.0, %v2936
        %v2938 = vpop.f32.mrb[0].mxu0
        %v2939 = vpop.f32.mrb[0].mxu0
        %v2940 = vadd.f32 0.0, %v2939
        %v2941 = vpop.f32.mrb[0].mxu0
        %2942 = vmatprep.mubr.bf16.mxu0 0
        %2943 = vmatmul.mubr.bf16.gmra.mrb[0].mxu0 %v2738
        %v2944 = vpop.f32.mrb[0].mxu0
        %v2945 = vadd.f32 0.0, %v2944
        %v2946 = vpop.f32.mrb[0].mxu0
        %v2947 = vpop.f32.mrb[0].mxu0
        %v2948 = vadd.f32 0.0, %v2947
        %v2949 = vpop.f32.mrb[0].mxu0
        %2950 = vmatprep.mubr.bf16.mxu0 0
        %2951 = vmatmul.mubr.bf16.gmra.mrb[0].mxu0 %v2739
        %v2952 = vpop.f32.mrb[0].mxu0
        %v2953 = vadd.f32 0.0, %v2952
        %v2954 = vpop.f32.mrb[0].mxu0
        %v2955 = vpop.f32.mrb[0].mxu0
        %v2956 = vadd.f32 0.0, %v2955
        %v2957 = vpop.f32.mrb[0].mxu0
        %2958 = vmatprep.mubr.bf16.mxu0 0
        %2959 = vmatmul.mubr.bf16.gmra.mrb[0].mxu0 %v2740
        %v2960 = vpop.f32.mrb[0].mxu0
        %v2961 = vadd.f32 0.0, %v2960
        %v2962 = vpop.f32.mrb[0].mxu0
        %v2963 = vpop.f32.mrb[0].mxu0
        %v2964 = vadd.f32 0.0, %v2963
        %v2965 = vpop.f32.mrb[0].mxu0
        %2966 = vdwg.mxu0
        %2967 = vmax.xlane.f32.xlu0 %v2905
        %v2968 = vpop.xlane.xlu0 %2967
        %2969 = vmax.xlane.f32.xlu0 %v2908
        %v2970 = vpop.xlane.xlu0 %2969
        %2971 = vmax.xlane.f32.xlu0 %v2913
        %v2972 = vpop.xlane.xlu0 %2971
        %2973 = vmax.xlane.f32.xlu0 %v2916
        %v2974 = vpop.xlane.xlu0 %2973
        %2975 = vmax.xlane.f32.xlu0 %v2921
        %v2976 = vpop.xlane.xlu0 %2975
        %2977 = vmax.xlane.f32.xlu0 %v2924
        %v2978 = vpop.xlane.xlu0 %2977
        %2979 = vmax.xlane.f32.xlu0 %v2929
        %v2980 = vpop.xlane.xlu0 %2979
        %2981 = vmax.xlane.f32.xlu0 %v2932
        %v2982 = vpop.xlane.xlu0 %2981
        %2983 = vmax.xlane.f32.xlu0 %v2937
        %v2984 = vpop.xlane.xlu0 %2983
        %2985 = vmax.xlane.f32.xlu0 %v2940
        %v2986 = vpop.xlane.xlu0 %2985
        %2987 = vmax.xlane.f32.xlu0 %v2945
        %v2988 = vpop.xlane.xlu0 %2987
        %2989 = vmax.xlane.f32.xlu0 %v2948
        %v2990 = vpop.xlane.xlu0 %2989
        %2991 = vmax.xlane.f32.xlu0 %v2953
        %v2992 = vpop.xlane.xlu0 %2991
        %2993 = vmax.xlane.f32.xlu0 %v2956
        %v2994 = vpop.xlane.xlu0 %2993
        %2995 = vmax.xlane.f32.xlu0 %v2961
        %v2996 = vpop.xlane.xlu0 %2995
        %2997 = vmax.xlane.f32.xlu0 %v2964
        %v2998 = vpop.xlane.xlu0 %2997
        %2999 = vmax.xlane.f32.xlu0 %v2846
        %v3000 = vpop.xlane.xlu0 %2999
        %3001 = vmax.xlane.f32.xlu0 %v2847
        %v3002 = vpop.xlane.xlu0 %3001
        %3003 = vmax.xlane.f32.xlu0 %v2848
        %v3004 = vpop.xlane.xlu0 %3003
        %3005 = vmax.xlane.f32.xlu0 %v2849
        %v3006 = vpop.xlane.xlu0 %3005
        %3007 = vmax.xlane.f32.xlu0 %v2850
        %v3008 = vpop.xlane.xlu0 %3007
        %3009 = vmax.xlane.f32.xlu0 %v2851
        %v3010 = vpop.xlane.xlu0 %3009
        %3011 = vmax.xlane.f32.xlu0 %v2852
        %v3012 = vpop.xlane.xlu0 %3011
        %3013 = vmax.xlane.f32.xlu0 %v2853
        %v3014 = vpop.xlane.xlu0 %3013
        %3015 = vmax.xlane.f32.xlu0 %v2854
        %v3016 = vpop.xlane.xlu0 %3015
        %3017 = vmax.xlane.f32.xlu0 %v2855
        %v3018 = vpop.xlane.xlu0 %3017
        %3019 = vmax.xlane.f32.xlu0 %v2856
        %v3020 = vpop.xlane.xlu0 %3019
        %3021 = vmax.xlane.f32.xlu0 %v2857
        %v3022 = vpop.xlane.xlu0 %3021
        %3023 = vmax.xlane.f32.xlu0 %v2858
        %v3024 = vpop.xlane.xlu0 %3023
        %3025 = vmax.xlane.f32.xlu0 %v2859
        %v3026 = vpop.xlane.xlu0 %3025
        %3027 = vmax.xlane.f32.xlu0 %v2860
        %v3028 = vpop.xlane.xlu0 %3027
        %3029 = vmax.xlane.f32.xlu0 %v2861
        %v3030 = vpop.xlane.xlu0 %3029
        %v3031 = vmax.f32 %v2968, %v3000
        %v3032 = vmax.f32 %v2970, %v3002
        %v3033 = vmax.f32 %v2972, %v3004
        %v3034 = vmax.f32 %v2974, %v3006
        %v3035 = vmax.f32 %v2976, %v3008
        %v3036 = vmax.f32 %v2978, %v3010
        %v3037 = vmax.f32 %v2980, %v3012
        %v3038 = vmax.f32 %v2982, %v3014
        %v3039 = vmax.f32 %v2984, %v3016
        %v3040 = vmax.f32 %v2986, %v3018
        %v3041 = vmax.f32 %v2988, %v3020
        %v3042 = vmax.f32 %v2990, %v3022
        %v3043 = vmax.f32 %v2992, %v3024
        %v3044 = vmax.f32 %v2994, %v3026
        %v3045 = vmax.f32 %v2996, %v3028
        %v3046 = vmax.f32 %v2998, %v3030
        %v3047 = vsub.f32 %v2905, %v3031
        %v3048 = vsub.f32 %v2908, %v3032
        %v3049 = vsub.f32 %v2913, %v3033
        %v3050 = vsub.f32 %v2916, %v3034
        %v3051 = vsub.f32 %v2921, %v3035
        %v3052 = vsub.f32 %v2924, %v3036
        %v3053 = vsub.f32 %v2929, %v3037
        %v3054 = vsub.f32 %v2932, %v3038
        %v3055 = vsub.f32 %v2937, %v3039
        %v3056 = vsub.f32 %v2940, %v3040
        %v3057 = vsub.f32 %v2945, %v3041
        %v3058 = vsub.f32 %v2948, %v3042
        %v3059 = vsub.f32 %v2953, %v3043
        %v3060 = vsub.f32 %v2956, %v3044
        %v3061 = vsub.f32 %v2961, %v3045
        %v3062 = vsub.f32 %v2964, %v3046
        %v3063 = vmul.f32 %v3047, 1.442695
        %v3064 = vpow.pop %v3063
        %v3065 = vmul.f32 %v3048, 1.442695
        %v3066 = vpow.pop %v3065
        %v3067 = vmul.f32 %v3049, 1.442695
        %v3068 = vpow.pop %v3067
        %v3069 = vmul.f32 %v3050, 1.442695
        %v3070 = vpow.pop %v3069
        %v3071 = vmul.f32 %v3051, 1.442695
        %v3072 = vpow.pop %v3071
        %v3073 = vmul.f32 %v3052, 1.442695
        %v3074 = vpow.pop %v3073
        %v3075 = vmul.f32 %v3053, 1.442695
        %v3076 = vpow.pop %v3075
        %v3077 = vmul.f32 %v3054, 1.442695
        %v3078 = vpow.pop %v3077
        %v3079 = vmul.f32 %v3055, 1.442695
        %v3080 = vpow.pop %v3079
        %v3081 = vmul.f32 %v3056, 1.442695
        %v3082 = vpow.pop %v3081
        %v3083 = vmul.f32 %v3057, 1.442695
        %v3084 = vpow.pop %v3083
        %v3085 = vmul.f32 %v3058, 1.442695
        %v3086 = vpow.pop %v3085
        %v3087 = vmul.f32 %v3059, 1.442695
        %v3088 = vpow.pop %v3087
        %v3089 = vmul.f32 %v3060, 1.442695
        %v3090 = vpow.pop %v3089
        %v3091 = vmul.f32 %v3061, 1.442695
        %v3092 = vpow.pop %v3091
        %v3093 = vmul.f32 %v3062, 1.442695
        %v3094 = vpow.pop %v3093
        %v3095 = vsub.f32 %v2846, %v3031
        %v3096 = vsub.f32 %v2847, %v3032
        %v3097 = vsub.f32 %v2848, %v3033
        %v3098 = vsub.f32 %v2849, %v3034
        %v3099 = vsub.f32 %v2850, %v3035
        %v3100 = vsub.f32 %v2851, %v3036
        %v3101 = vsub.f32 %v2852, %v3037
        %v3102 = vsub.f32 %v2853, %v3038
        %v3103 = vsub.f32 %v2854, %v3039
        %v3104 = vsub.f32 %v2855, %v3040
        %v3105 = vsub.f32 %v2856, %v3041
        %v3106 = vsub.f32 %v2857, %v3042
        %v3107 = vsub.f32 %v2858, %v3043
        %v3108 = vsub.f32 %v2859, %v3044
        %v3109 = vsub.f32 %v2860, %v3045
        %v3110 = vsub.f32 %v2861, %v3046
        %v3111 = vmul.f32 %v3095, 1.442695
        %v3112 = vpow.pop %v3111
        %v3113 = vmul.f32 %v3096, 1.442695
        %v3114 = vpow.pop %v3113
        %v3115 = vmul.f32 %v3097, 1.442695
        %v3116 = vpow.pop %v3115
        %v3117 = vmul.f32 %v3098, 1.442695
        %v3118 = vpow.pop %v3117
        %v3119 = vmul.f32 %v3099, 1.442695
        %v3120 = vpow.pop %v3119
        %v3121 = vmul.f32 %v3100, 1.442695
        %v3122 = vpow.pop %v3121
        %v3123 = vmul.f32 %v3101, 1.442695
        %v3124 = vpow.pop %v3123
        %v3125 = vmul.f32 %v3102, 1.442695
        %v3126 = vpow.pop %v3125
        %v3127 = vmul.f32 %v3103, 1.442695
        %v3128 = vpow.pop %v3127
        %v3129 = vmul.f32 %v3104, 1.442695
        %v3130 = vpow.pop %v3129
        %v3131 = vmul.f32 %v3105, 1.442695
        %v3132 = vpow.pop %v3131
        %v3133 = vmul.f32 %v3106, 1.442695
        %v3134 = vpow.pop %v3133
        %v3135 = vmul.f32 %v3107, 1.442695
        %v3136 = vpow.pop %v3135
        %v3137 = vmul.f32 %v3108, 1.442695
        %v3138 = vpow.pop %v3137
        %v3139 = vmul.f32 %v3109, 1.442695
        %v3140 = vpow.pop %v3139
        %v3141 = vmul.f32 %v3110, 1.442695
        %v3142 = vpow.pop %v3141
        %3143 = vadd.xlane.f32.xlu0 %v3064
        %v3144 = vpop.xlane.xlu0 %3143
        %3145 = vadd.xlane.f32.xlu0 %v3066
        %v3146 = vpop.xlane.xlu0 %3145
        %3147 = vadd.xlane.f32.xlu0 %v3068
        %v3148 = vpop.xlane.xlu0 %3147
        %3149 = vadd.xlane.f32.xlu0 %v3070
        %v3150 = vpop.xlane.xlu0 %3149
        %3151 = vadd.xlane.f32.xlu0 %v3072
        %v3152 = vpop.xlane.xlu0 %3151
        %3153 = vadd.xlane.f32.xlu0 %v3074
        %v3154 = vpop.xlane.xlu0 %3153
        %3155 = vadd.xlane.f32.xlu0 %v3076
        %v3156 = vpop.xlane.xlu0 %3155
        %3157 = vadd.xlane.f32.xlu0 %v3078
        %v3158 = vpop.xlane.xlu0 %3157
        %3159 = vadd.xlane.f32.xlu0 %v3080
        %v3160 = vpop.xlane.xlu0 %3159
        %3161 = vadd.xlane.f32.xlu0 %v3082
        %v3162 = vpop.xlane.xlu0 %3161
        %3163 = vadd.xlane.f32.xlu0 %v3084
        %v3164 = vpop.xlane.xlu0 %3163
        %3165 = vadd.xlane.f32.xlu0 %v3086
        %v3166 = vpop.xlane.xlu0 %3165
        %3167 = vadd.xlane.f32.xlu0 %v3088
        %v3168 = vpop.xlane.xlu0 %3167
        %3169 = vadd.xlane.f32.xlu0 %v3090
        %v3170 = vpop.xlane.xlu0 %3169
        %3171 = vadd.xlane.f32.xlu0 %v3092
        %v3172 = vpop.xlane.xlu0 %3171
        %3173 = vadd.xlane.f32.xlu0 %v3094
        %v3174 = vpop.xlane.xlu0 %3173
        %3175 = vadd.xlane.f32.xlu0 %v3112
        %v3176 = vpop.xlane.xlu0 %3175
        %3177 = vadd.xlane.f32.xlu0 %v3114
        %v3178 = vpop.xlane.xlu0 %3177
        %3179 = vadd.xlane.f32.xlu0 %v3116
        %v3180 = vpop.xlane.xlu0 %3179
        %3181 = vadd.xlane.f32.xlu0 %v3118
        %v3182 = vpop.xlane.xlu0 %3181
        %3183 = vadd.xlane.f32.xlu0 %v3120
        %v3184 = vpop.xlane.xlu0 %3183
        %3185 = vadd.xlane.f32.xlu0 %v3122
        %v3186 = vpop.xlane.xlu0 %3185
        %3187 = vadd.xlane.f32.xlu0 %v3124
        %v3188 = vpop.xlane.xlu0 %3187
        %3189 = vadd.xlane.f32.xlu0 %v3126
        %v3190 = vpop.xlane.xlu0 %3189
        %3191 = vadd.xlane.f32.xlu0 %v3128
        %v3192 = vpop.xlane.xlu0 %3191
        %3193 = vadd.xlane.f32.xlu0 %v3130
        %v3194 = vpop.xlane.xlu0 %3193
        %3195 = vadd.xlane.f32.xlu0 %v3132
        %v3196 = vpop.xlane.xlu0 %3195
        %3197 = vadd.xlane.f32.xlu0 %v3134
        %v3198 = vpop.xlane.xlu0 %3197
        %3199 = vadd.xlane.f32.xlu0 %v3136
        %v3200 = vpop.xlane.xlu0 %3199
        %3201 = vadd.xlane.f32.xlu0 %v3138
        %v3202 = vpop.xlane.xlu0 %3201
        %3203 = vadd.xlane.f32.xlu0 %v3140
        %v3204 = vpop.xlane.xlu0 %3203
        %3205 = vadd.xlane.f32.xlu0 %v3142
        %v3206 = vpop.xlane.xlu0 %3205
        %v3207 = vadd.f32 %v3144, %v3176
        %v3208 = vadd.f32 %v3146, %v3178
        %v3209 = vadd.f32 %v3148, %v3180
        %v3210 = vadd.f32 %v3150, %v3182
        %v3211 = vadd.f32 %v3152, %v3184
        %v3212 = vadd.f32 %v3154, %v3186
        %v3213 = vadd.f32 %v3156, %v3188
        %v3214 = vadd.f32 %v3158, %v3190
        %v3215 = vadd.f32 %v3160, %v3192
        %v3216 = vadd.f32 %v3162, %v3194
        %v3217 = vadd.f32 %v3164, %v3196
        %v3218 = vadd.f32 %v3166, %v3198
        %v3219 = vadd.f32 %v3168, %v3200
        %v3220 = vadd.f32 %v3170, %v3202
        %v3221 = vadd.f32 %v3172, %v3204
        %v3222 = vadd.f32 %v3174, %v3206
        %v3223 = vrcp.pop %v3207
        %v3224 = vrcp.pop %v3208
        %v3225 = vrcp.pop %v3209
        %v3226 = vrcp.pop %v3210
        %v3227 = vrcp.pop %v3211
        %v3228 = vrcp.pop %v3212
        %v3229 = vrcp.pop %v3213
        %v3230 = vrcp.pop %v3214
        %v3231 = vrcp.pop %v3215
        %v3232 = vrcp.pop %v3216
        %v3233 = vrcp.pop %v3217
        %v3234 = vrcp.pop %v3218
        %v3235 = vrcp.pop %v3219
        %v3236 = vrcp.pop %v3220
        %v3237 = vrcp.pop %v3221
        %v3238 = vrcp.pop %v3222
        %v3239 = vmul.f32 %v3064, %v3223
        %v3240 = vmul.f32 %v3066, %v3224
        %v3241 = vmul.f32 %v3068, %v3225
        %v3242 = vmul.f32 %v3070, %v3226
        %v3243 = vmul.f32 %v3072, %v3227
        %v3244 = vmul.f32 %v3074, %v3228
        %v3245 = vmul.f32 %v3076, %v3229
        %v3246 = vmul.f32 %v3078, %v3230
        %v3247 = vmul.f32 %v3080, %v3231
        %v3248 = vmul.f32 %v3082, %v3232
        %v3249 = vmul.f32 %v3084, %v3233
        %v3250 = vmul.f32 %v3086, %v3234
        %v3251 = vmul.f32 %v3088, %v3235
        %v3252 = vmul.f32 %v3090, %v3236
        %v3253 = vmul.f32 %v3092, %v3237
        %v3254 = vmul.f32 %v3094, %v3238
        %v3255 = vpack.c.bf16 %v3240, %v3239
        %v3256 = vpack.c.bf16 %v3242, %v3241
        %v3257 = vpack.c.bf16 %v3244, %v3243
        %v3258 = vpack.c.bf16 %v3246, %v3245
        %v3259 = vpack.c.bf16 %v3248, %v3247
        %v3260 = vpack.c.bf16 %v3250, %v3249
        %v3261 = vpack.c.bf16 %v3252, %v3251
        %v3262 = vpack.c.bf16 %v3254, %v3253
        %v3263 = vld [vmem:[#allocation4] sm:$0xff]
        %v3264 = vld [vmem:[#allocation4 + $0x8] sm:$0xff]
        %v3265 = vld [vmem:[#allocation4 + $0x10] sm:$0xff]
        %v3266 = vld [vmem:[#allocation4 + $0x18] sm:$0xff]
        %v3267 = vld [vmem:[#allocation4 + $0x20] sm:$0xff]
        %v3268 = vld [vmem:[#allocation4 + $0x28] sm:$0xff]
        %v3269 = vld [vmem:[#allocation4 + $0x30] sm:$0xff]
        %v3270 = vld [vmem:[#allocation4 + $0x38] sm:$0xff]
        %v3271 = vmul.f32 %v3112, %v3223
        %v3272 = vmul.f32 %v3114, %v3224
        %v3273 = vmul.f32 %v3116, %v3225
        %v3274 = vmul.f32 %v3118, %v3226
        %v3275 = vmul.f32 %v3120, %v3227
        %v3276 = vmul.f32 %v3122, %v3228
        %v3277 = vmul.f32 %v3124, %v3229
        %v3278 = vmul.f32 %v3126, %v3230
        %v3279 = vmul.f32 %v3128, %v3231
        %v3280 = vmul.f32 %v3130, %v3232
        %v3281 = vmul.f32 %v3132, %v3233
        %v3282 = vmul.f32 %v3134, %v3234
        %v3283 = vmul.f32 %v3136, %v3235
        %v3284 = vmul.f32 %v3138, %v3236
        %v3285 = vmul.f32 %v3140, %v3237
        %v3286 = vmul.f32 %v3142, %v3238
        %v3287 = vpack.c.bf16 %v3272, %v3271
        %v3288 = vpack.c.bf16 %v3274, %v3273
        %v3289 = vpack.c.bf16 %v3276, %v3275
        %v3290 = vpack.c.bf16 %v3278, %v3277
        %v3291 = vpack.c.bf16 %v3280, %v3279
        %v3292 = vpack.c.bf16 %v3282, %v3281
        %v3293 = vpack.c.bf16 %v3284, %v3283
        %v3294 = vpack.c.bf16 %v3286, %v3285
        %v3295 = vld [vmem:[#allocation4 + $0x40] sm:$0xff]
        %v3296 = vld [vmem:[#allocation4 + $0x48] sm:$0xff]
        %v3297 = vld [vmem:[#allocation4 + $0x50] sm:$0xff]
        %v3298 = vld [vmem:[#allocation4 + $0x58] sm:$0xff]
        %v3299 = vld [vmem:[#allocation4 + $0x60] sm:$0xff]
        %v3300 = vld [vmem:[#allocation4 + $0x68] sm:$0xff]
        %v3301 = vld [vmem:[#allocation4 + $0x70] sm:$0xff]
        %v3302 = vld [vmem:[#allocation4 + $0x78] sm:$0xff]
        %3303 = vmatprep.subr.bf16.mxu0 0
        %3304 = vmatpush1.bf16.msra.mxu0 %v3295
        %3305 = vmatprep.subr.bf16.mxu0 0
        %3306 = vmatpush1.bf16.msra.mxu0 %v3296
        %3307 = vmatprep.subr.bf16.mxu0 0
        %3308 = vmatpush1.bf16.msra.mxu0 %v3297
        %3309 = vmatprep.subr.bf16.mxu0 0
        %3310 = vmatpush1.bf16.msra.mxu0 %v3298
        %3311 = vmatprep.subr.bf16.mxu0 0
        %3312 = vmatpush1.bf16.msra.mxu0 %v3299
        %3313 = vmatprep.subr.bf16.mxu0 0
        %3314 = vmatpush1.bf16.msra.mxu0 %v3300
        %3315 = vmatprep.subr.bf16.mxu0 0
        %3316 = vmatpush1.bf16.msra.mxu0 %v3301
        %3317 = vmatprep.subr.bf16.mxu0 0
        %3318 = vmatpush1.bf16.msra.mxu0 %v3302
        %3319 = vmatprep.subr.bf16.mxu0 0
        %3320 = vmatpush1.bf16.msra.mxu0 0
        %3321 = vmatprep.subr.bf16.mxu0 0
        %3322 = vmatpush1.bf16.msra.mxu0 0
        %3323 = vmatprep.subr.bf16.mxu0 0
        %3324 = vmatpush1.bf16.msra.mxu0 0
        %3325 = vmatprep.subr.bf16.mxu0 0
        %3326 = vmatpush1.bf16.msra.mxu0 0
        %3327 = vmatprep.subr.bf16.mxu0 0
        %3328 = vmatpush1.bf16.msra.mxu0 0
        %3329 = vmatprep.subr.bf16.mxu0 0
        %3330 = vmatpush1.bf16.msra.mxu0 0
        %3331 = vmatprep.subr.bf16.mxu0 0
        %3332 = vmatpush1.bf16.msra.mxu0 0
        %3333 = vmatprep.subr.bf16.mxu0 0
        %3334 = vmatpush1.bf16.msra.mxu0 0
        %3335 = vmatprep.mubr.bf16.mxu0 0
        %3336 = vmatmul.mubr.bf16.gmra.mrb[0].mxu0 %v3287
        %v3337 = vpop.f32.mrb[0].mxu0
        %v3338 = vadd.f32 0.0, %v3337
        %v3339 = vpop.f32.mrb[0].mxu0
        %v3340 = vpop.f32.mrb[0].mxu0
        %v3341 = vadd.f32 0.0, %v3340
        %v3342 = vpop.f32.mrb[0].mxu0
        %3343 = vmatprep.mubr.bf16.mxu0 0
        %3344 = vmatmul.mubr.bf16.gmra.mrb[0].mxu0 %v3288
        %v3345 = vpop.f32.mrb[0].mxu0
        %v3346 = vadd.f32 0.0, %v3345
        %v3347 = vpop.f32.mrb[0].mxu0
        %v3348 = vpop.f32.mrb[0].mxu0
        %v3349 = vadd.f32 0.0, %v3348
        %v3350 = vpop.f32.mrb[0].mxu0
        %3351 = vmatprep.mubr.bf16.mxu0 0
        %3352 = vmatmul.mubr.bf16.gmra.mrb[0].mxu0 %v3289
        %v3353 = vpop.f32.mrb[0].mxu0
        %v3354 = vadd.f32 0.0, %v3353
        %v3355 = vpop.f32.mrb[0].mxu0
        %v3356 = vpop.f32.mrb[0].mxu0
        %v3357 = vadd.f32 0.0, %v3356
        %v3358 = vpop.f32.mrb[0].mxu0
        %3359 = vmatprep.mubr.bf16.mxu0 0
        %3360 = vmatmul.mubr.bf16.gmra.mrb[0].mxu0 %v3290
        %v3361 = vpop.f32.mrb[0].mxu0
        %v3362 = vadd.f32 0.0, %v3361
        %v3363 = vpop.f32.mrb[0].mxu0
        %v3364 = vpop.f32.mrb[0].mxu0
        %v3365 = vadd.f32 0.0, %v3364
        %v3366 = vpop.f32.mrb[0].mxu0
        %3367 = vmatprep.mubr.bf16.mxu0 0
        %3368 = vmatmul.mubr.bf16.gmra.mrb[0].mxu0 %v3291
        %v3369 = vpop.f32.mrb[0].mxu0
        %v3370 = vadd.f32 0.0, %v3369
        %v3371 = vpop.f32.mrb[0].mxu0
        %v3372 = vpop.f32.mrb[0].mxu0
        %v3373 = vadd.f32 0.0, %v3372
        %v3374 = vpop.f32.mrb[0].mxu0
        %3375 = vmatprep.mubr.bf16.mxu0 0
        %3376 = vmatmul.mubr.bf16.gmra.mrb[0].mxu0 %v3292
        %v3377 = vpop.f32.mrb[0].mxu0
        %v3378 = vadd.f32 0.0, %v3377
        %v3379 = vpop.f32.mrb[0].mxu0
        %v3380 = vpop.f32.mrb[0].mxu0
        %v3381 = vadd.f32 0.0, %v3380
        %v3382 = vpop.f32.mrb[0].mxu0
        %3383 = vmatprep.mubr.bf16.mxu0 0
        %3384 = vmatmul.mubr.bf16.gmra.mrb[0].mxu0 %v3293
        %v3385 = vpop.f32.mrb[0].mxu0
        %v3386 = vadd.f32 0.0, %v3385
        %v3387 = vpop.f32.mrb[0].mxu0
        %v3388 = vpop.f32.mrb[0].mxu0
        %v3389 = vadd.f32 0.0, %v3388
        %v3390 = vpop.f32.mrb[0].mxu0
        %3391 = vmatprep.mubr.bf16.mxu0 0
        %3392 = vmatmul.mubr.bf16.gmra.mrb[0].mxu0 %v3294
        %v3393 = vpop.f32.mrb[0].mxu0
        %v3394 = vadd.f32 0.0, %v3393
        %v3395 = vpop.f32.mrb[0].mxu0
        %v3396 = vpop.f32.mrb[0].mxu0
        %v3397 = vadd.f32 0.0, %v3396
        %v3398 = vpop.f32.mrb[0].mxu0
        %3399 = vdwg.mxu0
        %3400 = vmatprep.subr.bf16.mxu0 0
        %3401 = vmatpush1.bf16.msra.mxu0 %v3263
        %3402 = vmatprep.subr.bf16.mxu0 0
        %3403 = vmatpush1.bf16.msra.mxu0 %v3264
        %3404 = vmatprep.subr.bf16.mxu0 0
        %3405 = vmatpush1.bf16.msra.mxu0 %v3265
        %3406 = vmatprep.subr.bf16.mxu0 0
        %3407 = vmatpush1.bf16.msra.mxu0 %v3266
        %3408 = vmatprep.subr.bf16.mxu0 0
        %3409 = vmatpush1.bf16.msra.mxu0 %v3267
        %3410 = vmatprep.subr.bf16.mxu0 0
        %3411 = vmatpush1.bf16.msra.mxu0 %v3268
        %3412 = vmatprep.subr.bf16.mxu0 0
        %3413 = vmatpush1.bf16.msra.mxu0 %v3269
        %3414 = vmatprep.subr.bf16.mxu0 0
        %3415 = vmatpush1.bf16.msra.mxu0 %v3270
        %3416 = vmatprep.subr.bf16.mxu0 0
        %3417 = vmatpush1.bf16.msra.mxu0 0
        %3418 = vmatprep.subr.bf16.mxu0 0
        %3419 = vmatpush1.bf16.msra.mxu0 0
        %3420 = vmatprep.subr.bf16.mxu0 0
        %3421 = vmatpush1.bf16.msra.mxu0 0
        %3422 = vmatprep.subr.bf16.mxu0 0
        %3423 = vmatpush1.bf16.msra.mxu0 0
        %3424 = vmatprep.subr.bf16.mxu0 0
        %3425 = vmatpush1.bf16.msra.mxu0 0
        %3426 = vmatprep.subr.bf16.mxu0 0
        %3427 = vmatpush1.bf16.msra.mxu0 0
        %3428 = vmatprep.subr.bf16.mxu0 0
        %3429 = vmatpush1.bf16.msra.mxu0 0
        %3430 = vmatprep.subr.bf16.mxu0 0
        %3431 = vmatpush1.bf16.msra.mxu0 0
        %3432 = vmatprep.mubr.bf16.mxu0 0
        %3433 = vmatmul.mubr.bf16.gmra.mrb[0].mxu0 %v3255
        %v3434 = vpop.f32.mrb[0].mxu0
        %v3435 = vadd.f32 %v3338, %v3434
        %v3436 = vpop.f32.mrb[0].mxu0
        %v3437 = vpop.f32.mrb[0].mxu0
        %v3438 = vadd.f32 %v3341, %v3437
        %v3439 = vpop.f32.mrb[0].mxu0
        %3440 = vmatprep.mubr.bf16.mxu0 0
        %3441 = vmatmul.mubr.bf16.gmra.mrb[0].mxu0 %v3256
        %v3442 = vpop.f32.mrb[0].mxu0
        %v3443 = vadd.f32 %v3346, %v3442
        %v3444 = vpop.f32.mrb[0].mxu0
        %v3445 = vpop.f32.mrb[0].mxu0
        %v3446 = vadd.f32 %v3349, %v3445
        %v3447 = vpop.f32.mrb[0].mxu0
        %3448 = vmatprep.mubr.bf16.mxu0 0
        %3449 = vmatmul.mubr.bf16.gmra.mrb[0].mxu0 %v3257
        %v3450 = vpop.f32.mrb[0].mxu0
        %v3451 = vadd.f32 %v3354, %v3450
        %v3452 = vpop.f32.mrb[0].mxu0
        %v3453 = vpop.f32.mrb[0].mxu0
        %v3454 = vadd.f32 %v3357, %v3453
        %v3455 = vpop.f32.mrb[0].mxu0
        %3456 = vmatprep.mubr.bf16.mxu0 0
        %3457 = vmatmul.mubr.bf16.gmra.mrb[0].mxu0 %v3258
        %v3458 = vpop.f32.mrb[0].mxu0
        %v3459 = vadd.f32 %v3362, %v3458
        %v3460 = vpop.f32.mrb[0].mxu0
        %v3461 = vpop.f32.mrb[0].mxu0
        %v3462 = vadd.f32 %v3365, %v3461
        %v3463 = vpop.f32.mrb[0].mxu0
        %3464 = vmatprep.mubr.bf16.mxu0 0
        %3465 = vmatmul.mubr.bf16.gmra.mrb[0].mxu0 %v3259
        %v3466 = vpop.f32.mrb[0].mxu0
        %v3467 = vadd.f32 %v3370, %v3466
        %v3468 = vpop.f32.mrb[0].mxu0
        %v3469 = vpop.f32.mrb[0].mxu0
        %v3470 = vadd.f32 %v3373, %v3469
        %v3471 = vpop.f32.mrb[0].mxu0
        %3472 = vmatprep.mubr.bf16.mxu0 0
        %3473 = vmatmul.mubr.bf16.gmra.mrb[0].mxu0 %v3260
        %v3474 = vpop.f32.mrb[0].mxu0
        %v3475 = vadd.f32 %v3378, %v3474
        %v3476 = vpop.f32.mrb[0].mxu0
        %v3477 = vpop.f32.mrb[0].mxu0
        %v3478 = vadd.f32 %v3381, %v3477
        %v3479 = vpop.f32.mrb[0].mxu0
        %3480 = vmatprep.mubr.bf16.mxu0 0
        %3481 = vmatmul.mubr.bf16.gmra.mrb[0].mxu0 %v3261
        %v3482 = vpop.f32.mrb[0].mxu0
        %v3483 = vadd.f32 %v3386, %v3482
        %v3484 = vpop.f32.mrb[0].mxu0
        %v3485 = vpop.f32.mrb[0].mxu0
        %v3486 = vadd.f32 %v3389, %v3485
        %v3487 = vpop.f32.mrb[0].mxu0
        %3488 = vmatprep.mubr.bf16.mxu0 0
        %3489 = vmatmul.mubr.bf16.gmra.mrb[0].mxu0 %v3262
        %v3490 = vpop.f32.mrb[0].mxu0
        %v3491 = vadd.f32 %v3394, %v3490
        %v3492 = vpop.f32.mrb[0].mxu0
        %v3493 = vpop.f32.mrb[0].mxu0
        %v3494 = vadd.f32 %v3397, %v3493
        %v3495 = vpop.f32.mrb[0].mxu0
        %3496 = vdwg.mxu0
        %v3497 = vpack.c.bf16 %v3438, %v3435
        %v3498 = vpack.c.bf16 %v3446, %v3443
        %v3499 = vpack.c.bf16 %v3454, %v3451
        %v3500 = vpack.c.bf16 %v3462, %v3459
        %v3501 = vpack.c.bf16 %v3470, %v3467
        %v3502 = vpack.c.bf16 %v3478, %v3475
        %v3503 = vpack.c.bf16 %v3486, %v3483
        %v3504 = vpack.c.bf16 %v3494, %v3491
        %v3513 = vunpack.c.l.b16 %v3497
        %v3514 = vunpack.c.h.b16 %v3497
        %v3515 = vunpack.c.l.b16 %v3498
        %v3516 = vunpack.c.h.b16 %v3498
        %v3517 = vunpack.c.l.b16 %v3499
        %v3518 = vunpack.c.h.b16 %v3499
        %v3519 = vunpack.c.l.b16 %v3500
        %v3520 = vunpack.c.h.b16 %v3500
        %v3521 = vunpack.c.l.b16 %v3501
        %v3522 = vunpack.c.h.b16 %v3501
        %v3523 = vunpack.c.l.b16 %v3502
        %v3524 = vunpack.c.h.b16 %v3502
        %v3525 = vunpack.c.l.b16 %v3503
        %v3526 = vunpack.c.h.b16 %v3503
        %v3527 = vunpack.c.l.b16 %v3504
        %v3528 = vunpack.c.h.b16 %v3504
        %v3529 = vpack.c.b16 %v3513, %v3513
        %v3530 = vpack.c.b16 %v3514, %v3514
        %v3531 = vpack.c.b16 %v3515, %v3515
        %v3532 = vpack.c.b16 %v3516, %v3516
        %v3533 = vpack.c.b16 %v3517, %v3517
        %v3534 = vpack.c.b16 %v3518, %v3518
        %v3535 = vpack.c.b16 %v3519, %v3519
        %v3536 = vpack.c.b16 %v3520, %v3520
        %v3537 = vpack.c.b16 %v3521, %v3521
        %v3538 = vpack.c.b16 %v3522, %v3522
        %v3539 = vpack.c.b16 %v3523, %v3523
        %v3540 = vpack.c.b16 %v3524, %v3524
        %v3541 = vpack.c.b16 %v3525, %v3525
        %v3542 = vpack.c.b16 %v3526, %v3526
        %v3543 = vpack.c.b16 %v3527, %v3527
        %v3544 = vpack.c.b16 %v3528, %v3528
        %3561 = vst [vmem:[%s176 + $0x40] sm:$0xf] %v3529
        %3562 = vst [vmem:[%s176 + $0x44] sm:$0xf] %v3530
        %3563 = vst [vmem:[%s176 + $0x48] sm:$0xf] %v3531
        %3564 = vst [vmem:[%s176 + $0x4c] sm:$0xf] %v3532
        %3565 = vst [vmem:[%s176 + $0x50] sm:$0xf] %v3533
        %3566 = vst [vmem:[%s176 + $0x54] sm:$0xf] %v3534
        %3567 = vst [vmem:[%s176 + $0x58] sm:$0xf] %v3535
        %3568 = vst [vmem:[%s176 + $0x5c] sm:$0xf] %v3536
        %3569 = vst [vmem:[%s176 + $0x60] sm:$0xf] %v3537
        %3570 = vst [vmem:[%s176 + $0x64] sm:$0xf] %v3538
        %3571 = vst [vmem:[%s176 + $0x68] sm:$0xf] %v3539
        %3572 = vst [vmem:[%s176 + $0x6c] sm:$0xf] %v3540
        %3573 = vst [vmem:[%s176 + $0x70] sm:$0xf] %v3541
        %3574 = vst [vmem:[%s176 + $0x74] sm:$0xf] %v3542
        %3575 = vst [vmem:[%s176 + $0x78] sm:$0xf] %v3543
        %3576 = vst [vmem:[%s176 + $0x7c] sm:$0xf] %v3544
        %s3577 = sand.u32 %s75, 1
        %s3578 = scalar_lea.sflag [#allocation7], %s3577
        %s3579 = sand.u32 %s75, 1
        %s3580 = smul.addr %s3579, 128
        %s3581 = scalar_lea.vmem [#allocation10], %s3580
        // Predicated region
        $region37: #{tpu_custom_call.1} parent=27 // pred_check
          %p3582 = pneg %p85
        $region38: #{tpu_custom_call.1} parent=27 // pred_check_branch
          %3584 = sbr.rel (%p3582) target = $region40
        $region39: #{tpu_custom_call.1} parent=27 // pred_region
          %s3586 = ssub.s32 2048, 2048
          %3587 = vsyncadd %s3578, %s3586
          %s3588 = smul.addr %s20, 32
          %s3589 = smul.addr %s3588, 64
          %s3590 = scalar_lea.hbm %s2, %s3589
          %s3591 = sshll.u32 %s3581, 4
          %s3592 = int_to_ptr.vmem [resolvable:$true] %s3591
          %3597 = dma.vmem_to_hbm [thread:$0]  %s3592, 2048, %s3590, %s3578, 64, 64, 4
        $region40: #{tpu_custom_call.1} parent=27 // pred_fallthru
          _
      $region28: #{tpu_custom_call.1} parent=5 // pred_fallthru
        _
      %p3598 = scmp.le.s32.totalorder 2, %s15
      // Predicated region
      $region41: #{tpu_custom_call.1} parent=5 // pred_check
        %p3599 = pneg %p3598
      $region42: #{tpu_custom_call.1} parent=5 // pred_check_branch
        %3601 = sbr.rel (%p3599) target = $region44
      $region43: #{tpu_custom_call.1} parent=5 // pred_region
        %s3602 = ssub.s32 %s15, 2
        // Predicated region
        $region45: #{tpu_custom_call.1} parent=43 // pred_check
          %p3603 = pneg %p91
        $region46: #{tpu_custom_call.1} parent=43 // pred_check_branch
          %3605 = sbr.rel (%p3603) target = $region48
        $region47: #{tpu_custom_call.1} parent=43 // pred_region
          %s3606 = sand.u32 %s76, 1
          %s3607 = scalar_lea.sflag [#allocation7], %s3606
          %s3608 = sand.u32 %s76, 1
          %s3609 = smul.addr %s3608, 128
          %s3610 = scalar_lea.vmem [#allocation10], %s3609
          %3611 = dma.done %s3607, 2048
        $region48: #{tpu_custom_call.1} parent=43 // pred_fallthru
          _
      $region44: #{tpu_custom_call.1} parent=5 // pred_fallthru
        _
    $region6: #{tpu_custom_call.1} parent=1 // loop_footer
      %s19 = sadd.s32 1, %s15
    $region7: #{tpu_custom_call.1} parent=1 // loop_footer_branch
      %14 = sbr.rel target = $region3
    $region8: #{tpu_custom_call.1} parent=1 // loop_exit
      _
    %3612 = vsyncpa [#allocation6], 1
    %s3613 = scalar_lea.sflag [#allocation6], 1
    %3614 = vsyncpa %s3613, 1
    %3615 = vsyncpa [#allocation9], 1
    %3616 = vsyncpa [#allocation7], 1
    %s3617 = scalar_lea.sflag [#allocation7], 1
    %3618 = vsyncpa %s3617, 1

</llo_original>
